<compile_context>
chip_gen: v7x
topology: tpu7x:2x2x1
jax: 0.10.0
libtpu: 0.0.40
codegen_flags: <defaults>
</compile_context>

<pallas_src>
import functools

import jax
import jax.numpy as jnp
from jax.experimental import pallas as pl
from jax.experimental.pallas import tpu as pltpu

# ---------------------------------------------------------------------------
# Model configuration (mirrors NFC(num_users, num_items, mf_dim, hidden_dim)).
# hidden_dim = [h0, h1, h2]  ->  MLP_layers = [Linear(h0, h1), Linear(h1, h2)]
# MLP embedding dim = h0 // 2, predict layer in = mf_dim + h2, out = 1.
# ---------------------------------------------------------------------------
NUM_USERS = 32
NUM_ITEMS = 48
MF_DIM = 8
HIDDEN_DIM = [16, 32, 16]
H0, H1, H2 = HIDDEN_DIM
EMB_DIM = H0 // 2                         # 8
EMB_TOT = MF_DIM + EMB_DIM                # 16 (stacked MF + MLP embedding rows)
NCONST = H1 + H2 + MF_DIM + H2 + 1        # packed constant slab rows
BATCH_TILE = 512                          # lane-axis batch tile per grid step

_HIGH = jax.lax.Precision.HIGHEST


def nfc_kernel(uid_ref, iid_ref, utab_ref, itab_ref, w1_ref, w2_ref, c_ref,
               out_ref):
    tb = uid_ref.shape[1]
    uid = uid_ref[...]                                        # (1, TB) int32
    iid = iid_ref[...]                                        # (1, TB) int32

    # In-kernel embedding gather as one-hot matmuls (lane-dense, MXU work).
    u_hot = jnp.where(
        jax.lax.broadcasted_iota(jnp.int32, (NUM_USERS, tb), 0) == uid, 1.0, 0.0)
    i_hot = jnp.where(
        jax.lax.broadcasted_iota(jnp.int32, (NUM_ITEMS, tb), 0) == iid, 1.0, 0.0)
    u_lat = jnp.dot(utab_ref[...], u_hot,
                    preferred_element_type=jnp.float32, precision=_HIGH)  # (16, TB)
    i_lat = jnp.dot(itab_ref[...], i_hot,
                    preferred_element_type=jnp.float32, precision=_HIGH)  # (16, TB)

    # GMF branch: elementwise product of the two MF embeddings.
    mf_vec = u_lat[:MF_DIM, :] * i_lat[:MF_DIM, :]            # (8, TB)

    # MLP branch: torch.cat([mlp_u, mlp_i]) == concat along the feature
    # (sublane) axis in the transposed layout.
    mlp_cat = jnp.concatenate([u_lat[MF_DIM:, :], i_lat[MF_DIM:, :]], axis=0)  # (16, TB)

    # Packed constants: b1 | b2 | wp_mf | wp_mlp | bp  (all as column vectors).
    b1 = c_ref[0:H1, :]                                       # (32, 1)
    b2 = c_ref[H1:H1 + H2, :]                                 # (16, 1)
    wp_mf = c_ref[H1 + H2:H1 + H2 + MF_DIM, :]                # (8, 1)
    wp_mlp = c_ref[H1 + H2 + MF_DIM:H1 + H2 + MF_DIM + H2, :]  # (16, 1)
    bp = c_ref[NCONST - 1:NCONST, :]                          # (1, 1)

    # MLP layer 1: relu(W1 @ x + b1)   (W1 is torch-convention (out, in)).
    h = jnp.dot(w1_ref[...], mlp_cat,
                preferred_element_type=jnp.float32, precision=_HIGH) + b1
    h = jnp.maximum(h, 0.0)                                   # (32, TB)

    # MLP layer 2: relu(W2 @ h + b2)
    h = jnp.dot(w2_ref[...], h,
                preferred_element_type=jnp.float32, precision=_HIGH) + b2
    h = jnp.maximum(h, 0.0)                                   # (16, TB)

    # Prediction head on the VPU + sublane reduce (avoids an N=1 MXU matmul).
    logits = (jnp.sum(mf_vec * wp_mf, axis=0, keepdims=True)
              + jnp.sum(h * wp_mlp, axis=0, keepdims=True)
              + bp)                                           # (1, TB)
    out_ref[...] = jax.nn.sigmoid(logits)


def _round_up(x, m):
    return ((x + m - 1) // m) * m


@functools.partial(jax.jit, static_argnames=("batch_tile",))
def nfc_forward(user_input, item_input, params, *, batch_tile=BATCH_TILE):
    B = user_input.shape[0]
    tb = min(batch_tile, _round_up(B, 128))
    Bp = _round_up(B, tb)
    pad = Bp - B

    # Pad with index 0 (always in range for the in-kernel gather) and put the
    # batch on the lane axis.
    uid = jnp.pad(user_input.astype(jnp.int32), (0, pad)).reshape(1, Bp)
    iid = jnp.pad(item_input.astype(jnp.int32), (0, pad)).reshape(1, Bp)

    # Pack parameters into few, feature-major operands (tiny, one-time work).
    utab = jnp.concatenate(
        [params["mf_emb_user"].T, params["mlp_emb_user"].T], axis=0)   # (16, NU)
    itab = jnp.concatenate(
        [params["mf_emb_item"].T, params["mlp_emb_item"].T], axis=0)   # (16, NI)
    w1 = params["w1"]                      # (h1, h0) torch convention (out, in)
    w2 = params["w2"]                      # (h2, h1)
    consts = jnp.concatenate([
        params["b1"].reshape(-1, 1),
        params["b2"].reshape(-1, 1),
        params["wp"][:, :MF_DIM].reshape(-1, 1),
        params["wp"][:, MF_DIM:].reshape(-1, 1),
        params["bp"].reshape(1, 1),
    ], axis=0)                             # (NCONST, 1)

    grid = (Bp // tb,)
    batch_spec = pl.BlockSpec((1, tb), lambda b: (0, b))
    full = lambda shp: pl.BlockSpec(shp, lambda b: (0, 0))

    out = pl.pallas_call(
        nfc_kernel,
        out_shape=jax.ShapeDtypeStruct((1, Bp), jnp.float32),
        grid=grid,
        in_specs=[
            batch_spec,                        # user indices   (1, TB)
            batch_spec,                        # item indices   (1, TB)
            full((EMB_TOT, NUM_USERS)),        # stacked user embedding tables
            full((EMB_TOT, NUM_ITEMS)),        # stacked item embedding tables
            full((H1, H0)),                    # MLP layer-1 weight
            full((H2, H1)),                    # MLP layer-2 weight
            full((NCONST, 1)),                 # packed b1|b2|wp_mf|wp_mlp|bp
        ],
        out_specs=batch_spec,                  # lane-dense (1, TB) output
        compiler_params=pltpu.CompilerParams(
            dimension_semantics=("parallel",)),
    )(uid, iid, utab, itab, w1, w2, consts)

    return out[0, :B].reshape(B, 1)


def init_params(key):
    """Deterministic parameter init mirroring NFC._init_weight_ shapes.

    Embeddings ~ N(0, 0.01); linear weights kaiming-uniform, stored in torch
    convention (out_features, in_features); biases ~ small uniform.
    """
    ks = jax.random.split(key, 10)

    def kaiming_uniform(k, fan_in, shape):
        bound = jnp.sqrt(6.0 / fan_in)
        return jax.random.uniform(k, shape, jnp.float32, -bound, bound)

    return {
        "mf_emb_user": 0.01 * jax.random.normal(ks[0], (NUM_USERS, MF_DIM), jnp.float32),
        "mf_emb_item": 0.01 * jax.random.normal(ks[1], (NUM_ITEMS, MF_DIM), jnp.float32),
        "mlp_emb_user": 0.01 * jax.random.normal(ks[2], (NUM_USERS, EMB_DIM), jnp.float32),
        "mlp_emb_item": 0.01 * jax.random.normal(ks[3], (NUM_ITEMS, EMB_DIM), jnp.float32),
        "w1": kaiming_uniform(ks[4], H0, (H1, H0)),
        "b1": jax.random.uniform(ks[5], (H1,), jnp.float32, -0.1, 0.1),
        "w2": kaiming_uniform(ks[6], H1, (H2, H1)),
        "b2": jax.random.uniform(ks[7], (H2,), jnp.float32, -0.1, 0.1),
        "wp": kaiming_uniform(ks[8], MF_DIM + H2, (1, MF_DIM + H2)),
        "bp": jax.random.uniform(ks[9], (1,), jnp.float32, -0.1, 0.1),
    }


def nfc_reference(user_input, item_input, params):
    """Pure-JAX reference matching the PyTorch forward pass."""
    mf = (jnp.take(params["mf_emb_user"], user_input, axis=0)
          * jnp.take(params["mf_emb_item"], item_input, axis=0))
    mlp_u = jnp.take(params["mlp_emb_user"], user_input, axis=0)
    mlp_i = jnp.take(params["mlp_emb_item"], item_input, axis=0)
    x = jnp.concatenate([mlp_u, mlp_i], axis=-1)
    x = jax.nn.relu(jnp.dot(x, params["w1"].T, precision=_HIGH) + params["b1"])
    x = jax.nn.relu(jnp.dot(x, params["w2"].T, precision=_HIGH) + params["b2"])
    pv = jnp.concatenate([mf, x], axis=-1)
    return jax.nn.sigmoid(jnp.dot(pv, params["wp"].T, precision=_HIGH) + params["bp"])


if __name__ == "__main__":
    key = jax.random.PRNGKey(0)
    pkey, ukey, ikey = jax.random.split(key, 3)
    params = init_params(pkey)

    B = 1024  # tile=512 -> 2 "parallel" grid steps (keeps both v7x TCs busy)
    user_input = jax.random.randint(ukey, (B,), 0, NUM_USERS, dtype=jnp.int32)
    item_input = jax.random.randint(ikey, (B,), 0, NUM_ITEMS, dtype=jnp.int32)

    out = nfc_forward(user_input, item_input, params)
    out = jax.block_until_ready(out)

    ref = nfc_reference(user_input, item_input, params)
    assert out.shape == (B, 1), out.shape
    assert jnp.allclose(out, ref, atol=1e-5, rtol=1e-5), float(
        jnp.max(jnp.abs(out - ref)))

    print("KERNEL_OK")
</pallas_src>

<mosaic_0001>
module attributes {stable_mosaic.version = 11 : i64} {
  func.func @nfc_kernel(%arg0: i32, %arg1: memref<1x512xi32, #tpu.memory_space<vmem>>, %arg2: memref<1x512xi32, #tpu.memory_space<vmem>>, %arg3: memref<16x32xf32, #tpu.memory_space<vmem>>, %arg4: memref<16x48xf32, #tpu.memory_space<vmem>>, %arg5: memref<32x16xf32, #tpu.memory_space<vmem>>, %arg6: memref<16x32xf32, #tpu.memory_space<vmem>>, %arg7: memref<73x1xf32, #tpu.memory_space<vmem>>, %arg8: memref<1x512xf32, #tpu.memory_space<vmem>>) attributes {dimension_semantics = [#tpu.dimension_semantics<parallel>], iteration_bounds = array<i64: 2>, scalar_prefetch = 0 : i64, scratch_operands = 0 : i64, tpu.core_type = #tpu.core_type<tc>, window_params = [{transform_indices = @transform_0, window_bounds = array<i64: 1, 512>}, {transform_indices = @transform_1, window_bounds = array<i64: 1, 512>}, {pipeline_mode = #tpu.pipeline_mode<synchronous>, transform_indices = @transform_2, window_bounds = array<i64: 16, 32>}, {pipeline_mode = #tpu.pipeline_mode<synchronous>, transform_indices = @transform_3, window_bounds = array<i64: 16, 48>}, {pipeline_mode = #tpu.pipeline_mode<synchronous>, transform_indices = @transform_4, window_bounds = array<i64: 32, 16>}, {pipeline_mode = #tpu.pipeline_mode<synchronous>, transform_indices = @transform_5, window_bounds = array<i64: 16, 32>}, {pipeline_mode = #tpu.pipeline_mode<synchronous>, transform_indices = @transform_6, window_bounds = array<i64: 73, 1>}, {transform_indices = @transform_7, window_bounds = array<i64: 1, 512>}]} {
    %c0 = arith.constant 0 : index
    %c0_0 = arith.constant 0 : index
    %0 = vector.load %arg1[%c0, %c0_0] : memref<1x512xi32, #tpu.memory_space<vmem>>, vector<1x512xi32>
    %c0_1 = arith.constant 0 : index
    %c0_2 = arith.constant 0 : index
    %1 = vector.load %arg2[%c0_1, %c0_2] : memref<1x512xi32, #tpu.memory_space<vmem>>, vector<1x512xi32>
    %2 = tpu.iota {dimensions = array<i32: 0>} : vector<32x512xi32>
    %3 = vector.broadcast %0 : vector<1x512xi32> to vector<32x512xi32>
    %4 = arith.cmpi eq, %2, %3 : vector<32x512xi32>
    %cst = arith.constant 1.000000e+00 : f32
    %cst_3 = arith.constant 0.000000e+00 : f32
    %5 = vector.broadcast %cst : f32 to vector<32x512xf32>
    %6 = vector.broadcast %cst_3 : f32 to vector<32x512xf32>
    %7 = arith.select %4, %5, %6 : vector<32x512xi1>, vector<32x512xf32>
    %8 = tpu.iota {dimensions = array<i32: 0>} : vector<48x512xi32>
    %9 = vector.broadcast %1 : vector<1x512xi32> to vector<48x512xi32>
    %10 = arith.cmpi eq, %8, %9 : vector<48x512xi32>
    %cst_4 = arith.constant 1.000000e+00 : f32
    %cst_5 = arith.constant 0.000000e+00 : f32
    %11 = vector.broadcast %cst_4 : f32 to vector<48x512xf32>
    %12 = vector.broadcast %cst_5 : f32 to vector<48x512xf32>
    %13 = arith.select %10, %11, %12 : vector<48x512xi1>, vector<48x512xf32>
    %c0_6 = arith.constant 0 : index
    %c0_7 = arith.constant 0 : index
    %14 = vector.load %arg3[%c0_6, %c0_7] : memref<16x32xf32, #tpu.memory_space<vmem>>, vector<16x32xf32>
    %cst_8 = arith.constant dense<0.000000e+00> : vector<16x512xf32>
    %15 = tpu.matmul %14, %7, %cst_8 {dimension_numbers = #tpu.dot_dimension_numbers<[1], [0], [0], [1], [0, 0, 1, 1], [], []>, precision = #tpu.contract_precision<fp32>} : vector<16x32xf32>, vector<32x512xf32>, vector<16x512xf32> -> vector<16x512xf32>
    %c0_9 = arith.constant 0 : index
    %c0_10 = arith.constant 0 : index
    %16 = vector.load %arg4[%c0_9, %c0_10] : memref<16x48xf32, #tpu.memory_space<vmem>>, vector<16x48xf32>
    %cst_11 = arith.constant dense<0.000000e+00> : vector<16x512xf32>
    %17 = tpu.matmul %16, %13, %cst_11 {dimension_numbers = #tpu.dot_dimension_numbers<[1], [0], [0], [1], [0, 0, 1, 1], [], []>, precision = #tpu.contract_precision<fp32>} : vector<16x48xf32>, vector<48x512xf32>, vector<16x512xf32> -> vector<16x512xf32>
    %18 = vector.extract_strided_slice %15 {offsets = [0, 0], sizes = [8, 512], strides = [1, 1]} : vector<16x512xf32> to vector<8x512xf32>
    %19 = vector.extract_strided_slice %17 {offsets = [0, 0], sizes = [8, 512], strides = [1, 1]} : vector<16x512xf32> to vector<8x512xf32>
    %20 = arith.mulf %18, %19 : vector<8x512xf32>
    %21 = vector.extract_strided_slice %15 {offsets = [8, 0], sizes = [8, 512], strides = [1, 1]} : vector<16x512xf32> to vector<8x512xf32>
    %22 = vector.extract_strided_slice %17 {offsets = [8, 0], sizes = [8, 512], strides = [1, 1]} : vector<16x512xf32> to vector<8x512xf32>
    %23 = tpu.concatenate %21, %22 in 0 : vector<8x512xf32>, vector<8x512xf32> -> vector<16x512xf32>
    %c0_12 = arith.constant 0 : index
    %c0_13 = arith.constant 0 : index
    %24 = vector.load %arg7[%c0_12, %c0_13] : memref<73x1xf32, #tpu.memory_space<vmem>>, vector<32x1xf32>
    %c32 = arith.constant 32 : index
    %c0_14 = arith.constant 0 : index
    %25 = vector.load %arg7[%c32, %c0_14] : memref<73x1xf32, #tpu.memory_space<vmem>>, vector<16x1xf32>
    %c48 = arith.constant 48 : index
    %c0_15 = arith.constant 0 : index
    %26 = vector.load %arg7[%c48, %c0_15] : memref<73x1xf32, #tpu.memory_space<vmem>>, vector<8x1xf32>
    %c56 = arith.constant 56 : index
    %c0_16 = arith.constant 0 : index
    %27 = vector.load %arg7[%c56, %c0_16] : memref<73x1xf32, #tpu.memory_space<vmem>>, vector<16x1xf32>
    %c72 = arith.constant 72 : index
    %c0_17 = arith.constant 0 : index
    %28 = vector.load %arg7[%c72, %c0_17] : memref<73x1xf32, #tpu.memory_space<vmem>>, vector<1x1xf32>
    %c0_18 = arith.constant 0 : index
    %c0_19 = arith.constant 0 : index
    %29 = vector.load %arg5[%c0_18, %c0_19] : memref<32x16xf32, #tpu.memory_space<vmem>>, vector<32x16xf32>
    %cst_20 = arith.constant dense<0.000000e+00> : vector<32x512xf32>
    %30 = tpu.matmul %29, %23, %cst_20 {dimension_numbers = #tpu.dot_dimension_numbers<[1], [0], [0], [1], [0, 0, 1, 1], [], []>, precision = #tpu.contract_precision<fp32>} : vector<32x16xf32>, vector<16x512xf32>, vector<32x512xf32> -> vector<32x512xf32>
    %31 = vector.broadcast %24 : vector<32x1xf32> to vector<32x512xf32>
    %32 = arith.addf %30, %31 : vector<32x512xf32>
    %cst_21 = arith.constant 0.000000e+00 : f32
    %33 = vector.broadcast %cst_21 : f32 to vector<32x512xf32>
    %34 = arith.maximumf %32, %33 : vector<32x512xf32>
    %c0_22 = arith.constant 0 : index
    %c0_23 = arith.constant 0 : index
    %35 = vector.load %arg6[%c0_22, %c0_23] : memref<16x32xf32, #tpu.memory_space<vmem>>, vector<16x32xf32>
    %cst_24 = arith.constant dense<0.000000e+00> : vector<16x512xf32>
    %36 = tpu.matmul %35, %34, %cst_24 {dimension_numbers = #tpu.dot_dimension_numbers<[1], [0], [0], [1], [0, 0, 1, 1], [], []>, precision = #tpu.contract_precision<fp32>} : vector<16x32xf32>, vector<32x512xf32>, vector<16x512xf32> -> vector<16x512xf32>
    %37 = vector.broadcast %25 : vector<16x1xf32> to vector<16x512xf32>
    %38 = arith.addf %36, %37 : vector<16x512xf32>
    %cst_25 = arith.constant 0.000000e+00 : f32
    %39 = vector.broadcast %cst_25 : f32 to vector<16x512xf32>
    %40 = arith.maximumf %38, %39 : vector<16x512xf32>
    %41 = vector.broadcast %26 : vector<8x1xf32> to vector<8x512xf32>
    %42 = arith.mulf %20, %41 : vector<8x512xf32>
    %cst_26 = arith.constant dense<0.000000e+00> : vector<512xf32>
    %43 = vector.multi_reduction <add>, %42, %cst_26 [0] : vector<8x512xf32> to vector<512xf32>
    %44 = vector.shape_cast %43 : vector<512xf32> to vector<1x512xf32>
    %45 = vector.broadcast %27 : vector<16x1xf32> to vector<16x512xf32>
    %46 = arith.mulf %40, %45 : vector<16x512xf32>
    %cst_27 = arith.constant dense<0.000000e+00> : vector<512xf32>
    %47 = vector.multi_reduction <add>, %46, %cst_27 [0] : vector<16x512xf32> to vector<512xf32>
    %48 = vector.shape_cast %47 : vector<512xf32> to vector<1x512xf32>
    %49 = arith.addf %44, %48 : vector<1x512xf32>
    %50 = vector.broadcast %28 : vector<1x1xf32> to vector<1x512xf32>
    %51 = arith.addf %49, %50 : vector<1x512xf32>
    %52 = arith.negf %51 : vector<1x512xf32>
    %53 = math.exp %52 : vector<1x512xf32>
    %cst_28 = arith.constant 1.000000e+00 : f32
    %54 = vector.broadcast %cst_28 : f32 to vector<1x512xf32>
    %55 = arith.addf %54, %53 : vector<1x512xf32>
    %56 = arith.divf %54, %55 : vector<1x512xf32>
    %c0_29 = arith.constant 0 : index
    %c0_30 = arith.constant 0 : index
    %57 = vector.load %arg8[%c0_29, %c0_30] : memref<1x512xf32, #tpu.memory_space<vmem>>, vector<1x512xf32>
    tpu.vector_store %arg8[%c0_29, %c0_30], %56 {strides = array<i32>} : memref<1x512xf32, #tpu.memory_space<vmem>>, vector<1x512xf32>,
    return
  }
  func.func @transform_0(%arg0: i32) -> (i32, i32) {
    %c0_i32 = arith.constant 0 : i32
    %c0_i32_0 = arith.constant 0 : i32
    return %c0_i32, %arg0 : i32, i32
  }
  func.func @transform_1(%arg0: i32) -> (i32, i32) {
    %c0_i32 = arith.constant 0 : i32
    %c0_i32_0 = arith.constant 0 : i32
    return %c0_i32, %arg0 : i32, i32
  }
  func.func @transform_2(%arg0: i32) -> (i32, i32) {
    %c0_i32 = arith.constant 0 : i32
    %c0_i32_0 = arith.constant 0 : i32
    %c0_i32_1 = arith.constant 0 : i32
    return %c0_i32, %c0_i32_0 : i32, i32
  }
  func.func @transform_3(%arg0: i32) -> (i32, i32) {
    %c0_i32 = arith.constant 0 : i32
    %c0_i32_0 = arith.constant 0 : i32
    %c0_i32_1 = arith.constant 0 : i32
    return %c0_i32, %c0_i32_0 : i32, i32
  }
  func.func @transform_4(%arg0: i32) -> (i32, i32) {
    %c0_i32 = arith.constant 0 : i32
    %c0_i32_0 = arith.constant 0 : i32
    %c0_i32_1 = arith.constant 0 : i32
    return %c0_i32, %c0_i32_0 : i32, i32
  }
  func.func @transform_5(%arg0: i32) -> (i32, i32) {
    %c0_i32 = arith.constant 0 : i32
    %c0_i32_0 = arith.constant 0 : i32
    %c0_i32_1 = arith.constant 0 : i32
    return %c0_i32, %c0_i32_0 : i32, i32
  }
  func.func @transform_6(%arg0: i32) -> (i32, i32) {
    %c0_i32 = arith.constant 0 : i32
    %c0_i32_0 = arith.constant 0 : i32
    %c0_i32_1 = arith.constant 0 : i32
    return %c0_i32, %c0_i32_0 : i32, i32
  }
  func.func @transform_7(%arg0: i32) -> (i32, i32) {
    %c0_i32 = arith.constant 0 : i32
    %c0_i32_0 = arith.constant 0 : i32
    return %c0_i32, %arg0 : i32, i32
  }
}

</mosaic_0001>

<llo_original>
// kernel: nfc_forward.1
$region0: #{nfc_forward.1}
  #allocation0 [shape = 'u32[]', space=smem, size = 0x4, offset = 0x4, fixed_abs, tag = 'smem constant byte address 0x4 - core index']
  #allocation1 [shape = 'u32[144,128]{1,0:T(1,128)}', space=vmem, size = 0x12000, scoped, tag = 'internal scratch']
  %s0 = inlined_call_operand.vmem [shape: s32[1,1024], index: 0, kind: input, shape index: {}]
  %s1 = inlined_call_operand.vmem [shape: s32[1,1024], index: 1, kind: input, shape index: {}]
  %s2 = inlined_call_operand.vmem [shape: f32[16,32], index: 2, kind: input, shape index: {}]
  %s3 = inlined_call_operand.vmem [shape: f32[16,48], index: 3, kind: input, shape index: {}]
  %s4 = inlined_call_operand.vmem [shape: f32[32,16], index: 4, kind: input, shape index: {}]
  %s5 = inlined_call_operand.vmem [shape: f32[16,32], index: 5, kind: input, shape index: {}]
  %s6 = inlined_call_operand.vmem [shape: f32[73,1], index: 6, kind: input, shape index: {}]
  %s7 = inlined_call_operand.hbm [shape: f32[1,1024], index: 7, kind: output, shape index: {}]
  %s8 = sld [smem:[#allocation0]]
  $region61: #{nfc_forward.1} parent=0
    _
  %s10 = ssub.s32 1, %s8
  %s11 = scalar_select 0, %s10, %s8
  $region1: #{nfc_forward.1} parent=0
    #allocation2 [shape = 'u8[4096]{0}', space=vmem, size = 0x1000, scoped, tag = 'output window, operand 0']
    #allocation3 [shape = 's32[2]{0}', space=sflag, size = 0x8, scoped, tag = 'scoped memory for nfc_forward.1']
    %12 = vsyncpa [#allocation3], 0
    %s13 = scalar_lea.sflag [#allocation3], 1
    %14 = vsyncpa %s13, 0
    loop: start=0, step=1, limit=4
    $region2: #{nfc_forward.1} parent=1 // loop_pre_header
      _
    $region3: #{nfc_forward.1} parent=1 // loop_header
      %s16 = sphi 0, %s20
      %p17 = scmp.ge.s32.totalorder %s16, 4
      %s26 = sphi 0, %s28
      %s29 = sphi 0, %s26
      %s30 = sphi 0, %s29
      %s46 = sphi 0, %s30
      %s52 = sphi 0, %s54
      %s55 = sphi 0, %s52
      %s56 = sphi 0, %s55
      %s72 = sphi 0, %s56
      %s76 = sphi 0, %s76
      %s78 = sphi 0, %s76
      %s79 = sphi 0, %s78
      %s93 = sphi 0, %s79
      %s97 = sphi 0, %s97
      %s99 = sphi 0, %s97
      %s100 = sphi 0, %s99
      %s114 = sphi 0, %s100
      %s118 = sphi 0, %s118
      %s120 = sphi 0, %s118
      %s121 = sphi 0, %s120
      %s135 = sphi 0, %s121
      %s139 = sphi 0, %s139
      %s141 = sphi 0, %s139
      %s142 = sphi 0, %s141
      %s156 = sphi 0, %s142
      %s160 = sphi 0, %s160
      %s162 = sphi 0, %s160
      %s163 = sphi 0, %s162
      %s177 = sphi 0, %s163
      %s183 = sphi 0, %s185
      %s186 = sphi 0, %s183
      %s187 = sphi 0, %s186
      %s203 = sphi 0, %s187
    $region4: #{nfc_forward.1} parent=1 // loop_header_branch
      %19 = sbr.rel (%p17) target = $region8
    $region5: #{nfc_forward.1} parent=1 // loop_body
      %s21 = ssub.s32 %s16, 1
      %s22 = ssub.s32 %s16, 2
      %s23 = sadd.s32 %s16, 1
      %s24 = ssub.s32 %s16, %s23
      %p25 = scmp.eq.s32.totalorder %s24, 0
      %s27 = sadd.s32 %s26, 1
      %s28 = scalar_select %p25, %s26, %s27
      %p31 = pneg %p25
      %p32 = scmp.eq.s32.totalorder %s16, 1
      %p33 = por %p31, %p32
      %p34 = scmp.ne.s32.totalorder %s26, %s29
      %p35 = scmp.eq.s32.totalorder %s16, 0
      %p36 = por %p34, %p35
      %p37 = scmp.ne.s32.totalorder %s26, %s29
      %p38 = scmp.eq.s32.totalorder %s21, 1
      %p39 = por %p37, %p38
      %p40 = scmp.ne.s32.totalorder %s29, %s30
      %p41 = scmp.eq.s32.totalorder %s21, 0
      %p42 = por %p40, %p41
      %p43 = scmp.ne.s32.totalorder %s29, %s30
      %p44 = scmp.eq.s32.totalorder %s22, 1
      %p45 = por %p43, %p44
      %p47 = scmp.ne.s32.totalorder %s30, %s46
      %p48 = scmp.eq.s32.totalorder %s22, 0
      %p49 = por %p47, %p48
      %s50 = ssub.s32 %s16, %s23
      %p51 = scmp.eq.s32.totalorder %s50, 0
      %s53 = sadd.s32 %s52, 1
      %s54 = scalar_select %p51, %s52, %s53
      %p57 = pneg %p51
      %p58 = scmp.eq.s32.totalorder %s16, 1
      %p59 = por %p57, %p58
      %p60 = scmp.ne.s32.totalorder %s52, %s55
      %p61 = scmp.eq.s32.totalorder %s16, 0
      %p62 = por %p60, %p61
      %p63 = scmp.ne.s32.totalorder %s52, %s55
      %p64 = scmp.eq.s32.totalorder %s21, 1
      %p65 = por %p63, %p64
      %p66 = scmp.ne.s32.totalorder %s55, %s56
      %p67 = scmp.eq.s32.totalorder %s21, 0
      %p68 = por %p66, %p67
      %p69 = scmp.ne.s32.totalorder %s55, %s56
      %p70 = scmp.eq.s32.totalorder %s22, 1
      %p71 = por %p69, %p70
      %p73 = scmp.ne.s32.totalorder %s56, %s72
      %p74 = scmp.eq.s32.totalorder %s22, 0
      %p75 = por %p73, %p74
      %s77 = sadd.s32 %s76, 1
      %p80 = scmp.eq.s32.totalorder %s16, 1
      %p81 = scmp.ne.s32.totalorder %s76, %s78
      %p82 = scmp.eq.s32.totalorder %s16, 0
      %p83 = por %p81, %p82
      %p84 = scmp.ne.s32.totalorder %s76, %s78
      %p85 = scmp.eq.s32.totalorder %s21, 1
      %p86 = por %p84, %p85
      %p87 = scmp.ne.s32.totalorder %s78, %s79
      %p88 = scmp.eq.s32.totalorder %s21, 0
      %p89 = por %p87, %p88
      %p90 = scmp.ne.s32.totalorder %s78, %s79
      %p91 = scmp.eq.s32.totalorder %s22, 1
      %p92 = por %p90, %p91
      %p94 = scmp.ne.s32.totalorder %s79, %s93
      %p95 = scmp.eq.s32.totalorder %s22, 0
      %p96 = por %p94, %p95
      %s98 = sadd.s32 %s97, 1
      %p101 = scmp.eq.s32.totalorder %s16, 1
      %p102 = scmp.ne.s32.totalorder %s97, %s99
      %p103 = scmp.eq.s32.totalorder %s16, 0
      %p104 = por %p102, %p103
      %p105 = scmp.ne.s32.totalorder %s97, %s99
      %p106 = scmp.eq.s32.totalorder %s21, 1
      %p107 = por %p105, %p106
      %p108 = scmp.ne.s32.totalorder %s99, %s100
      %p109 = scmp.eq.s32.totalorder %s21, 0
      %p110 = por %p108, %p109
      %p111 = scmp.ne.s32.totalorder %s99, %s100
      %p112 = scmp.eq.s32.totalorder %s22, 1
      %p113 = por %p111, %p112
      %p115 = scmp.ne.s32.totalorder %s100, %s114
      %p116 = scmp.eq.s32.totalorder %s22, 0
      %p117 = por %p115, %p116
      %s119 = sadd.s32 %s118, 1
      %p122 = scmp.eq.s32.totalorder %s16, 1
      %p123 = scmp.ne.s32.totalorder %s118, %s120
      %p124 = scmp.eq.s32.totalorder %s16, 0
      %p125 = por %p123, %p124
      %p126 = scmp.ne.s32.totalorder %s118, %s120
      %p127 = scmp.eq.s32.totalorder %s21, 1
      %p128 = por %p126, %p127
      %p129 = scmp.ne.s32.totalorder %s120, %s121
      %p130 = scmp.eq.s32.totalorder %s21, 0
      %p131 = por %p129, %p130
      %p132 = scmp.ne.s32.totalorder %s120, %s121
      %p133 = scmp.eq.s32.totalorder %s22, 1
      %p134 = por %p132, %p133
      %p136 = scmp.ne.s32.totalorder %s121, %s135
      %p137 = scmp.eq.s32.totalorder %s22, 0
      %p138 = por %p136, %p137
      %s140 = sadd.s32 %s139, 1
      %p143 = scmp.eq.s32.totalorder %s16, 1
      %p144 = scmp.ne.s32.totalorder %s139, %s141
      %p145 = scmp.eq.s32.totalorder %s16, 0
      %p146 = por %p144, %p145
      %p147 = scmp.ne.s32.totalorder %s139, %s141
      %p148 = scmp.eq.s32.totalorder %s21, 1
      %p149 = por %p147, %p148
      %p150 = scmp.ne.s32.totalorder %s141, %s142
      %p151 = scmp.eq.s32.totalorder %s21, 0
      %p152 = por %p150, %p151
      %p153 = scmp.ne.s32.totalorder %s141, %s142
      %p154 = scmp.eq.s32.totalorder %s22, 1
      %p155 = por %p153, %p154
      %p157 = scmp.ne.s32.totalorder %s142, %s156
      %p158 = scmp.eq.s32.totalorder %s22, 0
      %p159 = por %p157, %p158
      %s161 = sadd.s32 %s160, 1
      %p164 = scmp.eq.s32.totalorder %s16, 1
      %p165 = scmp.ne.s32.totalorder %s160, %s162
      %p166 = scmp.eq.s32.totalorder %s16, 0
      %p167 = por %p165, %p166
      %p168 = scmp.ne.s32.totalorder %s160, %s162
      %p169 = scmp.eq.s32.totalorder %s21, 1
      %p170 = por %p168, %p169
      %p171 = scmp.ne.s32.totalorder %s162, %s163
      %p172 = scmp.eq.s32.totalorder %s21, 0
      %p173 = por %p171, %p172
      %p174 = scmp.ne.s32.totalorder %s162, %s163
      %p175 = scmp.eq.s32.totalorder %s22, 1
      %p176 = por %p174, %p175
      %p178 = scmp.ne.s32.totalorder %s163, %s177
      %p179 = scmp.eq.s32.totalorder %s22, 0
      %p180 = por %p178, %p179
      %s181 = ssub.s32 %s16, %s23
      %p182 = scmp.eq.s32.totalorder %s181, 0
      %s184 = sadd.s32 %s183, 1
      %s185 = scalar_select %p182, %s183, %s184
      %p188 = pneg %p182
      %p189 = scmp.eq.s32.totalorder %s16, 1
      %p190 = por %p188, %p189
      %p191 = scmp.ne.s32.totalorder %s183, %s186
      %p192 = scmp.eq.s32.totalorder %s16, 0
      %p193 = por %p191, %p192
      %p194 = scmp.ne.s32.totalorder %s183, %s186
      %p195 = scmp.eq.s32.totalorder %s21, 1
      %p196 = por %p194, %p195
      %p197 = scmp.ne.s32.totalorder %s186, %s187
      %p198 = scmp.eq.s32.totalorder %s21, 0
      %p199 = por %p197, %p198
      %p200 = scmp.ne.s32.totalorder %s186, %s187
      %p201 = scmp.eq.s32.totalorder %s22, 1
      %p202 = por %p200, %p201
      %p204 = scmp.ne.s32.totalorder %s187, %s203
      %p205 = scmp.eq.s32.totalorder %s22, 0
      %p206 = por %p204, %p205
      %p207 = scmp.le.s32.totalorder 1, %s16
      %p208 = scmp.lt.s32.totalorder %s16, 3
      %p209 = pnand %p207, %p208
      %p210 = pneg %p209
      // Predicated region
      $region9: #{nfc_forward.1} parent=5 // pred_check
        _
      $region10: #{nfc_forward.1} parent=5 // pred_check_branch
        %212 = sbr.rel (%p209) target = $region12
      $region11: #{nfc_forward.1} parent=5 // pred_region
        %s213 = ssub.s32 %s16, 1
        // Predicated region
        $region13: #{nfc_forward.1} parent=11 // pred_check
          %p214 = pneg %p89
        $region14: #{nfc_forward.1} parent=11 // pred_check_branch
          %216 = sbr.rel (%p214) target = $region16
        $region15: #{nfc_forward.1} parent=11 // pred_region
          _
        $region16: #{nfc_forward.1} parent=11 // pred_fallthru
          _
        // Predicated region
        $region17: #{nfc_forward.1} parent=11 // pred_check
          %p217 = pneg %p110
        $region18: #{nfc_forward.1} parent=11 // pred_check_branch
          %219 = sbr.rel (%p217) target = $region20
        $region19: #{nfc_forward.1} parent=11 // pred_region
          _
        $region20: #{nfc_forward.1} parent=11 // pred_fallthru
          _
        // Predicated region
        $region21: #{nfc_forward.1} parent=11 // pred_check
          %p220 = pneg %p131
        $region22: #{nfc_forward.1} parent=11 // pred_check_branch
          %222 = sbr.rel (%p220) target = $region24
        $region23: #{nfc_forward.1} parent=11 // pred_region
          _
        $region24: #{nfc_forward.1} parent=11 // pred_fallthru
          _
        // Predicated region
        $region25: #{nfc_forward.1} parent=11 // pred_check
          %p223 = pneg %p152
        $region26: #{nfc_forward.1} parent=11 // pred_check_branch
          %225 = sbr.rel (%p223) target = $region28
        $region27: #{nfc_forward.1} parent=11 // pred_region
          _
        $region28: #{nfc_forward.1} parent=11 // pred_fallthru
          _
        // Predicated region
        $region29: #{nfc_forward.1} parent=11 // pred_check
          %p226 = pneg %p173
        $region30: #{nfc_forward.1} parent=11 // pred_check_branch
          %228 = sbr.rel (%p226) target = $region32
        $region31: #{nfc_forward.1} parent=11 // pred_region
          _
        $region32: #{nfc_forward.1} parent=11 // pred_fallthru
          _
      $region12: #{nfc_forward.1} parent=5 // pred_fallthru
        _
      %p229 = scmp.lt.s32.totalorder %s16, 2
      // Predicated region
      $region33: #{nfc_forward.1} parent=5 // pred_check
        %p230 = pneg %p229
      $region34: #{nfc_forward.1} parent=5 // pred_check_branch
        %232 = sbr.rel (%p230) target = $region36
      $region35: #{nfc_forward.1} parent=5 // pred_region
        // Predicated region
        $region37: #{nfc_forward.1} parent=35 // pred_check
          %p233 = pneg %p36
        $region38: #{nfc_forward.1} parent=35 // pred_check_branch
          %235 = sbr.rel (%p233) target = $region40
        $region39: #{nfc_forward.1} parent=35 // pred_region
          %s236 = smul.u32 4, %s16
          %p237 = scmp.lt.s32.totalorder %s236, 7
          %s238 = scalar_select %p237, %s236, 7
          %s239 = scalar_lea.vmem %s0, %s238
          %s240 = smul.u32 4, %s16
        $region40: #{nfc_forward.1} parent=35 // pred_fallthru
          _
        // Predicated region
        $region41: #{nfc_forward.1} parent=35 // pred_check
          %p241 = pneg %p62
        $region42: #{nfc_forward.1} parent=35 // pred_check_branch
          %243 = sbr.rel (%p241) target = $region44
        $region43: #{nfc_forward.1} parent=35 // pred_region
          %s244 = smul.u32 4, %s16
          %p245 = scmp.lt.s32.totalorder %s244, 7
          %s246 = scalar_select %p245, %s244, 7
          %s247 = scalar_lea.vmem %s1, %s246
          %s248 = smul.u32 4, %s16
        $region44: #{nfc_forward.1} parent=35 // pred_fallthru
          _
      $region36: #{nfc_forward.1} parent=5 // pred_fallthru
        _
      %p249 = scmp.le.s32.totalorder 1, %s16
      %p250 = scmp.lt.s32.totalorder %s16, 3
      %p251 = pnand %p249, %p250
      %p252 = pneg %p251
      // Predicated region
      $region45: #{nfc_forward.1} parent=5 // pred_check
        _
      $region46: #{nfc_forward.1} parent=5 // pred_check_branch
        %254 = sbr.rel (%p251) target = $region48
      $region47: #{nfc_forward.1} parent=5 // pred_region
        %s255 = ssub.s32 %s16, 1
        %s256 = smul.u32 4, %s21
        %p257 = scmp.lt.s32.totalorder %s256, 7
        %s258 = scalar_select %p257, %s256, 7
        %s259 = scalar_lea.vmem %s0, %s258
        %p260 = pneg %p42
        %p261 = pneg %p39
        %s262 = smul.u32 4, %s21
        %p263 = scmp.lt.s32.totalorder %s262, 7
        %s264 = scalar_select %p263, %s262, 7
        %s265 = scalar_lea.vmem %s1, %s264
        %p266 = pneg %p68
        %p267 = pneg %p65
        %p268 = pneg %p89
        %p269 = pneg %p86
        %p270 = pneg %p110
        %p271 = pneg %p107
        %p272 = pneg %p131
        %p273 = pneg %p128
        %p274 = pneg %p152
        %p275 = pneg %p149
        %p276 = pneg %p173
        %p277 = pneg %p170
        %p278 = pneg %p199
        %p279 = pneg %p196
        %s280 = sand.u32 %s186, 1
        %s281 = scalar_lea.sflag [#allocation3], %s280
        %s282 = sand.u32 %s186, 1
        %s283 = smul.addr %s282, 4
        %s284 = scalar_lea.vmem [#allocation2], %s283
        %s285 = smul.u32 4, %s21
        %p286 = scmp.lt.s32.totalorder %s285, 7
        %s287 = scalar_select %p286, %s285, 7
        %s288 = scalar_lea.vmem %s0, %s287
        %s289 = smul.u32 4, %s21
        %s290 = smul.u32 4, %s21
        %p291 = scmp.lt.s32.totalorder %s290, 7
        %s292 = scalar_select %p291, %s290, 7
        %s293 = scalar_lea.vmem %s1, %s292
        %s294 = smul.u32 4, %s21
        %s295 = smul.u32 4, %s21
        %v296 = vld [vmem:[%s288] sm:$0xf]
        %v297 = vld [vmem:[%s293] sm:$0xf]
        %v298 = vlaneseq
        %v299 = vshrl.u32 %v298, 7
        %v300 = vadd.s32 %v299, 8
        %v301 = vadd.s32 %v299, 16
        %v302 = vadd.s32 %v299, 24
        %v303 = vlaneseq
        %v304 = vshrl.u32 %v303, 7
        %v305 = vsub.s32 0, %v304
        %v306 = vrot.slane %v296, %v305
        %v307 = vlaneseq
        %v308 = vshrl.u32 %v307, 7
        %v309 = vsub.s32 1, %v308
        %v310 = vrot.slane %v296, %v309
        %v311 = vlaneseq
        %v312 = vshrl.u32 %v311, 7
        %v313 = vsub.s32 2, %v312
        %v314 = vrot.slane %v296, %v313
        %v315 = vlaneseq
        %v316 = vshrl.u32 %v315, 7
        %v317 = vsub.s32 3, %v316
        %v318 = vrot.slane %v296, %v317
        %vm319 = vcmp.eq.s32.totalorder %v299, %v306
        %vm320 = vcmp.eq.s32.totalorder %v299, %v310
        %vm321 = vcmp.eq.s32.totalorder %v299, %v314
        %vm322 = vcmp.eq.s32.totalorder %v299, %v318
        %vm323 = vcmp.eq.s32.totalorder %v300, %v306
        %vm324 = vcmp.eq.s32.totalorder %v300, %v310
        %vm325 = vcmp.eq.s32.totalorder %v300, %v314
        %vm326 = vcmp.eq.s32.totalorder %v300, %v318
        %vm327 = vcmp.eq.s32.totalorder %v301, %v306
        %vm328 = vcmp.eq.s32.totalorder %v301, %v310
        %vm329 = vcmp.eq.s32.totalorder %v301, %v314
        %vm330 = vcmp.eq.s32.totalorder %v301, %v318
        %vm331 = vcmp.eq.s32.totalorder %v302, %v306
        %vm332 = vcmp.eq.s32.totalorder %v302, %v310
        %vm333 = vcmp.eq.s32.totalorder %v302, %v314
        %vm334 = vcmp.eq.s32.totalorder %v302, %v318
        %v335 = vsel %vm319, 1.0, 0.0
        %v336 = vsel %vm320, 1.0, 0.0
        %v337 = vsel %vm321, 1.0, 0.0
        %v338 = vsel %vm322, 1.0, 0.0
        %v339 = vsel %vm323, 1.0, 0.0
        %v340 = vsel %vm324, 1.0, 0.0
        %v341 = vsel %vm325, 1.0, 0.0
        %v342 = vsel %vm326, 1.0, 0.0
        %v343 = vsel %vm327, 1.0, 0.0
        %v344 = vsel %vm328, 1.0, 0.0
        %v345 = vsel %vm329, 1.0, 0.0
        %v346 = vsel %vm330, 1.0, 0.0
        %v347 = vsel %vm331, 1.0, 0.0
        %v348 = vsel %vm332, 1.0, 0.0
        %v349 = vsel %vm333, 1.0, 0.0
        %v350 = vsel %vm334, 1.0, 0.0
        %v351 = vadd.s32 %v299, 32
        %v352 = vadd.s32 %v299, 40
        %v353 = vlaneseq
        %v354 = vshrl.u32 %v353, 7
        %v355 = vsub.s32 0, %v354
        %v356 = vrot.slane %v297, %v355
        %v357 = vlaneseq
        %v358 = vshrl.u32 %v357, 7
        %v359 = vsub.s32 1, %v358
        %v360 = vrot.slane %v297, %v359
        %v361 = vlaneseq
        %v362 = vshrl.u32 %v361, 7
        %v363 = vsub.s32 2, %v362
        %v364 = vrot.slane %v297, %v363
        %v365 = vlaneseq
        %v366 = vshrl.u32 %v365, 7
        %v367 = vsub.s32 3, %v366
        %v368 = vrot.slane %v297, %v367
        %vm369 = vcmp.eq.s32.totalorder %v299, %v356
        %vm370 = vcmp.eq.s32.totalorder %v299, %v360
        %vm371 = vcmp.eq.s32.totalorder %v299, %v364
        %vm372 = vcmp.eq.s32.totalorder %v299, %v368
        %vm373 = vcmp.eq.s32.totalorder %v300, %v356
        %vm374 = vcmp.eq.s32.totalorder %v300, %v360
        %vm375 = vcmp.eq.s32.totalorder %v300, %v364
        %vm376 = vcmp.eq.s32.totalorder %v300, %v368
        %vm377 = vcmp.eq.s32.totalorder %v301, %v356
        %vm378 = vcmp.eq.s32.totalorder %v301, %v360
        %vm379 = vcmp.eq.s32.totalorder %v301, %v364
        %vm380 = vcmp.eq.s32.totalorder %v301, %v368
        %vm381 = vcmp.eq.s32.totalorder %v302, %v356
        %vm382 = vcmp.eq.s32.totalorder %v302, %v360
        %vm383 = vcmp.eq.s32.totalorder %v302, %v364
        %vm384 = vcmp.eq.s32.totalorder %v302, %v368
        %vm385 = vcmp.eq.s32.totalorder %v351, %v356
        %vm386 = vcmp.eq.s32.totalorder %v351, %v360
        %vm387 = vcmp.eq.s32.totalorder %v351, %v364
        %vm388 = vcmp.eq.s32.totalorder %v351, %v368
        %vm389 = vcmp.eq.s32.totalorder %v352, %v356
        %vm390 = vcmp.eq.s32.totalorder %v352, %v360
        %vm391 = vcmp.eq.s32.totalorder %v352, %v364
        %vm392 = vcmp.eq.s32.totalorder %v352, %v368
        %v393 = vsel %vm369, 1.0, 0.0
        %v394 = vsel %vm370, 1.0, 0.0
        %v395 = vsel %vm371, 1.0, 0.0
        %v396 = vsel %vm372, 1.0, 0.0
        %v397 = vsel %vm373, 1.0, 0.0
        %v398 = vsel %vm374, 1.0, 0.0
        %v399 = vsel %vm375, 1.0, 0.0
        %v400 = vsel %vm376, 1.0, 0.0
        %v401 = vsel %vm377, 1.0, 0.0
        %v402 = vsel %vm378, 1.0, 0.0
        %v403 = vsel %vm379, 1.0, 0.0
        %v404 = vsel %vm380, 1.0, 0.0
        %v405 = vsel %vm381, 1.0, 0.0
        %v406 = vsel %vm382, 1.0, 0.0
        %v407 = vsel %vm383, 1.0, 0.0
        %v408 = vsel %vm384, 1.0, 0.0
        %v409 = vsel %vm385, 1.0, 0.0
        %v410 = vsel %vm386, 1.0, 0.0
        %v411 = vsel %vm387, 1.0, 0.0
        %v412 = vsel %vm388, 1.0, 0.0
        %v413 = vsel %vm389, 1.0, 0.0
        %v414 = vsel %vm390, 1.0, 0.0
        %v415 = vsel %vm391, 1.0, 0.0
        %v416 = vsel %vm392, 1.0, 0.0
        %v417 = vld [vmem:[%s2] sm:$0xff]
        %v418 = vld [vmem:[%s2 + $0x8] sm:$0xff]
        %vm419 = vcmask 261120
        %v421 = vsel %vm419, %v417, 0
        %v424 = vsel %vm419, %v418, 0
        %426 = vmatprep.subr.mxu0 %v336
        %427 = vmatpush1.msra.mxu0 %v335
        %428 = vmatprep.subr.mxu0 %v340
        %429 = vmatpush1.msra.mxu0 %v339
        %430 = vmatprep.subr.mxu0 %v344
        %431 = vmatpush1.msra.mxu0 %v343
        %432 = vmatprep.subr.mxu0 %v348
        %433 = vmatpush1.msra.mxu0 %v347
        %434 = vmatprep.subr.mxu0 0.0
        %435 = vmatpush1.msra.mxu0 0.0
        %436 = vmatprep.subr.mxu0 0.0
        %437 = vmatpush1.msra.mxu0 0.0
        %438 = vmatprep.subr.mxu0 0.0
        %439 = vmatpush1.msra.mxu0 0.0
        %440 = vmatprep.subr.mxu0 0.0
        %441 = vmatpush1.msra.mxu0 0.0
        %442 = vmatprep.subr.mxu0 0.0
        %443 = vmatpush1.msra.mxu0 0.0
        %444 = vmatprep.subr.mxu0 0.0
        %445 = vmatpush1.msra.mxu0 0.0
        %446 = vmatprep.subr.mxu0 0.0
        %447 = vmatpush1.msra.mxu0 0.0
        %448 = vmatprep.subr.mxu0 0.0
        %449 = vmatpush1.msra.mxu0 0.0
        %450 = vmatprep.subr.mxu0 0.0
        %451 = vmatpush1.msra.mxu0 0.0
        %452 = vmatprep.subr.mxu0 0.0
        %453 = vmatpush1.msra.mxu0 0.0
        %454 = vmatprep.subr.mxu0 0.0
        %455 = vmatpush1.msra.mxu0 0.0
        %456 = vmatprep.subr.mxu0 0.0
        %457 = vmatpush1.msra.mxu0 0.0
        %458 = vmatprep.subr.mxu0 0.0
        %459 = vmatpush1.msra.mxu0 0.0
        %460 = vmatprep.subr.mxu0 0.0
        %461 = vmatpush1.msra.mxu0 0.0
        %462 = vmatprep.subr.mxu0 0.0
        %463 = vmatpush1.msra.mxu0 0.0
        %464 = vmatprep.subr.mxu0 0.0
        %465 = vmatpush1.msra.mxu0 0.0
        %466 = vmatprep.subr.mxu0 0.0
        %467 = vmatpush1.msra.mxu0 0.0
        %468 = vmatprep.subr.mxu0 0.0
        %469 = vmatpush1.msra.mxu0 0.0
        %470 = vmatprep.subr.mxu0 0.0
        %471 = vmatpush1.msra.mxu0 0.0
        %472 = vmatprep.subr.mxu0 0.0
        %473 = vmatpush1.msra.mxu0 0.0
        %474 = vmatprep.subr.mxu0 0.0
        %475 = vmatpush1.msra.mxu0 0.0
        %476 = vmatprep.subr.mxu0 0.0
        %477 = vmatpush1.msra.mxu0 0.0
        %478 = vmatprep.subr.mxu0 0.0
        %479 = vmatpush1.msra.mxu0 0.0
        %480 = vmatprep.subr.mxu0 0.0
        %481 = vmatpush1.msra.mxu0 0.0
        %482 = vmatprep.subr.mxu0 0.0
        %483 = vmatpush1.msra.mxu0 0.0
        %484 = vmatprep.subr.mxu0 0.0
        %485 = vmatpush1.msra.mxu0 0.0
        %486 = vmatprep.subr.mxu0 0.0
        %487 = vmatpush1.msra.mxu0 0.0
        %488 = vmatprep.subr.mxu0 0.0
        %489 = vmatpush1.msra.mxu0 0.0
        %490 = vmatprep.mubr.f32.mxu0 0.0
        %v491 = vand.u32 %v421, 4294901760
        %v492 = vsub.f32 %v421, %v491
        %v493 = vand.u32 %v492, 4294901760
        %v494 = vsub.f32 %v492, %v493
        %v495 = vand.u32 %v494, 4294901760
        %496 = vmatmul.mubr.f32.gmra.mrb[0].mxu0 %v495
        %v497 = vpop.f32.mrb[0].mxu0
        %v498 = vadd.f32 0.0, %v497
        %v499 = vpop.f32.mrb[0].mxu0
        %v500 = vadd.f32 0.0, %v499
        %501 = vmatprep.mubr.f32.mxu0 0.0
        %v502 = vand.u32 %v424, 4294901760
        %v503 = vsub.f32 %v424, %v502
        %v504 = vand.u32 %v503, 4294901760
        %v505 = vsub.f32 %v503, %v504
        %v506 = vand.u32 %v505, 4294901760
        %507 = vmatmul.mubr.f32.gmra.mrb[0].mxu0 %v506
        %v508 = vpop.f32.mrb[0].mxu0
        %v509 = vadd.f32 0.0, %v508
        %v510 = vpop.f32.mrb[0].mxu0
        %v511 = vadd.f32 0.0, %v510
        %512 = vdwg.mxu0
        %v513 = vsub.f32 %v336, %v336
        %v514 = vand.u32 %v513, 4294901760
        %v515 = vsub.f32 %v513, %v514
        %v516 = vand.u32 %v515, 4294901760
        %517 = vmatprep.subr.mxu0 %v516
        %v518 = vsub.f32 %v335, %v335
        %v519 = vand.u32 %v518, 4294901760
        %v520 = vsub.f32 %v518, %v519
        %v521 = vand.u32 %v520, 4294901760
        %522 = vmatpush1.msra.mxu0 %v521
        %v523 = vsub.f32 %v340, %v340
        %v524 = vand.u32 %v523, 4294901760
        %v525 = vsub.f32 %v523, %v524
        %v526 = vand.u32 %v525, 4294901760
        %527 = vmatprep.subr.mxu0 %v526
        %v528 = vsub.f32 %v339, %v339
        %v529 = vand.u32 %v528, 4294901760
        %v530 = vsub.f32 %v528, %v529
        %v531 = vand.u32 %v530, 4294901760
        %532 = vmatpush1.msra.mxu0 %v531
        %v533 = vsub.f32 %v344, %v344
        %v534 = vand.u32 %v533, 4294901760
        %v535 = vsub.f32 %v533, %v534
        %v536 = vand.u32 %v535, 4294901760
        %537 = vmatprep.subr.mxu0 %v536
        %v538 = vsub.f32 %v343, %v343
        %v539 = vand.u32 %v538, 4294901760
        %v540 = vsub.f32 %v538, %v539
        %v541 = vand.u32 %v540, 4294901760
        %542 = vmatpush1.msra.mxu0 %v541
        %v543 = vsub.f32 %v348, %v348
        %v544 = vand.u32 %v543, 4294901760
        %v545 = vsub.f32 %v543, %v544
        %v546 = vand.u32 %v545, 4294901760
        %547 = vmatprep.subr.mxu0 %v546
        %v548 = vsub.f32 %v347, %v347
        %v549 = vand.u32 %v548, 4294901760
        %v550 = vsub.f32 %v548, %v549
        %v551 = vand.u32 %v550, 4294901760
        %552 = vmatpush1.msra.mxu0 %v551
        %553 = vmatprep.subr.mxu0 0.0
        %554 = vmatpush1.msra.mxu0 0.0
        %555 = vmatprep.subr.mxu0 0.0
        %556 = vmatpush1.msra.mxu0 0.0
        %557 = vmatprep.subr.mxu0 0.0
        %558 = vmatpush1.msra.mxu0 0.0
        %559 = vmatprep.subr.mxu0 0.0
        %560 = vmatpush1.msra.mxu0 0.0
        %561 = vmatprep.subr.mxu0 0.0
        %562 = vmatpush1.msra.mxu0 0.0
        %563 = vmatprep.subr.mxu0 0.0
        %564 = vmatpush1.msra.mxu0 0.0
        %565 = vmatprep.subr.mxu0 0.0
        %566 = vmatpush1.msra.mxu0 0.0
        %567 = vmatprep.subr.mxu0 0.0
        %568 = vmatpush1.msra.mxu0 0.0
        %569 = vmatprep.subr.mxu0 0.0
        %570 = vmatpush1.msra.mxu0 0.0
        %571 = vmatprep.subr.mxu0 0.0
        %572 = vmatpush1.msra.mxu0 0.0
        %573 = vmatprep.subr.mxu0 0.0
        %574 = vmatpush1.msra.mxu0 0.0
        %575 = vmatprep.subr.mxu0 0.0
        %576 = vmatpush1.msra.mxu0 0.0
        %577 = vmatprep.subr.mxu0 0.0
        %578 = vmatpush1.msra.mxu0 0.0
        %579 = vmatprep.subr.mxu0 0.0
        %580 = vmatpush1.msra.mxu0 0.0
        %581 = vmatprep.subr.mxu0 0.0
        %582 = vmatpush1.msra.mxu0 0.0
        %583 = vmatprep.subr.mxu0 0.0
        %584 = vmatpush1.msra.mxu0 0.0
        %585 = vmatprep.subr.mxu0 0.0
        %586 = vmatpush1.msra.mxu0 0.0
        %587 = vmatprep.subr.mxu0 0.0
        %588 = vmatpush1.msra.mxu0 0.0
        %589 = vmatprep.subr.mxu0 0.0
        %590 = vmatpush1.msra.mxu0 0.0
        %591 = vmatprep.subr.mxu0 0.0
        %592 = vmatpush1.msra.mxu0 0.0
        %593 = vmatprep.subr.mxu0 0.0
        %594 = vmatpush1.msra.mxu0 0.0
        %595 = vmatprep.subr.mxu0 0.0
        %596 = vmatpush1.msra.mxu0 0.0
        %597 = vmatprep.subr.mxu0 0.0
        %598 = vmatpush1.msra.mxu0 0.0
        %599 = vmatprep.subr.mxu0 0.0
        %600 = vmatpush1.msra.mxu0 0.0
        %601 = vmatprep.subr.mxu0 0.0
        %602 = vmatpush1.msra.mxu0 0.0
        %603 = vmatprep.subr.mxu0 0.0
        %604 = vmatpush1.msra.mxu0 0.0
        %605 = vmatprep.subr.mxu0 0.0
        %606 = vmatpush1.msra.mxu0 0.0
        %607 = vmatprep.subr.mxu0 0.0
        %608 = vmatpush1.msra.mxu0 0.0
        %609 = vmatprep.mubr.f32.mxu0 0.0
        %v610 = vand.u32 %v421, 4294901760
        %611 = vmatmul.mubr.f32.gmra.mrb[0].mxu0 %v610
        %v612 = vpop.f32.mrb[0].mxu0
        %v613 = vadd.f32 %v498, %v612
        %v614 = vpop.f32.mrb[0].mxu0
        %v615 = vadd.f32 %v500, %v614
        %616 = vmatprep.mubr.f32.mxu0 0.0
        %v617 = vand.u32 %v424, 4294901760
        %618 = vmatmul.mubr.f32.gmra.mrb[0].mxu0 %v617
        %v619 = vpop.f32.mrb[0].mxu0
        %v620 = vadd.f32 %v509, %v619
        %v621 = vpop.f32.mrb[0].mxu0
        %v622 = vadd.f32 %v511, %v621
        %623 = vdwg.mxu0
        %v624 = vsub.f32 %v336, %v336
        %625 = vmatprep.subr.mxu0 %v624
        %v626 = vsub.f32 %v335, %v335
        %627 = vmatpush1.msra.mxu0 %v626
        %v628 = vsub.f32 %v340, %v340
        %629 = vmatprep.subr.mxu0 %v628
        %v630 = vsub.f32 %v339, %v339
        %631 = vmatpush1.msra.mxu0 %v630
        %v632 = vsub.f32 %v344, %v344
        %633 = vmatprep.subr.mxu0 %v632
        %v634 = vsub.f32 %v343, %v343
        %635 = vmatpush1.msra.mxu0 %v634
        %v636 = vsub.f32 %v348, %v348
        %637 = vmatprep.subr.mxu0 %v636
        %v638 = vsub.f32 %v347, %v347
        %639 = vmatpush1.msra.mxu0 %v638
        %640 = vmatprep.subr.mxu0 0.0
        %641 = vmatpush1.msra.mxu0 0.0
        %642 = vmatprep.subr.mxu0 0.0
        %643 = vmatpush1.msra.mxu0 0.0
        %644 = vmatprep.subr.mxu0 0.0
        %645 = vmatpush1.msra.mxu0 0.0
        %646 = vmatprep.subr.mxu0 0.0
        %647 = vmatpush1.msra.mxu0 0.0
        %648 = vmatprep.subr.mxu0 0.0
        %649 = vmatpush1.msra.mxu0 0.0
        %650 = vmatprep.subr.mxu0 0.0
        %651 = vmatpush1.msra.mxu0 0.0
        %652 = vmatprep.subr.mxu0 0.0
        %653 = vmatpush1.msra.mxu0 0.0
        %654 = vmatprep.subr.mxu0 0.0
        %655 = vmatpush1.msra.mxu0 0.0
        %656 = vmatprep.subr.mxu0 0.0
        %657 = vmatpush1.msra.mxu0 0.0
        %658 = vmatprep.subr.mxu0 0.0
        %659 = vmatpush1.msra.mxu0 0.0
        %660 = vmatprep.subr.mxu0 0.0
        %661 = vmatpush1.msra.mxu0 0.0
        %662 = vmatprep.subr.mxu0 0.0
        %663 = vmatpush1.msra.mxu0 0.0
        %664 = vmatprep.subr.mxu0 0.0
        %665 = vmatpush1.msra.mxu0 0.0
        %666 = vmatprep.subr.mxu0 0.0
        %667 = vmatpush1.msra.mxu0 0.0
        %668 = vmatprep.subr.mxu0 0.0
        %669 = vmatpush1.msra.mxu0 0.0
        %670 = vmatprep.subr.mxu0 0.0
        %671 = vmatpush1.msra.mxu0 0.0
        %672 = vmatprep.subr.mxu0 0.0
        %673 = vmatpush1.msra.mxu0 0.0
        %674 = vmatprep.subr.mxu0 0.0
        %675 = vmatpush1.msra.mxu0 0.0
        %676 = vmatprep.subr.mxu0 0.0
        %677 = vmatpush1.msra.mxu0 0.0
        %678 = vmatprep.subr.mxu0 0.0
        %679 = vmatpush1.msra.mxu0 0.0
        %680 = vmatprep.subr.mxu0 0.0
        %681 = vmatpush1.msra.mxu0 0.0
        %682 = vmatprep.subr.mxu0 0.0
        %683 = vmatpush1.msra.mxu0 0.0
        %684 = vmatprep.subr.mxu0 0.0
        %685 = vmatpush1.msra.mxu0 0.0
        %686 = vmatprep.subr.mxu0 0.0
        %687 = vmatpush1.msra.mxu0 0.0
        %688 = vmatprep.subr.mxu0 0.0
        %689 = vmatpush1.msra.mxu0 0.0
        %690 = vmatprep.subr.mxu0 0.0
        %691 = vmatpush1.msra.mxu0 0.0
        %692 = vmatprep.subr.mxu0 0.0
        %693 = vmatpush1.msra.mxu0 0.0
        %694 = vmatprep.subr.mxu0 0.0
        %695 = vmatpush1.msra.mxu0 0.0
        %696 = vmatprep.mubr.f32.mxu0 0.0
        %v697 = vand.u32 %v421, 4294901760
        %v698 = vsub.f32 %v421, %v697
        %699 = vmatmul.mubr.f32.gmra.mrb[0].mxu0 %v698
        %v700 = vpop.f32.mrb[0].mxu0
        %v701 = vadd.f32 %v613, %v700
        %v702 = vpop.f32.mrb[0].mxu0
        %v703 = vadd.f32 %v615, %v702
        %704 = vmatprep.mubr.f32.mxu0 0.0
        %v705 = vand.u32 %v424, 4294901760
        %v706 = vsub.f32 %v424, %v705
        %707 = vmatmul.mubr.f32.gmra.mrb[0].mxu0 %v706
        %v708 = vpop.f32.mrb[0].mxu0
        %v709 = vadd.f32 %v620, %v708
        %v710 = vpop.f32.mrb[0].mxu0
        %v711 = vadd.f32 %v622, %v710
        %712 = vdwg.mxu0
        %713 = vmatprep.subr.mxu0 %v336
        %714 = vmatpush1.msra.mxu0 %v335
        %715 = vmatprep.subr.mxu0 %v340
        %716 = vmatpush1.msra.mxu0 %v339
        %717 = vmatprep.subr.mxu0 %v344
        %718 = vmatpush1.msra.mxu0 %v343
        %719 = vmatprep.subr.mxu0 %v348
        %720 = vmatpush1.msra.mxu0 %v347
        %721 = vmatprep.subr.mxu0 0.0
        %722 = vmatpush1.msra.mxu0 0.0
        %723 = vmatprep.subr.mxu0 0.0
        %724 = vmatpush1.msra.mxu0 0.0
        %725 = vmatprep.subr.mxu0 0.0
        %726 = vmatpush1.msra.mxu0 0.0
        %727 = vmatprep.subr.mxu0 0.0
        %728 = vmatpush1.msra.mxu0 0.0
        %729 = vmatprep.subr.mxu0 0.0
        %730 = vmatpush1.msra.mxu0 0.0
        %731 = vmatprep.subr.mxu0 0.0
        %732 = vmatpush1.msra.mxu0 0.0
        %733 = vmatprep.subr.mxu0 0.0
        %734 = vmatpush1.msra.mxu0 0.0
        %735 = vmatprep.subr.mxu0 0.0
        %736 = vmatpush1.msra.mxu0 0.0
        %737 = vmatprep.subr.mxu0 0.0
        %738 = vmatpush1.msra.mxu0 0.0
        %739 = vmatprep.subr.mxu0 0.0
        %740 = vmatpush1.msra.mxu0 0.0
        %741 = vmatprep.subr.mxu0 0.0
        %742 = vmatpush1.msra.mxu0 0.0
        %743 = vmatprep.subr.mxu0 0.0
        %744 = vmatpush1.msra.mxu0 0.0
        %745 = vmatprep.subr.mxu0 0.0
        %746 = vmatpush1.msra.mxu0 0.0
        %747 = vmatprep.subr.mxu0 0.0
        %748 = vmatpush1.msra.mxu0 0.0
        %749 = vmatprep.subr.mxu0 0.0
        %750 = vmatpush1.msra.mxu0 0.0
        %751 = vmatprep.subr.mxu0 0.0
        %752 = vmatpush1.msra.mxu0 0.0
        %753 = vmatprep.subr.mxu0 0.0
        %754 = vmatpush1.msra.mxu0 0.0
        %755 = vmatprep.subr.mxu0 0.0
        %756 = vmatpush1.msra.mxu0 0.0
        %757 = vmatprep.subr.mxu0 0.0
        %758 = vmatpush1.msra.mxu0 0.0
        %759 = vmatprep.subr.mxu0 0.0
        %760 = vmatpush1.msra.mxu0 0.0
        %761 = vmatprep.subr.mxu0 0.0
        %762 = vmatpush1.msra.mxu0 0.0
        %763 = vmatprep.subr.mxu0 0.0
        %764 = vmatpush1.msra.mxu0 0.0
        %765 = vmatprep.subr.mxu0 0.0
        %766 = vmatpush1.msra.mxu0 0.0
        %767 = vmatprep.subr.mxu0 0.0
        %768 = vmatpush1.msra.mxu0 0.0
        %769 = vmatprep.subr.mxu0 0.0
        %770 = vmatpush1.msra.mxu0 0.0
        %771 = vmatprep.subr.mxu0 0.0
        %772 = vmatpush1.msra.mxu0 0.0
        %773 = vmatprep.subr.mxu0 0.0
        %774 = vmatpush1.msra.mxu0 0.0
        %775 = vmatprep.subr.mxu0 0.0
        %776 = vmatpush1.msra.mxu0 0.0
        %777 = vmatprep.mubr.f32.mxu0 0.0
        %v778 = vand.u32 %v421, 4294901760
        %v779 = vsub.f32 %v421, %v778
        %v780 = vand.u32 %v779, 4294901760
        %781 = vmatmul.mubr.f32.gmra.mrb[0].mxu0 %v780
        %v782 = vpop.f32.mrb[0].mxu0
        %v783 = vadd.f32 %v701, %v782
        %v784 = vpop.f32.mrb[0].mxu0
        %v785 = vadd.f32 %v703, %v784
        %786 = vmatprep.mubr.f32.mxu0 0.0
        %v787 = vand.u32 %v424, 4294901760
        %v788 = vsub.f32 %v424, %v787
        %v789 = vand.u32 %v788, 4294901760
        %790 = vmatmul.mubr.f32.gmra.mrb[0].mxu0 %v789
        %v791 = vpop.f32.mrb[0].mxu0
        %v792 = vadd.f32 %v709, %v791
        %v793 = vpop.f32.mrb[0].mxu0
        %v794 = vadd.f32 %v711, %v793
        %795 = vdwg.mxu0
        %v796 = vsub.f32 %v336, %v336
        %v797 = vand.u32 %v796, 4294901760
        %798 = vmatprep.subr.mxu0 %v797
        %v799 = vsub.f32 %v335, %v335
        %v800 = vand.u32 %v799, 4294901760
        %801 = vmatpush1.msra.mxu0 %v800
        %v802 = vsub.f32 %v340, %v340
        %v803 = vand.u32 %v802, 4294901760
        %804 = vmatprep.subr.mxu0 %v803
        %v805 = vsub.f32 %v339, %v339
        %v806 = vand.u32 %v805, 4294901760
        %807 = vmatpush1.msra.mxu0 %v806
        %v808 = vsub.f32 %v344, %v344
        %v809 = vand.u32 %v808, 4294901760
        %810 = vmatprep.subr.mxu0 %v809
        %v811 = vsub.f32 %v343, %v343
        %v812 = vand.u32 %v811, 4294901760
        %813 = vmatpush1.msra.mxu0 %v812
        %v814 = vsub.f32 %v348, %v348
        %v815 = vand.u32 %v814, 4294901760
        %816 = vmatprep.subr.mxu0 %v815
        %v817 = vsub.f32 %v347, %v347
        %v818 = vand.u32 %v817, 4294901760
        %819 = vmatpush1.msra.mxu0 %v818
        %820 = vmatprep.subr.mxu0 0.0
        %821 = vmatpush1.msra.mxu0 0.0
        %822 = vmatprep.subr.mxu0 0.0
        %823 = vmatpush1.msra.mxu0 0.0
        %824 = vmatprep.subr.mxu0 0.0
        %825 = vmatpush1.msra.mxu0 0.0
        %826 = vmatprep.subr.mxu0 0.0
        %827 = vmatpush1.msra.mxu0 0.0
        %828 = vmatprep.subr.mxu0 0.0
        %829 = vmatpush1.msra.mxu0 0.0
        %830 = vmatprep.subr.mxu0 0.0
        %831 = vmatpush1.msra.mxu0 0.0
        %832 = vmatprep.subr.mxu0 0.0
        %833 = vmatpush1.msra.mxu0 0.0
        %834 = vmatprep.subr.mxu0 0.0
        %835 = vmatpush1.msra.mxu0 0.0
        %836 = vmatprep.subr.mxu0 0.0
        %837 = vmatpush1.msra.mxu0 0.0
        %838 = vmatprep.subr.mxu0 0.0
        %839 = vmatpush1.msra.mxu0 0.0
        %840 = vmatprep.subr.mxu0 0.0
        %841 = vmatpush1.msra.mxu0 0.0
        %842 = vmatprep.subr.mxu0 0.0
        %843 = vmatpush1.msra.mxu0 0.0
        %844 = vmatprep.subr.mxu0 0.0
        %845 = vmatpush1.msra.mxu0 0.0
        %846 = vmatprep.subr.mxu0 0.0
        %847 = vmatpush1.msra.mxu0 0.0
        %848 = vmatprep.subr.mxu0 0.0
        %849 = vmatpush1.msra.mxu0 0.0
        %850 = vmatprep.subr.mxu0 0.0
        %851 = vmatpush1.msra.mxu0 0.0
        %852 = vmatprep.subr.mxu0 0.0
        %853 = vmatpush1.msra.mxu0 0.0
        %854 = vmatprep.subr.mxu0 0.0
        %855 = vmatpush1.msra.mxu0 0.0
        %856 = vmatprep.subr.mxu0 0.0
        %857 = vmatpush1.msra.mxu0 0.0
        %858 = vmatprep.subr.mxu0 0.0
        %859 = vmatpush1.msra.mxu0 0.0
        %860 = vmatprep.subr.mxu0 0.0
        %861 = vmatpush1.msra.mxu0 0.0
        %862 = vmatprep.subr.mxu0 0.0
        %863 = vmatpush1.msra.mxu0 0.0
        %864 = vmatprep.subr.mxu0 0.0
        %865 = vmatpush1.msra.mxu0 0.0
        %866 = vmatprep.subr.mxu0 0.0
        %867 = vmatpush1.msra.mxu0 0.0
        %868 = vmatprep.subr.mxu0 0.0
        %869 = vmatpush1.msra.mxu0 0.0
        %870 = vmatprep.subr.mxu0 0.0
        %871 = vmatpush1.msra.mxu0 0.0
        %872 = vmatprep.subr.mxu0 0.0
        %873 = vmatpush1.msra.mxu0 0.0
        %874 = vmatprep.subr.mxu0 0.0
        %875 = vmatpush1.msra.mxu0 0.0
        %876 = vmatprep.mubr.f32.mxu0 0.0
        %v877 = vand.u32 %v421, 4294901760
        %878 = vmatmul.mubr.f32.gmra.mrb[0].mxu0 %v877
        %v879 = vpop.f32.mrb[0].mxu0
        %v880 = vadd.f32 %v783, %v879
        %v881 = vpop.f32.mrb[0].mxu0
        %v882 = vadd.f32 %v785, %v881
        %883 = vmatprep.mubr.f32.mxu0 0.0
        %v884 = vand.u32 %v424, 4294901760
        %885 = vmatmul.mubr.f32.gmra.mrb[0].mxu0 %v884
        %v886 = vpop.f32.mrb[0].mxu0
        %v887 = vadd.f32 %v792, %v886
        %v888 = vpop.f32.mrb[0].mxu0
        %v889 = vadd.f32 %v794, %v888
        %890 = vdwg.mxu0
        %891 = vmatprep.subr.mxu0 %v336
        %892 = vmatpush1.msra.mxu0 %v335
        %893 = vmatprep.subr.mxu0 %v340
        %894 = vmatpush1.msra.mxu0 %v339
        %895 = vmatprep.subr.mxu0 %v344
        %896 = vmatpush1.msra.mxu0 %v343
        %897 = vmatprep.subr.mxu0 %v348
        %898 = vmatpush1.msra.mxu0 %v347
        %899 = vmatprep.subr.mxu0 0.0
        %900 = vmatpush1.msra.mxu0 0.0
        %901 = vmatprep.subr.mxu0 0.0
        %902 = vmatpush1.msra.mxu0 0.0
        %903 = vmatprep.subr.mxu0 0.0
        %904 = vmatpush1.msra.mxu0 0.0
        %905 = vmatprep.subr.mxu0 0.0
        %906 = vmatpush1.msra.mxu0 0.0
        %907 = vmatprep.subr.mxu0 0.0
        %908 = vmatpush1.msra.mxu0 0.0
        %909 = vmatprep.subr.mxu0 0.0
        %910 = vmatpush1.msra.mxu0 0.0
        %911 = vmatprep.subr.mxu0 0.0
        %912 = vmatpush1.msra.mxu0 0.0
        %913 = vmatprep.subr.mxu0 0.0
        %914 = vmatpush1.msra.mxu0 0.0
        %915 = vmatprep.subr.mxu0 0.0
        %916 = vmatpush1.msra.mxu0 0.0
        %917 = vmatprep.subr.mxu0 0.0
        %918 = vmatpush1.msra.mxu0 0.0
        %919 = vmatprep.subr.mxu0 0.0
        %920 = vmatpush1.msra.mxu0 0.0
        %921 = vmatprep.subr.mxu0 0.0
        %922 = vmatpush1.msra.mxu0 0.0
        %923 = vmatprep.subr.mxu0 0.0
        %924 = vmatpush1.msra.mxu0 0.0
        %925 = vmatprep.subr.mxu0 0.0
        %926 = vmatpush1.msra.mxu0 0.0
        %927 = vmatprep.subr.mxu0 0.0
        %928 = vmatpush1.msra.mxu0 0.0
        %929 = vmatprep.subr.mxu0 0.0
        %930 = vmatpush1.msra.mxu0 0.0
        %931 = vmatprep.subr.mxu0 0.0
        %932 = vmatpush1.msra.mxu0 0.0
        %933 = vmatprep.subr.mxu0 0.0
        %934 = vmatpush1.msra.mxu0 0.0
        %935 = vmatprep.subr.mxu0 0.0
        %936 = vmatpush1.msra.mxu0 0.0
        %937 = vmatprep.subr.mxu0 0.0
        %938 = vmatpush1.msra.mxu0 0.0
        %939 = vmatprep.subr.mxu0 0.0
        %940 = vmatpush1.msra.mxu0 0.0
        %941 = vmatprep.subr.mxu0 0.0
        %942 = vmatpush1.msra.mxu0 0.0
        %943 = vmatprep.subr.mxu0 0.0
        %944 = vmatpush1.msra.mxu0 0.0
        %945 = vmatprep.subr.mxu0 0.0
        %946 = vmatpush1.msra.mxu0 0.0
        %947 = vmatprep.subr.mxu0 0.0
        %948 = vmatpush1.msra.mxu0 0.0
        %949 = vmatprep.subr.mxu0 0.0
        %950 = vmatpush1.msra.mxu0 0.0
        %951 = vmatprep.subr.mxu0 0.0
        %952 = vmatpush1.msra.mxu0 0.0
        %953 = vmatprep.subr.mxu0 0.0
        %954 = vmatpush1.msra.mxu0 0.0
        %955 = vmatprep.mubr.f32.mxu0 0.0
        %v956 = vand.u32 %v421, 4294901760
        %957 = vmatmul.mubr.f32.gmra.mrb[0].mxu0 %v956
        %v958 = vpop.f32.mrb[0].mxu0
        %v959 = vadd.f32 %v880, %v958
        %v960 = vpop.f32.mrb[0].mxu0
        %v961 = vadd.f32 %v882, %v960
        %962 = vmatprep.mubr.f32.mxu0 0.0
        %v963 = vand.u32 %v424, 4294901760
        %964 = vmatmul.mubr.f32.gmra.mrb[0].mxu0 %v963
        %v965 = vpop.f32.mrb[0].mxu0
        %v966 = vadd.f32 %v887, %v965
        %v967 = vpop.f32.mrb[0].mxu0
        %v968 = vadd.f32 %v889, %v967
        %969 = vdwg.mxu0
        %970 = vmatprep.subr.mxu0 %v338
        %971 = vmatpush1.msra.mxu0 %v337
        %972 = vmatprep.subr.mxu0 %v342
        %973 = vmatpush1.msra.mxu0 %v341
        %974 = vmatprep.subr.mxu0 %v346
        %975 = vmatpush1.msra.mxu0 %v345
        %976 = vmatprep.subr.mxu0 %v350
        %977 = vmatpush1.msra.mxu0 %v349
        %978 = vmatprep.subr.mxu0 0.0
        %979 = vmatpush1.msra.mxu0 0.0
        %980 = vmatprep.subr.mxu0 0.0
        %981 = vmatpush1.msra.mxu0 0.0
        %982 = vmatprep.subr.mxu0 0.0
        %983 = vmatpush1.msra.mxu0 0.0
        %984 = vmatprep.subr.mxu0 0.0
        %985 = vmatpush1.msra.mxu0 0.0
        %986 = vmatprep.subr.mxu0 0.0
        %987 = vmatpush1.msra.mxu0 0.0
        %988 = vmatprep.subr.mxu0 0.0
        %989 = vmatpush1.msra.mxu0 0.0
        %990 = vmatprep.subr.mxu0 0.0
        %991 = vmatpush1.msra.mxu0 0.0
        %992 = vmatprep.subr.mxu0 0.0
        %993 = vmatpush1.msra.mxu0 0.0
        %994 = vmatprep.subr.mxu0 0.0
        %995 = vmatpush1.msra.mxu0 0.0
        %996 = vmatprep.subr.mxu0 0.0
        %997 = vmatpush1.msra.mxu0 0.0
        %998 = vmatprep.subr.mxu0 0.0
        %999 = vmatpush1.msra.mxu0 0.0
        %1000 = vmatprep.subr.mxu0 0.0
        %1001 = vmatpush1.msra.mxu0 0.0
        %1002 = vmatprep.subr.mxu0 0.0
        %1003 = vmatpush1.msra.mxu0 0.0
        %1004 = vmatprep.subr.mxu0 0.0
        %1005 = vmatpush1.msra.mxu0 0.0
        %1006 = vmatprep.subr.mxu0 0.0
        %1007 = vmatpush1.msra.mxu0 0.0
        %1008 = vmatprep.subr.mxu0 0.0
        %1009 = vmatpush1.msra.mxu0 0.0
        %1010 = vmatprep.subr.mxu0 0.0
        %1011 = vmatpush1.msra.mxu0 0.0
        %1012 = vmatprep.subr.mxu0 0.0
        %1013 = vmatpush1.msra.mxu0 0.0
        %1014 = vmatprep.subr.mxu0 0.0
        %1015 = vmatpush1.msra.mxu0 0.0
        %1016 = vmatprep.subr.mxu0 0.0
        %1017 = vmatpush1.msra.mxu0 0.0
        %1018 = vmatprep.subr.mxu0 0.0
        %1019 = vmatpush1.msra.mxu0 0.0
        %1020 = vmatprep.subr.mxu0 0.0
        %1021 = vmatpush1.msra.mxu0 0.0
        %1022 = vmatprep.subr.mxu0 0.0
        %1023 = vmatpush1.msra.mxu0 0.0
        %1024 = vmatprep.subr.mxu0 0.0
        %1025 = vmatpush1.msra.mxu0 0.0
        %1026 = vmatprep.subr.mxu0 0.0
        %1027 = vmatpush1.msra.mxu0 0.0
        %1028 = vmatprep.subr.mxu0 0.0
        %1029 = vmatpush1.msra.mxu0 0.0
        %1030 = vmatprep.subr.mxu0 0.0
        %1031 = vmatpush1.msra.mxu0 0.0
        %1032 = vmatprep.subr.mxu0 0.0
        %1033 = vmatpush1.msra.mxu0 0.0
        %1034 = vmatprep.mubr.f32.mxu0 0.0
        %v1035 = vand.u32 %v421, 4294901760
        %v1036 = vsub.f32 %v421, %v1035
        %v1037 = vand.u32 %v1036, 4294901760
        %v1038 = vsub.f32 %v1036, %v1037
        %v1039 = vand.u32 %v1038, 4294901760
        %1040 = vmatmul.mubr.f32.gmra.mrb[0].mxu0 %v1039
        %v1041 = vpop.f32.mrb[0].mxu0
        %v1042 = vadd.f32 0.0, %v1041
        %v1043 = vpop.f32.mrb[0].mxu0
        %v1044 = vadd.f32 0.0, %v1043
        %1045 = vmatprep.mubr.f32.mxu0 0.0
        %v1046 = vand.u32 %v424, 4294901760
        %v1047 = vsub.f32 %v424, %v1046
        %v1048 = vand.u32 %v1047, 4294901760
        %v1049 = vsub.f32 %v1047, %v1048
        %v1050 = vand.u32 %v1049, 4294901760
        %1051 = vmatmul.mubr.f32.gmra.mrb[0].mxu0 %v1050
        %v1052 = vpop.f32.mrb[0].mxu0
        %v1053 = vadd.f32 0.0, %v1052
        %v1054 = vpop.f32.mrb[0].mxu0
        %v1055 = vadd.f32 0.0, %v1054
        %1056 = vdwg.mxu0
        %v1057 = vsub.f32 %v338, %v338
        %v1058 = vand.u32 %v1057, 4294901760
        %v1059 = vsub.f32 %v1057, %v1058
        %v1060 = vand.u32 %v1059, 4294901760
        %1061 = vmatprep.subr.mxu0 %v1060
        %v1062 = vsub.f32 %v337, %v337
        %v1063 = vand.u32 %v1062, 4294901760
        %v1064 = vsub.f32 %v1062, %v1063
        %v1065 = vand.u32 %v1064, 4294901760
        %1066 = vmatpush1.msra.mxu0 %v1065
        %v1067 = vsub.f32 %v342, %v342
        %v1068 = vand.u32 %v1067, 4294901760
        %v1069 = vsub.f32 %v1067, %v1068
        %v1070 = vand.u32 %v1069, 4294901760
        %1071 = vmatprep.subr.mxu0 %v1070
        %v1072 = vsub.f32 %v341, %v341
        %v1073 = vand.u32 %v1072, 4294901760
        %v1074 = vsub.f32 %v1072, %v1073
        %v1075 = vand.u32 %v1074, 4294901760
        %1076 = vmatpush1.msra.mxu0 %v1075
        %v1077 = vsub.f32 %v346, %v346
        %v1078 = vand.u32 %v1077, 4294901760
        %v1079 = vsub.f32 %v1077, %v1078
        %v1080 = vand.u32 %v1079, 4294901760
        %1081 = vmatprep.subr.mxu0 %v1080
        %v1082 = vsub.f32 %v345, %v345
        %v1083 = vand.u32 %v1082, 4294901760
        %v1084 = vsub.f32 %v1082, %v1083
        %v1085 = vand.u32 %v1084, 4294901760
        %1086 = vmatpush1.msra.mxu0 %v1085
        %v1087 = vsub.f32 %v350, %v350
        %v1088 = vand.u32 %v1087, 4294901760
        %v1089 = vsub.f32 %v1087, %v1088
        %v1090 = vand.u32 %v1089, 4294901760
        %1091 = vmatprep.subr.mxu0 %v1090
        %v1092 = vsub.f32 %v349, %v349
        %v1093 = vand.u32 %v1092, 4294901760
        %v1094 = vsub.f32 %v1092, %v1093
        %v1095 = vand.u32 %v1094, 4294901760
        %1096 = vmatpush1.msra.mxu0 %v1095
        %1097 = vmatprep.subr.mxu0 0.0
        %1098 = vmatpush1.msra.mxu0 0.0
        %1099 = vmatprep.subr.mxu0 0.0
        %1100 = vmatpush1.msra.mxu0 0.0
        %1101 = vmatprep.subr.mxu0 0.0
        %1102 = vmatpush1.msra.mxu0 0.0
        %1103 = vmatprep.subr.mxu0 0.0
        %1104 = vmatpush1.msra.mxu0 0.0
        %1105 = vmatprep.subr.mxu0 0.0
        %1106 = vmatpush1.msra.mxu0 0.0
        %1107 = vmatprep.subr.mxu0 0.0
        %1108 = vmatpush1.msra.mxu0 0.0
        %1109 = vmatprep.subr.mxu0 0.0
        %1110 = vmatpush1.msra.mxu0 0.0
        %1111 = vmatprep.subr.mxu0 0.0
        %1112 = vmatpush1.msra.mxu0 0.0
        %1113 = vmatprep.subr.mxu0 0.0
        %1114 = vmatpush1.msra.mxu0 0.0
        %1115 = vmatprep.subr.mxu0 0.0
        %1116 = vmatpush1.msra.mxu0 0.0
        %1117 = vmatprep.subr.mxu0 0.0
        %1118 = vmatpush1.msra.mxu0 0.0
        %1119 = vmatprep.subr.mxu0 0.0
        %1120 = vmatpush1.msra.mxu0 0.0
        %1121 = vmatprep.subr.mxu0 0.0
        %1122 = vmatpush1.msra.mxu0 0.0
        %1123 = vmatprep.subr.mxu0 0.0
        %1124 = vmatpush1.msra.mxu0 0.0
        %1125 = vmatprep.subr.mxu0 0.0
        %1126 = vmatpush1.msra.mxu0 0.0
        %1127 = vmatprep.subr.mxu0 0.0
        %1128 = vmatpush1.msra.mxu0 0.0
        %1129 = vmatprep.subr.mxu0 0.0
        %1130 = vmatpush1.msra.mxu0 0.0
        %1131 = vmatprep.subr.mxu0 0.0
        %1132 = vmatpush1.msra.mxu0 0.0
        %1133 = vmatprep.subr.mxu0 0.0
        %1134 = vmatpush1.msra.mxu0 0.0
        %1135 = vmatprep.subr.mxu0 0.0
        %1136 = vmatpush1.msra.mxu0 0.0
        %1137 = vmatprep.subr.mxu0 0.0
        %1138 = vmatpush1.msra.mxu0 0.0
        %1139 = vmatprep.subr.mxu0 0.0
        %1140 = vmatpush1.msra.mxu0 0.0
        %1141 = vmatprep.subr.mxu0 0.0
        %1142 = vmatpush1.msra.mxu0 0.0
        %1143 = vmatprep.subr.mxu0 0.0
        %1144 = vmatpush1.msra.mxu0 0.0
        %1145 = vmatprep.subr.mxu0 0.0
        %1146 = vmatpush1.msra.mxu0 0.0
        %1147 = vmatprep.subr.mxu0 0.0
        %1148 = vmatpush1.msra.mxu0 0.0
        %1149 = vmatprep.subr.mxu0 0.0
        %1150 = vmatpush1.msra.mxu0 0.0
        %1151 = vmatprep.subr.mxu0 0.0
        %1152 = vmatpush1.msra.mxu0 0.0
        %1153 = vmatprep.mubr.f32.mxu0 0.0
        %v1154 = vand.u32 %v421, 4294901760
        %1155 = vmatmul.mubr.f32.gmra.mrb[0].mxu0 %v1154
        %v1156 = vpop.f32.mrb[0].mxu0
        %v1157 = vadd.f32 %v1042, %v1156
        %v1158 = vpop.f32.mrb[0].mxu0
        %v1159 = vadd.f32 %v1044, %v1158
        %1160 = vmatprep.mubr.f32.mxu0 0.0
        %v1161 = vand.u32 %v424, 4294901760
        %1162 = vmatmul.mubr.f32.gmra.mrb[0].mxu0 %v1161
        %v1163 = vpop.f32.mrb[0].mxu0
        %v1164 = vadd.f32 %v1053, %v1163
        %v1165 = vpop.f32.mrb[0].mxu0
        %v1166 = vadd.f32 %v1055, %v1165
        %1167 = vdwg.mxu0
        %v1168 = vsub.f32 %v338, %v338
        %1169 = vmatprep.subr.mxu0 %v1168
        %v1170 = vsub.f32 %v337, %v337
        %1171 = vmatpush1.msra.mxu0 %v1170
        %v1172 = vsub.f32 %v342, %v342
        %1173 = vmatprep.subr.mxu0 %v1172
        %v1174 = vsub.f32 %v341, %v341
        %1175 = vmatpush1.msra.mxu0 %v1174
        %v1176 = vsub.f32 %v346, %v346
        %1177 = vmatprep.subr.mxu0 %v1176
        %v1178 = vsub.f32 %v345, %v345
        %1179 = vmatpush1.msra.mxu0 %v1178
        %v1180 = vsub.f32 %v350, %v350
        %1181 = vmatprep.subr.mxu0 %v1180
        %v1182 = vsub.f32 %v349, %v349
        %1183 = vmatpush1.msra.mxu0 %v1182
        %1184 = vmatprep.subr.mxu0 0.0
        %1185 = vmatpush1.msra.mxu0 0.0
        %1186 = vmatprep.subr.mxu0 0.0
        %1187 = vmatpush1.msra.mxu0 0.0
        %1188 = vmatprep.subr.mxu0 0.0
        %1189 = vmatpush1.msra.mxu0 0.0
        %1190 = vmatprep.subr.mxu0 0.0
        %1191 = vmatpush1.msra.mxu0 0.0
        %1192 = vmatprep.subr.mxu0 0.0
        %1193 = vmatpush1.msra.mxu0 0.0
        %1194 = vmatprep.subr.mxu0 0.0
        %1195 = vmatpush1.msra.mxu0 0.0
        %1196 = vmatprep.subr.mxu0 0.0
        %1197 = vmatpush1.msra.mxu0 0.0
        %1198 = vmatprep.subr.mxu0 0.0
        %1199 = vmatpush1.msra.mxu0 0.0
        %1200 = vmatprep.subr.mxu0 0.0
        %1201 = vmatpush1.msra.mxu0 0.0
        %1202 = vmatprep.subr.mxu0 0.0
        %1203 = vmatpush1.msra.mxu0 0.0
        %1204 = vmatprep.subr.mxu0 0.0
        %1205 = vmatpush1.msra.mxu0 0.0
        %1206 = vmatprep.subr.mxu0 0.0
        %1207 = vmatpush1.msra.mxu0 0.0
        %1208 = vmatprep.subr.mxu0 0.0
        %1209 = vmatpush1.msra.mxu0 0.0
        %1210 = vmatprep.subr.mxu0 0.0
        %1211 = vmatpush1.msra.mxu0 0.0
        %1212 = vmatprep.subr.mxu0 0.0
        %1213 = vmatpush1.msra.mxu0 0.0
        %1214 = vmatprep.subr.mxu0 0.0
        %1215 = vmatpush1.msra.mxu0 0.0
        %1216 = vmatprep.subr.mxu0 0.0
        %1217 = vmatpush1.msra.mxu0 0.0
        %1218 = vmatprep.subr.mxu0 0.0
        %1219 = vmatpush1.msra.mxu0 0.0
        %1220 = vmatprep.subr.mxu0 0.0
        %1221 = vmatpush1.msra.mxu0 0.0
        %1222 = vmatprep.subr.mxu0 0.0
        %1223 = vmatpush1.msra.mxu0 0.0
        %1224 = vmatprep.subr.mxu0 0.0
        %1225 = vmatpush1.msra.mxu0 0.0
        %1226 = vmatprep.subr.mxu0 0.0
        %1227 = vmatpush1.msra.mxu0 0.0
        %1228 = vmatprep.subr.mxu0 0.0
        %1229 = vmatpush1.msra.mxu0 0.0
        %1230 = vmatprep.subr.mxu0 0.0
        %1231 = vmatpush1.msra.mxu0 0.0
        %1232 = vmatprep.subr.mxu0 0.0
        %1233 = vmatpush1.msra.mxu0 0.0
        %1234 = vmatprep.subr.mxu0 0.0
        %1235 = vmatpush1.msra.mxu0 0.0
        %1236 = vmatprep.subr.mxu0 0.0
        %1237 = vmatpush1.msra.mxu0 0.0
        %1238 = vmatprep.subr.mxu0 0.0
        %1239 = vmatpush1.msra.mxu0 0.0
        %1240 = vmatprep.mubr.f32.mxu0 0.0
        %v1241 = vand.u32 %v421, 4294901760
        %v1242 = vsub.f32 %v421, %v1241
        %1243 = vmatmul.mubr.f32.gmra.mrb[0].mxu0 %v1242
        %v1244 = vpop.f32.mrb[0].mxu0
        %v1245 = vadd.f32 %v1157, %v1244
        %v1246 = vpop.f32.mrb[0].mxu0
        %v1247 = vadd.f32 %v1159, %v1246
        %1248 = vmatprep.mubr.f32.mxu0 0.0
        %v1249 = vand.u32 %v424, 4294901760
        %v1250 = vsub.f32 %v424, %v1249
        %1251 = vmatmul.mubr.f32.gmra.mrb[0].mxu0 %v1250
        %v1252 = vpop.f32.mrb[0].mxu0
        %v1253 = vadd.f32 %v1164, %v1252
        %v1254 = vpop.f32.mrb[0].mxu0
        %v1255 = vadd.f32 %v1166, %v1254
        %1256 = vdwg.mxu0
        %1257 = vmatprep.subr.mxu0 %v338
        %1258 = vmatpush1.msra.mxu0 %v337
        %1259 = vmatprep.subr.mxu0 %v342
        %1260 = vmatpush1.msra.mxu0 %v341
        %1261 = vmatprep.subr.mxu0 %v346
        %1262 = vmatpush1.msra.mxu0 %v345
        %1263 = vmatprep.subr.mxu0 %v350
        %1264 = vmatpush1.msra.mxu0 %v349
        %1265 = vmatprep.subr.mxu0 0.0
        %1266 = vmatpush1.msra.mxu0 0.0
        %1267 = vmatprep.subr.mxu0 0.0
        %1268 = vmatpush1.msra.mxu0 0.0
        %1269 = vmatprep.subr.mxu0 0.0
        %1270 = vmatpush1.msra.mxu0 0.0
        %1271 = vmatprep.subr.mxu0 0.0
        %1272 = vmatpush1.msra.mxu0 0.0
        %1273 = vmatprep.subr.mxu0 0.0
        %1274 = vmatpush1.msra.mxu0 0.0
        %1275 = vmatprep.subr.mxu0 0.0
        %1276 = vmatpush1.msra.mxu0 0.0
        %1277 = vmatprep.subr.mxu0 0.0
        %1278 = vmatpush1.msra.mxu0 0.0
        %1279 = vmatprep.subr.mxu0 0.0
        %1280 = vmatpush1.msra.mxu0 0.0
        %1281 = vmatprep.subr.mxu0 0.0
        %1282 = vmatpush1.msra.mxu0 0.0
        %1283 = vmatprep.subr.mxu0 0.0
        %1284 = vmatpush1.msra.mxu0 0.0
        %1285 = vmatprep.subr.mxu0 0.0
        %1286 = vmatpush1.msra.mxu0 0.0
        %1287 = vmatprep.subr.mxu0 0.0
        %1288 = vmatpush1.msra.mxu0 0.0
        %1289 = vmatprep.subr.mxu0 0.0
        %1290 = vmatpush1.msra.mxu0 0.0
        %1291 = vmatprep.subr.mxu0 0.0
        %1292 = vmatpush1.msra.mxu0 0.0
        %1293 = vmatprep.subr.mxu0 0.0
        %1294 = vmatpush1.msra.mxu0 0.0
        %1295 = vmatprep.subr.mxu0 0.0
        %1296 = vmatpush1.msra.mxu0 0.0
        %1297 = vmatprep.subr.mxu0 0.0
        %1298 = vmatpush1.msra.mxu0 0.0
        %1299 = vmatprep.subr.mxu0 0.0
        %1300 = vmatpush1.msra.mxu0 0.0
        %1301 = vmatprep.subr.mxu0 0.0
        %1302 = vmatpush1.msra.mxu0 0.0
        %1303 = vmatprep.subr.mxu0 0.0
        %1304 = vmatpush1.msra.mxu0 0.0
        %1305 = vmatprep.subr.mxu0 0.0
        %1306 = vmatpush1.msra.mxu0 0.0
        %1307 = vmatprep.subr.mxu0 0.0
        %1308 = vmatpush1.msra.mxu0 0.0
        %1309 = vmatprep.subr.mxu0 0.0
        %1310 = vmatpush1.msra.mxu0 0.0
        %1311 = vmatprep.subr.mxu0 0.0
        %1312 = vmatpush1.msra.mxu0 0.0
        %1313 = vmatprep.subr.mxu0 0.0
        %1314 = vmatpush1.msra.mxu0 0.0
        %1315 = vmatprep.subr.mxu0 0.0
        %1316 = vmatpush1.msra.mxu0 0.0
        %1317 = vmatprep.subr.mxu0 0.0
        %1318 = vmatpush1.msra.mxu0 0.0
        %1319 = vmatprep.subr.mxu0 0.0
        %1320 = vmatpush1.msra.mxu0 0.0
        %1321 = vmatprep.mubr.f32.mxu0 0.0
        %v1322 = vand.u32 %v421, 4294901760
        %v1323 = vsub.f32 %v421, %v1322
        %v1324 = vand.u32 %v1323, 4294901760
        %1325 = vmatmul.mubr.f32.gmra.mrb[0].mxu0 %v1324
        %v1326 = vpop.f32.mrb[0].mxu0
        %v1327 = vadd.f32 %v1245, %v1326
        %v1328 = vpop.f32.mrb[0].mxu0
        %v1329 = vadd.f32 %v1247, %v1328
        %1330 = vmatprep.mubr.f32.mxu0 0.0
        %v1331 = vand.u32 %v424, 4294901760
        %v1332 = vsub.f32 %v424, %v1331
        %v1333 = vand.u32 %v1332, 4294901760
        %1334 = vmatmul.mubr.f32.gmra.mrb[0].mxu0 %v1333
        %v1335 = vpop.f32.mrb[0].mxu0
        %v1336 = vadd.f32 %v1253, %v1335
        %v1337 = vpop.f32.mrb[0].mxu0
        %v1338 = vadd.f32 %v1255, %v1337
        %1339 = vdwg.mxu0
        %v1340 = vsub.f32 %v338, %v338
        %v1341 = vand.u32 %v1340, 4294901760
        %1342 = vmatprep.subr.mxu0 %v1341
        %v1343 = vsub.f32 %v337, %v337
        %v1344 = vand.u32 %v1343, 4294901760
        %1345 = vmatpush1.msra.mxu0 %v1344
        %v1346 = vsub.f32 %v342, %v342
        %v1347 = vand.u32 %v1346, 4294901760
        %1348 = vmatprep.subr.mxu0 %v1347
        %v1349 = vsub.f32 %v341, %v341
        %v1350 = vand.u32 %v1349, 4294901760
        %1351 = vmatpush1.msra.mxu0 %v1350
        %v1352 = vsub.f32 %v346, %v346
        %v1353 = vand.u32 %v1352, 4294901760
        %1354 = vmatprep.subr.mxu0 %v1353
        %v1355 = vsub.f32 %v345, %v345
        %v1356 = vand.u32 %v1355, 4294901760
        %1357 = vmatpush1.msra.mxu0 %v1356
        %v1358 = vsub.f32 %v350, %v350
        %v1359 = vand.u32 %v1358, 4294901760
        %1360 = vmatprep.subr.mxu0 %v1359
        %v1361 = vsub.f32 %v349, %v349
        %v1362 = vand.u32 %v1361, 4294901760
        %1363 = vmatpush1.msra.mxu0 %v1362
        %1364 = vmatprep.subr.mxu0 0.0
        %1365 = vmatpush1.msra.mxu0 0.0
        %1366 = vmatprep.subr.mxu0 0.0
        %1367 = vmatpush1.msra.mxu0 0.0
        %1368 = vmatprep.subr.mxu0 0.0
        %1369 = vmatpush1.msra.mxu0 0.0
        %1370 = vmatprep.subr.mxu0 0.0
        %1371 = vmatpush1.msra.mxu0 0.0
        %1372 = vmatprep.subr.mxu0 0.0
        %1373 = vmatpush1.msra.mxu0 0.0
        %1374 = vmatprep.subr.mxu0 0.0
        %1375 = vmatpush1.msra.mxu0 0.0
        %1376 = vmatprep.subr.mxu0 0.0
        %1377 = vmatpush1.msra.mxu0 0.0
        %1378 = vmatprep.subr.mxu0 0.0
        %1379 = vmatpush1.msra.mxu0 0.0
        %1380 = vmatprep.subr.mxu0 0.0
        %1381 = vmatpush1.msra.mxu0 0.0
        %1382 = vmatprep.subr.mxu0 0.0
        %1383 = vmatpush1.msra.mxu0 0.0
        %1384 = vmatprep.subr.mxu0 0.0
        %1385 = vmatpush1.msra.mxu0 0.0
        %1386 = vmatprep.subr.mxu0 0.0
        %1387 = vmatpush1.msra.mxu0 0.0
        %1388 = vmatprep.subr.mxu0 0.0
        %1389 = vmatpush1.msra.mxu0 0.0
        %1390 = vmatprep.subr.mxu0 0.0
        %1391 = vmatpush1.msra.mxu0 0.0
        %1392 = vmatprep.subr.mxu0 0.0
        %1393 = vmatpush1.msra.mxu0 0.0
        %1394 = vmatprep.subr.mxu0 0.0
        %1395 = vmatpush1.msra.mxu0 0.0
        %1396 = vmatprep.subr.mxu0 0.0
        %1397 = vmatpush1.msra.mxu0 0.0
        %1398 = vmatprep.subr.mxu0 0.0
        %1399 = vmatpush1.msra.mxu0 0.0
        %1400 = vmatprep.subr.mxu0 0.0
        %1401 = vmatpush1.msra.mxu0 0.0
        %1402 = vmatprep.subr.mxu0 0.0
        %1403 = vmatpush1.msra.mxu0 0.0
        %1404 = vmatprep.subr.mxu0 0.0
        %1405 = vmatpush1.msra.mxu0 0.0
        %1406 = vmatprep.subr.mxu0 0.0
        %1407 = vmatpush1.msra.mxu0 0.0
        %1408 = vmatprep.subr.mxu0 0.0
        %1409 = vmatpush1.msra.mxu0 0.0
        %1410 = vmatprep.subr.mxu0 0.0
        %1411 = vmatpush1.msra.mxu0 0.0
        %1412 = vmatprep.subr.mxu0 0.0
        %1413 = vmatpush1.msra.mxu0 0.0
        %1414 = vmatprep.subr.mxu0 0.0
        %1415 = vmatpush1.msra.mxu0 0.0
        %1416 = vmatprep.subr.mxu0 0.0
        %1417 = vmatpush1.msra.mxu0 0.0
        %1418 = vmatprep.subr.mxu0 0.0
        %1419 = vmatpush1.msra.mxu0 0.0
        %1420 = vmatprep.mubr.f32.mxu0 0.0
        %v1421 = vand.u32 %v421, 4294901760
        %1422 = vmatmul.mubr.f32.gmra.mrb[0].mxu0 %v1421
        %v1423 = vpop.f32.mrb[0].mxu0
        %v1424 = vadd.f32 %v1327, %v1423
        %v1425 = vpop.f32.mrb[0].mxu0
        %v1426 = vadd.f32 %v1329, %v1425
        %1427 = vmatprep.mubr.f32.mxu0 0.0
        %v1428 = vand.u32 %v424, 4294901760
        %1429 = vmatmul.mubr.f32.gmra.mrb[0].mxu0 %v1428
        %v1430 = vpop.f32.mrb[0].mxu0
        %v1431 = vadd.f32 %v1336, %v1430
        %v1432 = vpop.f32.mrb[0].mxu0
        %v1433 = vadd.f32 %v1338, %v1432
        %1434 = vdwg.mxu0
        %1435 = vmatprep.subr.mxu0 %v338
        %1436 = vmatpush1.msra.mxu0 %v337
        %1437 = vmatprep.subr.mxu0 %v342
        %1438 = vmatpush1.msra.mxu0 %v341
        %1439 = vmatprep.subr.mxu0 %v346
        %1440 = vmatpush1.msra.mxu0 %v345
        %1441 = vmatprep.subr.mxu0 %v350
        %1442 = vmatpush1.msra.mxu0 %v349
        %1443 = vmatprep.subr.mxu0 0.0
        %1444 = vmatpush1.msra.mxu0 0.0
        %1445 = vmatprep.subr.mxu0 0.0
        %1446 = vmatpush1.msra.mxu0 0.0
        %1447 = vmatprep.subr.mxu0 0.0
        %1448 = vmatpush1.msra.mxu0 0.0
        %1449 = vmatprep.subr.mxu0 0.0
        %1450 = vmatpush1.msra.mxu0 0.0
        %1451 = vmatprep.subr.mxu0 0.0
        %1452 = vmatpush1.msra.mxu0 0.0
        %1453 = vmatprep.subr.mxu0 0.0
        %1454 = vmatpush1.msra.mxu0 0.0
        %1455 = vmatprep.subr.mxu0 0.0
        %1456 = vmatpush1.msra.mxu0 0.0
        %1457 = vmatprep.subr.mxu0 0.0
        %1458 = vmatpush1.msra.mxu0 0.0
        %1459 = vmatprep.subr.mxu0 0.0
        %1460 = vmatpush1.msra.mxu0 0.0
        %1461 = vmatprep.subr.mxu0 0.0
        %1462 = vmatpush1.msra.mxu0 0.0
        %1463 = vmatprep.subr.mxu0 0.0
        %1464 = vmatpush1.msra.mxu0 0.0
        %1465 = vmatprep.subr.mxu0 0.0
        %1466 = vmatpush1.msra.mxu0 0.0
        %1467 = vmatprep.subr.mxu0 0.0
        %1468 = vmatpush1.msra.mxu0 0.0
        %1469 = vmatprep.subr.mxu0 0.0
        %1470 = vmatpush1.msra.mxu0 0.0
        %1471 = vmatprep.subr.mxu0 0.0
        %1472 = vmatpush1.msra.mxu0 0.0
        %1473 = vmatprep.subr.mxu0 0.0
        %1474 = vmatpush1.msra.mxu0 0.0
        %1475 = vmatprep.subr.mxu0 0.0
        %1476 = vmatpush1.msra.mxu0 0.0
        %1477 = vmatprep.subr.mxu0 0.0
        %1478 = vmatpush1.msra.mxu0 0.0
        %1479 = vmatprep.subr.mxu0 0.0
        %1480 = vmatpush1.msra.mxu0 0.0
        %1481 = vmatprep.subr.mxu0 0.0
        %1482 = vmatpush1.msra.mxu0 0.0
        %1483 = vmatprep.subr.mxu0 0.0
        %1484 = vmatpush1.msra.mxu0 0.0
        %1485 = vmatprep.subr.mxu0 0.0
        %1486 = vmatpush1.msra.mxu0 0.0
        %1487 = vmatprep.subr.mxu0 0.0
        %1488 = vmatpush1.msra.mxu0 0.0
        %1489 = vmatprep.subr.mxu0 0.0
        %1490 = vmatpush1.msra.mxu0 0.0
        %1491 = vmatprep.subr.mxu0 0.0
        %1492 = vmatpush1.msra.mxu0 0.0
        %1493 = vmatprep.subr.mxu0 0.0
        %1494 = vmatpush1.msra.mxu0 0.0
        %1495 = vmatprep.subr.mxu0 0.0
        %1496 = vmatpush1.msra.mxu0 0.0
        %1497 = vmatprep.subr.mxu0 0.0
        %1498 = vmatpush1.msra.mxu0 0.0
        %1499 = vmatprep.mubr.f32.mxu0 0.0
        %v1500 = vand.u32 %v421, 4294901760
        %1501 = vmatmul.mubr.f32.gmra.mrb[0].mxu0 %v1500
        %v1502 = vpop.f32.mrb[0].mxu0
        %v1503 = vadd.f32 %v1424, %v1502
        %v1504 = vpop.f32.mrb[0].mxu0
        %v1505 = vadd.f32 %v1426, %v1504
        %1506 = vmatprep.mubr.f32.mxu0 0.0
        %v1507 = vand.u32 %v424, 4294901760
        %1508 = vmatmul.mubr.f32.gmra.mrb[0].mxu0 %v1507
        %v1509 = vpop.f32.mrb[0].mxu0
        %v1510 = vadd.f32 %v1431, %v1509
        %v1511 = vpop.f32.mrb[0].mxu0
        %v1512 = vadd.f32 %v1433, %v1511
        %1513 = vdwg.mxu0
        %v1514 = vld [vmem:[%s3] sm:$0xff]
        %v1515 = vld [vmem:[%s3 + $0x8] sm:$0xff]
        %vm1516 = vcmask 392192
        %v1518 = vsel %vm1516, %v1514, 0
        %v1521 = vsel %vm1516, %v1515, 0
        %1523 = vmatprep.subr.mxu0 %v394
        %1524 = vmatpush1.msra.mxu0 %v393
        %1525 = vmatprep.subr.mxu0 %v398
        %1526 = vmatpush1.msra.mxu0 %v397
        %1527 = vmatprep.subr.mxu0 %v402
        %1528 = vmatpush1.msra.mxu0 %v401
        %1529 = vmatprep.subr.mxu0 %v406
        %1530 = vmatpush1.msra.mxu0 %v405
        %1531 = vmatprep.subr.mxu0 %v410
        %1532 = vmatpush1.msra.mxu0 %v409
        %1533 = vmatprep.subr.mxu0 %v414
        %1534 = vmatpush1.msra.mxu0 %v413
        %1535 = vmatprep.subr.mxu0 0.0
        %1536 = vmatpush1.msra.mxu0 0.0
        %1537 = vmatprep.subr.mxu0 0.0
        %1538 = vmatpush1.msra.mxu0 0.0
        %1539 = vmatprep.subr.mxu0 0.0
        %1540 = vmatpush1.msra.mxu0 0.0
        %1541 = vmatprep.subr.mxu0 0.0
        %1542 = vmatpush1.msra.mxu0 0.0
        %1543 = vmatprep.subr.mxu0 0.0
        %1544 = vmatpush1.msra.mxu0 0.0
        %1545 = vmatprep.subr.mxu0 0.0
        %1546 = vmatpush1.msra.mxu0 0.0
        %1547 = vmatprep.subr.mxu0 0.0
        %1548 = vmatpush1.msra.mxu0 0.0
        %1549 = vmatprep.subr.mxu0 0.0
        %1550 = vmatpush1.msra.mxu0 0.0
        %1551 = vmatprep.subr.mxu0 0.0
        %1552 = vmatpush1.msra.mxu0 0.0
        %1553 = vmatprep.subr.mxu0 0.0
        %1554 = vmatpush1.msra.mxu0 0.0
        %1555 = vmatprep.subr.mxu0 0.0
        %1556 = vmatpush1.msra.mxu0 0.0
        %1557 = vmatprep.subr.mxu0 0.0
        %1558 = vmatpush1.msra.mxu0 0.0
        %1559 = vmatprep.subr.mxu0 0.0
        %1560 = vmatpush1.msra.mxu0 0.0
        %1561 = vmatprep.subr.mxu0 0.0
        %1562 = vmatpush1.msra.mxu0 0.0
        %1563 = vmatprep.subr.mxu0 0.0
        %1564 = vmatpush1.msra.mxu0 0.0
        %1565 = vmatprep.subr.mxu0 0.0
        %1566 = vmatpush1.msra.mxu0 0.0
        %1567 = vmatprep.subr.mxu0 0.0
        %1568 = vmatpush1.msra.mxu0 0.0
        %1569 = vmatprep.subr.mxu0 0.0
        %1570 = vmatpush1.msra.mxu0 0.0
        %1571 = vmatprep.subr.mxu0 0.0
        %1572 = vmatpush1.msra.mxu0 0.0
        %1573 = vmatprep.subr.mxu0 0.0
        %1574 = vmatpush1.msra.mxu0 0.0
        %1575 = vmatprep.subr.mxu0 0.0
        %1576 = vmatpush1.msra.mxu0 0.0
        %1577 = vmatprep.subr.mxu0 0.0
        %1578 = vmatpush1.msra.mxu0 0.0
        %1579 = vmatprep.subr.mxu0 0.0
        %1580 = vmatpush1.msra.mxu0 0.0
        %1581 = vmatprep.subr.mxu0 0.0
        %1582 = vmatpush1.msra.mxu0 0.0
        %1583 = vmatprep.subr.mxu0 0.0
        %1584 = vmatpush1.msra.mxu0 0.0
        %1585 = vmatprep.subr.mxu0 0.0
        %1586 = vmatpush1.msra.mxu0 0.0
        %1587 = vmatprep.mubr.f32.mxu0 0.0
        %v1588 = vand.u32 %v1518, 4294901760
        %v1589 = vsub.f32 %v1518, %v1588
        %v1590 = vand.u32 %v1589, 4294901760
        %v1591 = vsub.f32 %v1589, %v1590
        %v1592 = vand.u32 %v1591, 4294901760
        %1593 = vmatmul.mubr.f32.gmra.mrb[0].mxu0 %v1592
        %v1594 = vpop.f32.mrb[0].mxu0
        %v1595 = vadd.f32 0.0, %v1594
        %v1596 = vpop.f32.mrb[0].mxu0
        %v1597 = vadd.f32 0.0, %v1596
        %1598 = vmatprep.mubr.f32.mxu0 0.0
        %v1599 = vand.u32 %v1521, 4294901760
        %v1600 = vsub.f32 %v1521, %v1599
        %v1601 = vand.u32 %v1600, 4294901760
        %v1602 = vsub.f32 %v1600, %v1601
        %v1603 = vand.u32 %v1602, 4294901760
        %1604 = vmatmul.mubr.f32.gmra.mrb[0].mxu0 %v1603
        %v1605 = vpop.f32.mrb[0].mxu0
        %v1606 = vadd.f32 0.0, %v1605
        %v1607 = vpop.f32.mrb[0].mxu0
        %v1608 = vadd.f32 0.0, %v1607
        %1609 = vdwg.mxu0
        %v1610 = vsub.f32 %v394, %v394
        %v1611 = vand.u32 %v1610, 4294901760
        %v1612 = vsub.f32 %v1610, %v1611
        %v1613 = vand.u32 %v1612, 4294901760
        %1614 = vmatprep.subr.mxu0 %v1613
        %v1615 = vsub.f32 %v393, %v393
        %v1616 = vand.u32 %v1615, 4294901760
        %v1617 = vsub.f32 %v1615, %v1616
        %v1618 = vand.u32 %v1617, 4294901760
        %1619 = vmatpush1.msra.mxu0 %v1618
        %v1620 = vsub.f32 %v398, %v398
        %v1621 = vand.u32 %v1620, 4294901760
        %v1622 = vsub.f32 %v1620, %v1621
        %v1623 = vand.u32 %v1622, 4294901760
        %1624 = vmatprep.subr.mxu0 %v1623
        %v1625 = vsub.f32 %v397, %v397
        %v1626 = vand.u32 %v1625, 4294901760
        %v1627 = vsub.f32 %v1625, %v1626
        %v1628 = vand.u32 %v1627, 4294901760
        %1629 = vmatpush1.msra.mxu0 %v1628
        %v1630 = vsub.f32 %v402, %v402
        %v1631 = vand.u32 %v1630, 4294901760
        %v1632 = vsub.f32 %v1630, %v1631
        %v1633 = vand.u32 %v1632, 4294901760
        %1634 = vmatprep.subr.mxu0 %v1633
        %v1635 = vsub.f32 %v401, %v401
        %v1636 = vand.u32 %v1635, 4294901760
        %v1637 = vsub.f32 %v1635, %v1636
        %v1638 = vand.u32 %v1637, 4294901760
        %1639 = vmatpush1.msra.mxu0 %v1638
        %v1640 = vsub.f32 %v406, %v406
        %v1641 = vand.u32 %v1640, 4294901760
        %v1642 = vsub.f32 %v1640, %v1641
        %v1643 = vand.u32 %v1642, 4294901760
        %1644 = vmatprep.subr.mxu0 %v1643
        %v1645 = vsub.f32 %v405, %v405
        %v1646 = vand.u32 %v1645, 4294901760
        %v1647 = vsub.f32 %v1645, %v1646
        %v1648 = vand.u32 %v1647, 4294901760
        %1649 = vmatpush1.msra.mxu0 %v1648
        %v1650 = vsub.f32 %v410, %v410
        %v1651 = vand.u32 %v1650, 4294901760
        %v1652 = vsub.f32 %v1650, %v1651
        %v1653 = vand.u32 %v1652, 4294901760
        %1654 = vmatprep.subr.mxu0 %v1653
        %v1655 = vsub.f32 %v409, %v409
        %v1656 = vand.u32 %v1655, 4294901760
        %v1657 = vsub.f32 %v1655, %v1656
        %v1658 = vand.u32 %v1657, 4294901760
        %1659 = vmatpush1.msra.mxu0 %v1658
        %v1660 = vsub.f32 %v414, %v414
        %v1661 = vand.u32 %v1660, 4294901760
        %v1662 = vsub.f32 %v1660, %v1661
        %v1663 = vand.u32 %v1662, 4294901760
        %1664 = vmatprep.subr.mxu0 %v1663
        %v1665 = vsub.f32 %v413, %v413
        %v1666 = vand.u32 %v1665, 4294901760
        %v1667 = vsub.f32 %v1665, %v1666
        %v1668 = vand.u32 %v1667, 4294901760
        %1669 = vmatpush1.msra.mxu0 %v1668
        %1670 = vmatprep.subr.mxu0 0.0
        %1671 = vmatpush1.msra.mxu0 0.0
        %1672 = vmatprep.subr.mxu0 0.0
        %1673 = vmatpush1.msra.mxu0 0.0
        %1674 = vmatprep.subr.mxu0 0.0
        %1675 = vmatpush1.msra.mxu0 0.0
        %1676 = vmatprep.subr.mxu0 0.0
        %1677 = vmatpush1.msra.mxu0 0.0
        %1678 = vmatprep.subr.mxu0 0.0
        %1679 = vmatpush1.msra.mxu0 0.0
        %1680 = vmatprep.subr.mxu0 0.0
        %1681 = vmatpush1.msra.mxu0 0.0
        %1682 = vmatprep.subr.mxu0 0.0
        %1683 = vmatpush1.msra.mxu0 0.0
        %1684 = vmatprep.subr.mxu0 0.0
        %1685 = vmatpush1.msra.mxu0 0.0
        %1686 = vmatprep.subr.mxu0 0.0
        %1687 = vmatpush1.msra.mxu0 0.0
        %1688 = vmatprep.subr.mxu0 0.0
        %1689 = vmatpush1.msra.mxu0 0.0
        %1690 = vmatprep.subr.mxu0 0.0
        %1691 = vmatpush1.msra.mxu0 0.0
        %1692 = vmatprep.subr.mxu0 0.0
        %1693 = vmatpush1.msra.mxu0 0.0
        %1694 = vmatprep.subr.mxu0 0.0
        %1695 = vmatpush1.msra.mxu0 0.0
        %1696 = vmatprep.subr.mxu0 0.0
        %1697 = vmatpush1.msra.mxu0 0.0
        %1698 = vmatprep.subr.mxu0 0.0
        %1699 = vmatpush1.msra.mxu0 0.0
        %1700 = vmatprep.subr.mxu0 0.0
        %1701 = vmatpush1.msra.mxu0 0.0
        %1702 = vmatprep.subr.mxu0 0.0
        %1703 = vmatpush1.msra.mxu0 0.0
        %1704 = vmatprep.subr.mxu0 0.0
        %1705 = vmatpush1.msra.mxu0 0.0
        %1706 = vmatprep.subr.mxu0 0.0
        %1707 = vmatpush1.msra.mxu0 0.0
        %1708 = vmatprep.subr.mxu0 0.0
        %1709 = vmatpush1.msra.mxu0 0.0
        %1710 = vmatprep.subr.mxu0 0.0
        %1711 = vmatpush1.msra.mxu0 0.0
        %1712 = vmatprep.subr.mxu0 0.0
        %1713 = vmatpush1.msra.mxu0 0.0
        %1714 = vmatprep.subr.mxu0 0.0
        %1715 = vmatpush1.msra.mxu0 0.0
        %1716 = vmatprep.subr.mxu0 0.0
        %1717 = vmatpush1.msra.mxu0 0.0
        %1718 = vmatprep.subr.mxu0 0.0
        %1719 = vmatpush1.msra.mxu0 0.0
        %1720 = vmatprep.subr.mxu0 0.0
        %1721 = vmatpush1.msra.mxu0 0.0
        %1722 = vmatprep.mubr.f32.mxu0 0.0
        %v1723 = vand.u32 %v1518, 4294901760
        %1724 = vmatmul.mubr.f32.gmra.mrb[0].mxu0 %v1723
        %v1725 = vpop.f32.mrb[0].mxu0
        %v1726 = vadd.f32 %v1595, %v1725
        %v1727 = vpop.f32.mrb[0].mxu0
        %v1728 = vadd.f32 %v1597, %v1727
        %1729 = vmatprep.mubr.f32.mxu0 0.0
        %v1730 = vand.u32 %v1521, 4294901760
        %1731 = vmatmul.mubr.f32.gmra.mrb[0].mxu0 %v1730
        %v1732 = vpop.f32.mrb[0].mxu0
        %v1733 = vadd.f32 %v1606, %v1732
        %v1734 = vpop.f32.mrb[0].mxu0
        %v1735 = vadd.f32 %v1608, %v1734
        %1736 = vdwg.mxu0
        %v1737 = vsub.f32 %v394, %v394
        %1738 = vmatprep.subr.mxu0 %v1737
        %v1739 = vsub.f32 %v393, %v393
        %1740 = vmatpush1.msra.mxu0 %v1739
        %v1741 = vsub.f32 %v398, %v398
        %1742 = vmatprep.subr.mxu0 %v1741
        %v1743 = vsub.f32 %v397, %v397
        %1744 = vmatpush1.msra.mxu0 %v1743
        %v1745 = vsub.f32 %v402, %v402
        %1746 = vmatprep.subr.mxu0 %v1745
        %v1747 = vsub.f32 %v401, %v401
        %1748 = vmatpush1.msra.mxu0 %v1747
        %v1749 = vsub.f32 %v406, %v406
        %1750 = vmatprep.subr.mxu0 %v1749
        %v1751 = vsub.f32 %v405, %v405
        %1752 = vmatpush1.msra.mxu0 %v1751
        %v1753 = vsub.f32 %v410, %v410
        %1754 = vmatprep.subr.mxu0 %v1753
        %v1755 = vsub.f32 %v409, %v409
        %1756 = vmatpush1.msra.mxu0 %v1755
        %v1757 = vsub.f32 %v414, %v414
        %1758 = vmatprep.subr.mxu0 %v1757
        %v1759 = vsub.f32 %v413, %v413
        %1760 = vmatpush1.msra.mxu0 %v1759
        %1761 = vmatprep.subr.mxu0 0.0
        %1762 = vmatpush1.msra.mxu0 0.0
        %1763 = vmatprep.subr.mxu0 0.0
        %1764 = vmatpush1.msra.mxu0 0.0
        %1765 = vmatprep.subr.mxu0 0.0
        %1766 = vmatpush1.msra.mxu0 0.0
        %1767 = vmatprep.subr.mxu0 0.0
        %1768 = vmatpush1.msra.mxu0 0.0
        %1769 = vmatprep.subr.mxu0 0.0
        %1770 = vmatpush1.msra.mxu0 0.0
        %1771 = vmatprep.subr.mxu0 0.0
        %1772 = vmatpush1.msra.mxu0 0.0
        %1773 = vmatprep.subr.mxu0 0.0
        %1774 = vmatpush1.msra.mxu0 0.0
        %1775 = vmatprep.subr.mxu0 0.0
        %1776 = vmatpush1.msra.mxu0 0.0
        %1777 = vmatprep.subr.mxu0 0.0
        %1778 = vmatpush1.msra.mxu0 0.0
        %1779 = vmatprep.subr.mxu0 0.0
        %1780 = vmatpush1.msra.mxu0 0.0
        %1781 = vmatprep.subr.mxu0 0.0
        %1782 = vmatpush1.msra.mxu0 0.0
        %1783 = vmatprep.subr.mxu0 0.0
        %1784 = vmatpush1.msra.mxu0 0.0
        %1785 = vmatprep.subr.mxu0 0.0
        %1786 = vmatpush1.msra.mxu0 0.0
        %1787 = vmatprep.subr.mxu0 0.0
        %1788 = vmatpush1.msra.mxu0 0.0
        %1789 = vmatprep.subr.mxu0 0.0
        %1790 = vmatpush1.msra.mxu0 0.0
        %1791 = vmatprep.subr.mxu0 0.0
        %1792 = vmatpush1.msra.mxu0 0.0
        %1793 = vmatprep.subr.mxu0 0.0
        %1794 = vmatpush1.msra.mxu0 0.0
        %1795 = vmatprep.subr.mxu0 0.0
        %1796 = vmatpush1.msra.mxu0 0.0
        %1797 = vmatprep.subr.mxu0 0.0
        %1798 = vmatpush1.msra.mxu0 0.0
        %1799 = vmatprep.subr.mxu0 0.0
        %1800 = vmatpush1.msra.mxu0 0.0
        %1801 = vmatprep.subr.mxu0 0.0
        %1802 = vmatpush1.msra.mxu0 0.0
        %1803 = vmatprep.subr.mxu0 0.0
        %1804 = vmatpush1.msra.mxu0 0.0
        %1805 = vmatprep.subr.mxu0 0.0
        %1806 = vmatpush1.msra.mxu0 0.0
        %1807 = vmatprep.subr.mxu0 0.0
        %1808 = vmatpush1.msra.mxu0 0.0
        %1809 = vmatprep.subr.mxu0 0.0
        %1810 = vmatpush1.msra.mxu0 0.0
        %1811 = vmatprep.subr.mxu0 0.0
        %1812 = vmatpush1.msra.mxu0 0.0
        %1813 = vmatprep.mubr.f32.mxu0 0.0
        %v1814 = vand.u32 %v1518, 4294901760
        %v1815 = vsub.f32 %v1518, %v1814
        %1816 = vmatmul.mubr.f32.gmra.mrb[0].mxu0 %v1815
        %v1817 = vpop.f32.mrb[0].mxu0
        %v1818 = vadd.f32 %v1726, %v1817
        %v1819 = vpop.f32.mrb[0].mxu0
        %v1820 = vadd.f32 %v1728, %v1819
        %1821 = vmatprep.mubr.f32.mxu0 0.0
        %v1822 = vand.u32 %v1521, 4294901760
        %v1823 = vsub.f32 %v1521, %v1822
        %1824 = vmatmul.mubr.f32.gmra.mrb[0].mxu0 %v1823
        %v1825 = vpop.f32.mrb[0].mxu0
        %v1826 = vadd.f32 %v1733, %v1825
        %v1827 = vpop.f32.mrb[0].mxu0
        %v1828 = vadd.f32 %v1735, %v1827
        %1829 = vdwg.mxu0
        %1830 = vmatprep.subr.mxu0 %v394
        %1831 = vmatpush1.msra.mxu0 %v393
        %1832 = vmatprep.subr.mxu0 %v398
        %1833 = vmatpush1.msra.mxu0 %v397
        %1834 = vmatprep.subr.mxu0 %v402
        %1835 = vmatpush1.msra.mxu0 %v401
        %1836 = vmatprep.subr.mxu0 %v406
        %1837 = vmatpush1.msra.mxu0 %v405
        %1838 = vmatprep.subr.mxu0 %v410
        %1839 = vmatpush1.msra.mxu0 %v409
        %1840 = vmatprep.subr.mxu0 %v414
        %1841 = vmatpush1.msra.mxu0 %v413
        %1842 = vmatprep.subr.mxu0 0.0
        %1843 = vmatpush1.msra.mxu0 0.0
        %1844 = vmatprep.subr.mxu0 0.0
        %1845 = vmatpush1.msra.mxu0 0.0
        %1846 = vmatprep.subr.mxu0 0.0
        %1847 = vmatpush1.msra.mxu0 0.0
        %1848 = vmatprep.subr.mxu0 0.0
        %1849 = vmatpush1.msra.mxu0 0.0
        %1850 = vmatprep.subr.mxu0 0.0
        %1851 = vmatpush1.msra.mxu0 0.0
        %1852 = vmatprep.subr.mxu0 0.0
        %1853 = vmatpush1.msra.mxu0 0.0
        %1854 = vmatprep.subr.mxu0 0.0
        %1855 = vmatpush1.msra.mxu0 0.0
        %1856 = vmatprep.subr.mxu0 0.0
        %1857 = vmatpush1.msra.mxu0 0.0
        %1858 = vmatprep.subr.mxu0 0.0
        %1859 = vmatpush1.msra.mxu0 0.0
        %1860 = vmatprep.subr.mxu0 0.0
        %1861 = vmatpush1.msra.mxu0 0.0
        %1862 = vmatprep.subr.mxu0 0.0
        %1863 = vmatpush1.msra.mxu0 0.0
        %1864 = vmatprep.subr.mxu0 0.0
        %1865 = vmatpush1.msra.mxu0 0.0
        %1866 = vmatprep.subr.mxu0 0.0
        %1867 = vmatpush1.msra.mxu0 0.0
        %1868 = vmatprep.subr.mxu0 0.0
        %1869 = vmatpush1.msra.mxu0 0.0
        %1870 = vmatprep.subr.mxu0 0.0
        %1871 = vmatpush1.msra.mxu0 0.0
        %1872 = vmatprep.subr.mxu0 0.0
        %1873 = vmatpush1.msra.mxu0 0.0
        %1874 = vmatprep.subr.mxu0 0.0
        %1875 = vmatpush1.msra.mxu0 0.0
        %1876 = vmatprep.subr.mxu0 0.0
        %1877 = vmatpush1.msra.mxu0 0.0
        %1878 = vmatprep.subr.mxu0 0.0
        %1879 = vmatpush1.msra.mxu0 0.0
        %1880 = vmatprep.subr.mxu0 0.0
        %1881 = vmatpush1.msra.mxu0 0.0
        %1882 = vmatprep.subr.mxu0 0.0
        %1883 = vmatpush1.msra.mxu0 0.0
        %1884 = vmatprep.subr.mxu0 0.0
        %1885 = vmatpush1.msra.mxu0 0.0
        %1886 = vmatprep.subr.mxu0 0.0
        %1887 = vmatpush1.msra.mxu0 0.0
        %1888 = vmatprep.subr.mxu0 0.0
        %1889 = vmatpush1.msra.mxu0 0.0
        %1890 = vmatprep.subr.mxu0 0.0
        %1891 = vmatpush1.msra.mxu0 0.0
        %1892 = vmatprep.subr.mxu0 0.0
        %1893 = vmatpush1.msra.mxu0 0.0
        %1894 = vmatprep.mubr.f32.mxu0 0.0
        %v1895 = vand.u32 %v1518, 4294901760
        %v1896 = vsub.f32 %v1518, %v1895
        %v1897 = vand.u32 %v1896, 4294901760
        %1898 = vmatmul.mubr.f32.gmra.mrb[0].mxu0 %v1897
        %v1899 = vpop.f32.mrb[0].mxu0
        %v1900 = vadd.f32 %v1818, %v1899
        %v1901 = vpop.f32.mrb[0].mxu0
        %v1902 = vadd.f32 %v1820, %v1901
        %1903 = vmatprep.mubr.f32.mxu0 0.0
        %v1904 = vand.u32 %v1521, 4294901760
        %v1905 = vsub.f32 %v1521, %v1904
        %v1906 = vand.u32 %v1905, 4294901760
        %1907 = vmatmul.mubr.f32.gmra.mrb[0].mxu0 %v1906
        %v1908 = vpop.f32.mrb[0].mxu0
        %v1909 = vadd.f32 %v1826, %v1908
        %v1910 = vpop.f32.mrb[0].mxu0
        %v1911 = vadd.f32 %v1828, %v1910
        %1912 = vdwg.mxu0
        %v1913 = vsub.f32 %v394, %v394
        %v1914 = vand.u32 %v1913, 4294901760
        %1915 = vmatprep.subr.mxu0 %v1914
        %v1916 = vsub.f32 %v393, %v393
        %v1917 = vand.u32 %v1916, 4294901760
        %1918 = vmatpush1.msra.mxu0 %v1917
        %v1919 = vsub.f32 %v398, %v398
        %v1920 = vand.u32 %v1919, 4294901760
        %1921 = vmatprep.subr.mxu0 %v1920
        %v1922 = vsub.f32 %v397, %v397
        %v1923 = vand.u32 %v1922, 4294901760
        %1924 = vmatpush1.msra.mxu0 %v1923
        %v1925 = vsub.f32 %v402, %v402
        %v1926 = vand.u32 %v1925, 4294901760
        %1927 = vmatprep.subr.mxu0 %v1926
        %v1928 = vsub.f32 %v401, %v401
        %v1929 = vand.u32 %v1928, 4294901760
        %1930 = vmatpush1.msra.mxu0 %v1929
        %v1931 = vsub.f32 %v406, %v406
        %v1932 = vand.u32 %v1931, 4294901760
        %1933 = vmatprep.subr.mxu0 %v1932
        %v1934 = vsub.f32 %v405, %v405
        %v1935 = vand.u32 %v1934, 4294901760
        %1936 = vmatpush1.msra.mxu0 %v1935
        %v1937 = vsub.f32 %v410, %v410
        %v1938 = vand.u32 %v1937, 4294901760
        %1939 = vmatprep.subr.mxu0 %v1938
        %v1940 = vsub.f32 %v409, %v409
        %v1941 = vand.u32 %v1940, 4294901760
        %1942 = vmatpush1.msra.mxu0 %v1941
        %v1943 = vsub.f32 %v414, %v414
        %v1944 = vand.u32 %v1943, 4294901760
        %1945 = vmatprep.subr.mxu0 %v1944
        %v1946 = vsub.f32 %v413, %v413
        %v1947 = vand.u32 %v1946, 4294901760
        %1948 = vmatpush1.msra.mxu0 %v1947
        %1949 = vmatprep.subr.mxu0 0.0
        %1950 = vmatpush1.msra.mxu0 0.0
        %1951 = vmatprep.subr.mxu0 0.0
        %1952 = vmatpush1.msra.mxu0 0.0
        %1953 = vmatprep.subr.mxu0 0.0
        %1954 = vmatpush1.msra.mxu0 0.0
        %1955 = vmatprep.subr.mxu0 0.0
        %1956 = vmatpush1.msra.mxu0 0.0
        %1957 = vmatprep.subr.mxu0 0.0
        %1958 = vmatpush1.msra.mxu0 0.0
        %1959 = vmatprep.subr.mxu0 0.0
        %1960 = vmatpush1.msra.mxu0 0.0
        %1961 = vmatprep.subr.mxu0 0.0
        %1962 = vmatpush1.msra.mxu0 0.0
        %1963 = vmatprep.subr.mxu0 0.0
        %1964 = vmatpush1.msra.mxu0 0.0
        %1965 = vmatprep.subr.mxu0 0.0
        %1966 = vmatpush1.msra.mxu0 0.0
        %1967 = vmatprep.subr.mxu0 0.0
        %1968 = vmatpush1.msra.mxu0 0.0
        %1969 = vmatprep.subr.mxu0 0.0
        %1970 = vmatpush1.msra.mxu0 0.0
        %1971 = vmatprep.subr.mxu0 0.0
        %1972 = vmatpush1.msra.mxu0 0.0
        %1973 = vmatprep.subr.mxu0 0.0
        %1974 = vmatpush1.msra.mxu0 0.0
        %1975 = vmatprep.subr.mxu0 0.0
        %1976 = vmatpush1.msra.mxu0 0.0
        %1977 = vmatprep.subr.mxu0 0.0
        %1978 = vmatpush1.msra.mxu0 0.0
        %1979 = vmatprep.subr.mxu0 0.0
        %1980 = vmatpush1.msra.mxu0 0.0
        %1981 = vmatprep.subr.mxu0 0.0
        %1982 = vmatpush1.msra.mxu0 0.0
        %1983 = vmatprep.subr.mxu0 0.0
        %1984 = vmatpush1.msra.mxu0 0.0
        %1985 = vmatprep.subr.mxu0 0.0
        %1986 = vmatpush1.msra.mxu0 0.0
        %1987 = vmatprep.subr.mxu0 0.0
        %1988 = vmatpush1.msra.mxu0 0.0
        %1989 = vmatprep.subr.mxu0 0.0
        %1990 = vmatpush1.msra.mxu0 0.0
        %1991 = vmatprep.subr.mxu0 0.0
        %1992 = vmatpush1.msra.mxu0 0.0
        %1993 = vmatprep.subr.mxu0 0.0
        %1994 = vmatpush1.msra.mxu0 0.0
        %1995 = vmatprep.subr.mxu0 0.0
        %1996 = vmatpush1.msra.mxu0 0.0
        %1997 = vmatprep.subr.mxu0 0.0
        %1998 = vmatpush1.msra.mxu0 0.0
        %1999 = vmatprep.subr.mxu0 0.0
        %2000 = vmatpush1.msra.mxu0 0.0
        %2001 = vmatprep.mubr.f32.mxu0 0.0
        %v2002 = vand.u32 %v1518, 4294901760
        %2003 = vmatmul.mubr.f32.gmra.mrb[0].mxu0 %v2002
        %v2004 = vpop.f32.mrb[0].mxu0
        %v2005 = vadd.f32 %v1900, %v2004
        %v2006 = vpop.f32.mrb[0].mxu0
        %v2007 = vadd.f32 %v1902, %v2006
        %2008 = vmatprep.mubr.f32.mxu0 0.0
        %v2009 = vand.u32 %v1521, 4294901760
        %2010 = vmatmul.mubr.f32.gmra.mrb[0].mxu0 %v2009
        %v2011 = vpop.f32.mrb[0].mxu0
        %v2012 = vadd.f32 %v1909, %v2011
        %v2013 = vpop.f32.mrb[0].mxu0
        %v2014 = vadd.f32 %v1911, %v2013
        %2015 = vdwg.mxu0
        %2016 = vmatprep.subr.mxu0 %v394
        %2017 = vmatpush1.msra.mxu0 %v393
        %2018 = vmatprep.subr.mxu0 %v398
        %2019 = vmatpush1.msra.mxu0 %v397
        %2020 = vmatprep.subr.mxu0 %v402
        %2021 = vmatpush1.msra.mxu0 %v401
        %2022 = vmatprep.subr.mxu0 %v406
        %2023 = vmatpush1.msra.mxu0 %v405
        %2024 = vmatprep.subr.mxu0 %v410
        %2025 = vmatpush1.msra.mxu0 %v409
        %2026 = vmatprep.subr.mxu0 %v414
        %2027 = vmatpush1.msra.mxu0 %v413
        %2028 = vmatprep.subr.mxu0 0.0
        %2029 = vmatpush1.msra.mxu0 0.0
        %2030 = vmatprep.subr.mxu0 0.0
        %2031 = vmatpush1.msra.mxu0 0.0
        %2032 = vmatprep.subr.mxu0 0.0
        %2033 = vmatpush1.msra.mxu0 0.0
        %2034 = vmatprep.subr.mxu0 0.0
        %2035 = vmatpush1.msra.mxu0 0.0
        %2036 = vmatprep.subr.mxu0 0.0
        %2037 = vmatpush1.msra.mxu0 0.0
        %2038 = vmatprep.subr.mxu0 0.0
        %2039 = vmatpush1.msra.mxu0 0.0
        %2040 = vmatprep.subr.mxu0 0.0
        %2041 = vmatpush1.msra.mxu0 0.0
        %2042 = vmatprep.subr.mxu0 0.0
        %2043 = vmatpush1.msra.mxu0 0.0
        %2044 = vmatprep.subr.mxu0 0.0
        %2045 = vmatpush1.msra.mxu0 0.0
        %2046 = vmatprep.subr.mxu0 0.0
        %2047 = vmatpush1.msra.mxu0 0.0
        %2048 = vmatprep.subr.mxu0 0.0
        %2049 = vmatpush1.msra.mxu0 0.0
        %2050 = vmatprep.subr.mxu0 0.0
        %2051 = vmatpush1.msra.mxu0 0.0
        %2052 = vmatprep.subr.mxu0 0.0
        %2053 = vmatpush1.msra.mxu0 0.0
        %2054 = vmatprep.subr.mxu0 0.0
        %2055 = vmatpush1.msra.mxu0 0.0
        %2056 = vmatprep.subr.mxu0 0.0
        %2057 = vmatpush1.msra.mxu0 0.0
        %2058 = vmatprep.subr.mxu0 0.0
        %2059 = vmatpush1.msra.mxu0 0.0
        %2060 = vmatprep.subr.mxu0 0.0
        %2061 = vmatpush1.msra.mxu0 0.0
        %2062 = vmatprep.subr.mxu0 0.0
        %2063 = vmatpush1.msra.mxu0 0.0
        %2064 = vmatprep.subr.mxu0 0.0
        %2065 = vmatpush1.msra.mxu0 0.0
        %2066 = vmatprep.subr.mxu0 0.0
        %2067 = vmatpush1.msra.mxu0 0.0
        %2068 = vmatprep.subr.mxu0 0.0
        %2069 = vmatpush1.msra.mxu0 0.0
        %2070 = vmatprep.subr.mxu0 0.0
        %2071 = vmatpush1.msra.mxu0 0.0
        %2072 = vmatprep.subr.mxu0 0.0
        %2073 = vmatpush1.msra.mxu0 0.0
        %2074 = vmatprep.subr.mxu0 0.0
        %2075 = vmatpush1.msra.mxu0 0.0
        %2076 = vmatprep.subr.mxu0 0.0
        %2077 = vmatpush1.msra.mxu0 0.0
        %2078 = vmatprep.subr.mxu0 0.0
        %2079 = vmatpush1.msra.mxu0 0.0
        %2080 = vmatprep.mubr.f32.mxu0 0.0
        %v2081 = vand.u32 %v1518, 4294901760
        %2082 = vmatmul.mubr.f32.gmra.mrb[0].mxu0 %v2081
        %v2083 = vpop.f32.mrb[0].mxu0
        %v2084 = vadd.f32 %v2005, %v2083
        %v2085 = vpop.f32.mrb[0].mxu0
        %v2086 = vadd.f32 %v2007, %v2085
        %2087 = vmatprep.mubr.f32.mxu0 0.0
        %v2088 = vand.u32 %v1521, 4294901760
        %2089 = vmatmul.mubr.f32.gmra.mrb[0].mxu0 %v2088
        %v2090 = vpop.f32.mrb[0].mxu0
        %v2091 = vadd.f32 %v2012, %v2090
        %v2092 = vpop.f32.mrb[0].mxu0
        %v2093 = vadd.f32 %v2014, %v2092
        %2094 = vdwg.mxu0
        %2095 = vmatprep.subr.mxu0 %v396
        %2096 = vmatpush1.msra.mxu0 %v395
        %2097 = vmatprep.subr.mxu0 %v400
        %2098 = vmatpush1.msra.mxu0 %v399
        %2099 = vmatprep.subr.mxu0 %v404
        %2100 = vmatpush1.msra.mxu0 %v403
        %2101 = vmatprep.subr.mxu0 %v408
        %2102 = vmatpush1.msra.mxu0 %v407
        %2103 = vmatprep.subr.mxu0 %v412
        %2104 = vmatpush1.msra.mxu0 %v411
        %2105 = vmatprep.subr.mxu0 %v416
        %2106 = vmatpush1.msra.mxu0 %v415
        %2107 = vmatprep.subr.mxu0 0.0
        %2108 = vmatpush1.msra.mxu0 0.0
        %2109 = vmatprep.subr.mxu0 0.0
        %2110 = vmatpush1.msra.mxu0 0.0
        %2111 = vmatprep.subr.mxu0 0.0
        %2112 = vmatpush1.msra.mxu0 0.0
        %2113 = vmatprep.subr.mxu0 0.0
        %2114 = vmatpush1.msra.mxu0 0.0
        %2115 = vmatprep.subr.mxu0 0.0
        %2116 = vmatpush1.msra.mxu0 0.0
        %2117 = vmatprep.subr.mxu0 0.0
        %2118 = vmatpush1.msra.mxu0 0.0
        %2119 = vmatprep.subr.mxu0 0.0
        %2120 = vmatpush1.msra.mxu0 0.0
        %2121 = vmatprep.subr.mxu0 0.0
        %2122 = vmatpush1.msra.mxu0 0.0
        %2123 = vmatprep.subr.mxu0 0.0
        %2124 = vmatpush1.msra.mxu0 0.0
        %2125 = vmatprep.subr.mxu0 0.0
        %2126 = vmatpush1.msra.mxu0 0.0
        %2127 = vmatprep.subr.mxu0 0.0
        %2128 = vmatpush1.msra.mxu0 0.0
        %2129 = vmatprep.subr.mxu0 0.0
        %2130 = vmatpush1.msra.mxu0 0.0
        %2131 = vmatprep.subr.mxu0 0.0
        %2132 = vmatpush1.msra.mxu0 0.0
        %2133 = vmatprep.subr.mxu0 0.0
        %2134 = vmatpush1.msra.mxu0 0.0
        %2135 = vmatprep.subr.mxu0 0.0
        %2136 = vmatpush1.msra.mxu0 0.0
        %2137 = vmatprep.subr.mxu0 0.0
        %2138 = vmatpush1.msra.mxu0 0.0
        %2139 = vmatprep.subr.mxu0 0.0
        %2140 = vmatpush1.msra.mxu0 0.0
        %2141 = vmatprep.subr.mxu0 0.0
        %2142 = vmatpush1.msra.mxu0 0.0
        %2143 = vmatprep.subr.mxu0 0.0
        %2144 = vmatpush1.msra.mxu0 0.0
        %2145 = vmatprep.subr.mxu0 0.0
        %2146 = vmatpush1.msra.mxu0 0.0
        %2147 = vmatprep.subr.mxu0 0.0
        %2148 = vmatpush1.msra.mxu0 0.0
        %2149 = vmatprep.subr.mxu0 0.0
        %2150 = vmatpush1.msra.mxu0 0.0
        %2151 = vmatprep.subr.mxu0 0.0
        %2152 = vmatpush1.msra.mxu0 0.0
        %2153 = vmatprep.subr.mxu0 0.0
        %2154 = vmatpush1.msra.mxu0 0.0
        %2155 = vmatprep.subr.mxu0 0.0
        %2156 = vmatpush1.msra.mxu0 0.0
        %2157 = vmatprep.subr.mxu0 0.0
        %2158 = vmatpush1.msra.mxu0 0.0
        %2159 = vmatprep.mubr.f32.mxu0 0.0
        %v2160 = vand.u32 %v1518, 4294901760
        %v2161 = vsub.f32 %v1518, %v2160
        %v2162 = vand.u32 %v2161, 4294901760
        %v2163 = vsub.f32 %v2161, %v2162
        %v2164 = vand.u32 %v2163, 4294901760
        %2165 = vmatmul.mubr.f32.gmra.mrb[0].mxu0 %v2164
        %v2166 = vpop.f32.mrb[0].mxu0
        %v2167 = vadd.f32 0.0, %v2166
        %v2168 = vpop.f32.mrb[0].mxu0
        %v2169 = vadd.f32 0.0, %v2168
        %2170 = vmatprep.mubr.f32.mxu0 0.0
        %v2171 = vand.u32 %v1521, 4294901760
        %v2172 = vsub.f32 %v1521, %v2171
        %v2173 = vand.u32 %v2172, 4294901760
        %v2174 = vsub.f32 %v2172, %v2173
        %v2175 = vand.u32 %v2174, 4294901760
        %2176 = vmatmul.mubr.f32.gmra.mrb[0].mxu0 %v2175
        %v2177 = vpop.f32.mrb[0].mxu0
        %v2178 = vadd.f32 0.0, %v2177
        %v2179 = vpop.f32.mrb[0].mxu0
        %v2180 = vadd.f32 0.0, %v2179
        %2181 = vdwg.mxu0
        %v2182 = vsub.f32 %v396, %v396
        %v2183 = vand.u32 %v2182, 4294901760
        %v2184 = vsub.f32 %v2182, %v2183
        %v2185 = vand.u32 %v2184, 4294901760
        %2186 = vmatprep.subr.mxu0 %v2185
        %v2187 = vsub.f32 %v395, %v395
        %v2188 = vand.u32 %v2187, 4294901760
        %v2189 = vsub.f32 %v2187, %v2188
        %v2190 = vand.u32 %v2189, 4294901760
        %2191 = vmatpush1.msra.mxu0 %v2190
        %v2192 = vsub.f32 %v400, %v400
        %v2193 = vand.u32 %v2192, 4294901760
        %v2194 = vsub.f32 %v2192, %v2193
        %v2195 = vand.u32 %v2194, 4294901760
        %2196 = vmatprep.subr.mxu0 %v2195
        %v2197 = vsub.f32 %v399, %v399
        %v2198 = vand.u32 %v2197, 4294901760
        %v2199 = vsub.f32 %v2197, %v2198
        %v2200 = vand.u32 %v2199, 4294901760
        %2201 = vmatpush1.msra.mxu0 %v2200
        %v2202 = vsub.f32 %v404, %v404
        %v2203 = vand.u32 %v2202, 4294901760
        %v2204 = vsub.f32 %v2202, %v2203
        %v2205 = vand.u32 %v2204, 4294901760
        %2206 = vmatprep.subr.mxu0 %v2205
        %v2207 = vsub.f32 %v403, %v403
        %v2208 = vand.u32 %v2207, 4294901760
        %v2209 = vsub.f32 %v2207, %v2208
        %v2210 = vand.u32 %v2209, 4294901760
        %2211 = vmatpush1.msra.mxu0 %v2210
        %v2212 = vsub.f32 %v408, %v408
        %v2213 = vand.u32 %v2212, 4294901760
        %v2214 = vsub.f32 %v2212, %v2213
        %v2215 = vand.u32 %v2214, 4294901760
        %2216 = vmatprep.subr.mxu0 %v2215
        %v2217 = vsub.f32 %v407, %v407
        %v2218 = vand.u32 %v2217, 4294901760
        %v2219 = vsub.f32 %v2217, %v2218
        %v2220 = vand.u32 %v2219, 4294901760
        %2221 = vmatpush1.msra.mxu0 %v2220
        %v2222 = vsub.f32 %v412, %v412
        %v2223 = vand.u32 %v2222, 4294901760
        %v2224 = vsub.f32 %v2222, %v2223
        %v2225 = vand.u32 %v2224, 4294901760
        %2226 = vmatprep.subr.mxu0 %v2225
        %v2227 = vsub.f32 %v411, %v411
        %v2228 = vand.u32 %v2227, 4294901760
        %v2229 = vsub.f32 %v2227, %v2228
        %v2230 = vand.u32 %v2229, 4294901760
        %2231 = vmatpush1.msra.mxu0 %v2230
        %v2232 = vsub.f32 %v416, %v416
        %v2233 = vand.u32 %v2232, 4294901760
        %v2234 = vsub.f32 %v2232, %v2233
        %v2235 = vand.u32 %v2234, 4294901760
        %2236 = vmatprep.subr.mxu0 %v2235
        %v2237 = vsub.f32 %v415, %v415
        %v2238 = vand.u32 %v2237, 4294901760
        %v2239 = vsub.f32 %v2237, %v2238
        %v2240 = vand.u32 %v2239, 4294901760
        %2241 = vmatpush1.msra.mxu0 %v2240
        %2242 = vmatprep.subr.mxu0 0.0
        %2243 = vmatpush1.msra.mxu0 0.0
        %2244 = vmatprep.subr.mxu0 0.0
        %2245 = vmatpush1.msra.mxu0 0.0
        %2246 = vmatprep.subr.mxu0 0.0
        %2247 = vmatpush1.msra.mxu0 0.0
        %2248 = vmatprep.subr.mxu0 0.0
        %2249 = vmatpush1.msra.mxu0 0.0
        %2250 = vmatprep.subr.mxu0 0.0
        %2251 = vmatpush1.msra.mxu0 0.0
        %2252 = vmatprep.subr.mxu0 0.0
        %2253 = vmatpush1.msra.mxu0 0.0
        %2254 = vmatprep.subr.mxu0 0.0
        %2255 = vmatpush1.msra.mxu0 0.0
        %2256 = vmatprep.subr.mxu0 0.0
        %2257 = vmatpush1.msra.mxu0 0.0
        %2258 = vmatprep.subr.mxu0 0.0
        %2259 = vmatpush1.msra.mxu0 0.0
        %2260 = vmatprep.subr.mxu0 0.0
        %2261 = vmatpush1.msra.mxu0 0.0
        %2262 = vmatprep.subr.mxu0 0.0
        %2263 = vmatpush1.msra.mxu0 0.0
        %2264 = vmatprep.subr.mxu0 0.0
        %2265 = vmatpush1.msra.mxu0 0.0
        %2266 = vmatprep.subr.mxu0 0.0
        %2267 = vmatpush1.msra.mxu0 0.0
        %2268 = vmatprep.subr.mxu0 0.0
        %2269 = vmatpush1.msra.mxu0 0.0
        %2270 = vmatprep.subr.mxu0 0.0
        %2271 = vmatpush1.msra.mxu0 0.0
        %2272 = vmatprep.subr.mxu0 0.0
        %2273 = vmatpush1.msra.mxu0 0.0
        %2274 = vmatprep.subr.mxu0 0.0
        %2275 = vmatpush1.msra.mxu0 0.0
        %2276 = vmatprep.subr.mxu0 0.0
        %2277 = vmatpush1.msra.mxu0 0.0
        %2278 = vmatprep.subr.mxu0 0.0
        %2279 = vmatpush1.msra.mxu0 0.0
        %2280 = vmatprep.subr.mxu0 0.0
        %2281 = vmatpush1.msra.mxu0 0.0
        %2282 = vmatprep.subr.mxu0 0.0
        %2283 = vmatpush1.msra.mxu0 0.0
        %2284 = vmatprep.subr.mxu0 0.0
        %2285 = vmatpush1.msra.mxu0 0.0
        %2286 = vmatprep.subr.mxu0 0.0
        %2287 = vmatpush1.msra.mxu0 0.0
        %2288 = vmatprep.subr.mxu0 0.0
        %2289 = vmatpush1.msra.mxu0 0.0
        %2290 = vmatprep.subr.mxu0 0.0
        %2291 = vmatpush1.msra.mxu0 0.0
        %2292 = vmatprep.subr.mxu0 0.0
        %2293 = vmatpush1.msra.mxu0 0.0
        %2294 = vmatprep.mubr.f32.mxu0 0.0
        %v2295 = vand.u32 %v1518, 4294901760
        %2296 = vmatmul.mubr.f32.gmra.mrb[0].mxu0 %v2295
        %v2297 = vpop.f32.mrb[0].mxu0
        %v2298 = vadd.f32 %v2167, %v2297
        %v2299 = vpop.f32.mrb[0].mxu0
        %v2300 = vadd.f32 %v2169, %v2299
        %2301 = vmatprep.mubr.f32.mxu0 0.0
        %v2302 = vand.u32 %v1521, 4294901760
        %2303 = vmatmul.mubr.f32.gmra.mrb[0].mxu0 %v2302
        %v2304 = vpop.f32.mrb[0].mxu0
        %v2305 = vadd.f32 %v2178, %v2304
        %v2306 = vpop.f32.mrb[0].mxu0
        %v2307 = vadd.f32 %v2180, %v2306
        %2308 = vdwg.mxu0
        %v2309 = vsub.f32 %v396, %v396
        %2310 = vmatprep.subr.mxu0 %v2309
        %v2311 = vsub.f32 %v395, %v395
        %2312 = vmatpush1.msra.mxu0 %v2311
        %v2313 = vsub.f32 %v400, %v400
        %2314 = vmatprep.subr.mxu0 %v2313
        %v2315 = vsub.f32 %v399, %v399
        %2316 = vmatpush1.msra.mxu0 %v2315
        %v2317 = vsub.f32 %v404, %v404
        %2318 = vmatprep.subr.mxu0 %v2317
        %v2319 = vsub.f32 %v403, %v403
        %2320 = vmatpush1.msra.mxu0 %v2319
        %v2321 = vsub.f32 %v408, %v408
        %2322 = vmatprep.subr.mxu0 %v2321
        %v2323 = vsub.f32 %v407, %v407
        %2324 = vmatpush1.msra.mxu0 %v2323
        %v2325 = vsub.f32 %v412, %v412
        %2326 = vmatprep.subr.mxu0 %v2325
        %v2327 = vsub.f32 %v411, %v411
        %2328 = vmatpush1.msra.mxu0 %v2327
        %v2329 = vsub.f32 %v416, %v416
        %2330 = vmatprep.subr.mxu0 %v2329
        %v2331 = vsub.f32 %v415, %v415
        %2332 = vmatpush1.msra.mxu0 %v2331
        %2333 = vmatprep.subr.mxu0 0.0
        %2334 = vmatpush1.msra.mxu0 0.0
        %2335 = vmatprep.subr.mxu0 0.0
        %2336 = vmatpush1.msra.mxu0 0.0
        %2337 = vmatprep.subr.mxu0 0.0
        %2338 = vmatpush1.msra.mxu0 0.0
        %2339 = vmatprep.subr.mxu0 0.0
        %2340 = vmatpush1.msra.mxu0 0.0
        %2341 = vmatprep.subr.mxu0 0.0
        %2342 = vmatpush1.msra.mxu0 0.0
        %2343 = vmatprep.subr.mxu0 0.0
        %2344 = vmatpush1.msra.mxu0 0.0
        %2345 = vmatprep.subr.mxu0 0.0
        %2346 = vmatpush1.msra.mxu0 0.0
        %2347 = vmatprep.subr.mxu0 0.0
        %2348 = vmatpush1.msra.mxu0 0.0
        %2349 = vmatprep.subr.mxu0 0.0
        %2350 = vmatpush1.msra.mxu0 0.0
        %2351 = vmatprep.subr.mxu0 0.0
        %2352 = vmatpush1.msra.mxu0 0.0
        %2353 = vmatprep.subr.mxu0 0.0
        %2354 = vmatpush1.msra.mxu0 0.0
        %2355 = vmatprep.subr.mxu0 0.0
        %2356 = vmatpush1.msra.mxu0 0.0
        %2357 = vmatprep.subr.mxu0 0.0
        %2358 = vmatpush1.msra.mxu0 0.0
        %2359 = vmatprep.subr.mxu0 0.0
        %2360 = vmatpush1.msra.mxu0 0.0
        %2361 = vmatprep.subr.mxu0 0.0
        %2362 = vmatpush1.msra.mxu0 0.0
        %2363 = vmatprep.subr.mxu0 0.0
        %2364 = vmatpush1.msra.mxu0 0.0
        %2365 = vmatprep.subr.mxu0 0.0
        %2366 = vmatpush1.msra.mxu0 0.0
        %2367 = vmatprep.subr.mxu0 0.0
        %2368 = vmatpush1.msra.mxu0 0.0
        %2369 = vmatprep.subr.mxu0 0.0
        %2370 = vmatpush1.msra.mxu0 0.0
        %2371 = vmatprep.subr.mxu0 0.0
        %2372 = vmatpush1.msra.mxu0 0.0
        %2373 = vmatprep.subr.mxu0 0.0
        %2374 = vmatpush1.msra.mxu0 0.0
        %2375 = vmatprep.subr.mxu0 0.0
        %2376 = vmatpush1.msra.mxu0 0.0
        %2377 = vmatprep.subr.mxu0 0.0
        %2378 = vmatpush1.msra.mxu0 0.0
        %2379 = vmatprep.subr.mxu0 0.0
        %2380 = vmatpush1.msra.mxu0 0.0
        %2381 = vmatprep.subr.mxu0 0.0
        %2382 = vmatpush1.msra.mxu0 0.0
        %2383 = vmatprep.subr.mxu0 0.0
        %2384 = vmatpush1.msra.mxu0 0.0
        %2385 = vmatprep.mubr.f32.mxu0 0.0
        %v2386 = vand.u32 %v1518, 4294901760
        %v2387 = vsub.f32 %v1518, %v2386
        %2388 = vmatmul.mubr.f32.gmra.mrb[0].mxu0 %v2387
        %v2389 = vpop.f32.mrb[0].mxu0
        %v2390 = vadd.f32 %v2298, %v2389
        %v2391 = vpop.f32.mrb[0].mxu0
        %v2392 = vadd.f32 %v2300, %v2391
        %2393 = vmatprep.mubr.f32.mxu0 0.0
        %v2394 = vand.u32 %v1521, 4294901760
        %v2395 = vsub.f32 %v1521, %v2394
        %2396 = vmatmul.mubr.f32.gmra.mrb[0].mxu0 %v2395
        %v2397 = vpop.f32.mrb[0].mxu0
        %v2398 = vadd.f32 %v2305, %v2397
        %v2399 = vpop.f32.mrb[0].mxu0
        %v2400 = vadd.f32 %v2307, %v2399
        %2401 = vdwg.mxu0
        %2402 = vmatprep.subr.mxu0 %v396
        %2403 = vmatpush1.msra.mxu0 %v395
        %2404 = vmatprep.subr.mxu0 %v400
        %2405 = vmatpush1.msra.mxu0 %v399
        %2406 = vmatprep.subr.mxu0 %v404
        %2407 = vmatpush1.msra.mxu0 %v403
        %2408 = vmatprep.subr.mxu0 %v408
        %2409 = vmatpush1.msra.mxu0 %v407
        %2410 = vmatprep.subr.mxu0 %v412
        %2411 = vmatpush1.msra.mxu0 %v411
        %2412 = vmatprep.subr.mxu0 %v416
        %2413 = vmatpush1.msra.mxu0 %v415
        %2414 = vmatprep.subr.mxu0 0.0
        %2415 = vmatpush1.msra.mxu0 0.0
        %2416 = vmatprep.subr.mxu0 0.0
        %2417 = vmatpush1.msra.mxu0 0.0
        %2418 = vmatprep.subr.mxu0 0.0
        %2419 = vmatpush1.msra.mxu0 0.0
        %2420 = vmatprep.subr.mxu0 0.0
        %2421 = vmatpush1.msra.mxu0 0.0
        %2422 = vmatprep.subr.mxu0 0.0
        %2423 = vmatpush1.msra.mxu0 0.0
        %2424 = vmatprep.subr.mxu0 0.0
        %2425 = vmatpush1.msra.mxu0 0.0
        %2426 = vmatprep.subr.mxu0 0.0
        %2427 = vmatpush1.msra.mxu0 0.0
        %2428 = vmatprep.subr.mxu0 0.0
        %2429 = vmatpush1.msra.mxu0 0.0
        %2430 = vmatprep.subr.mxu0 0.0
        %2431 = vmatpush1.msra.mxu0 0.0
        %2432 = vmatprep.subr.mxu0 0.0
        %2433 = vmatpush1.msra.mxu0 0.0
        %2434 = vmatprep.subr.mxu0 0.0
        %2435 = vmatpush1.msra.mxu0 0.0
        %2436 = vmatprep.subr.mxu0 0.0
        %2437 = vmatpush1.msra.mxu0 0.0
        %2438 = vmatprep.subr.mxu0 0.0
        %2439 = vmatpush1.msra.mxu0 0.0
        %2440 = vmatprep.subr.mxu0 0.0
        %2441 = vmatpush1.msra.mxu0 0.0
        %2442 = vmatprep.subr.mxu0 0.0
        %2443 = vmatpush1.msra.mxu0 0.0
        %2444 = vmatprep.subr.mxu0 0.0
        %2445 = vmatpush1.msra.mxu0 0.0
        %2446 = vmatprep.subr.mxu0 0.0
        %2447 = vmatpush1.msra.mxu0 0.0
        %2448 = vmatprep.subr.mxu0 0.0
        %2449 = vmatpush1.msra.mxu0 0.0
        %2450 = vmatprep.subr.mxu0 0.0
        %2451 = vmatpush1.msra.mxu0 0.0
        %2452 = vmatprep.subr.mxu0 0.0
        %2453 = vmatpush1.msra.mxu0 0.0
        %2454 = vmatprep.subr.mxu0 0.0
        %2455 = vmatpush1.msra.mxu0 0.0
        %2456 = vmatprep.subr.mxu0 0.0
        %2457 = vmatpush1.msra.mxu0 0.0
        %2458 = vmatprep.subr.mxu0 0.0
        %2459 = vmatpush1.msra.mxu0 0.0
        %2460 = vmatprep.subr.mxu0 0.0
        %2461 = vmatpush1.msra.mxu0 0.0
        %2462 = vmatprep.subr.mxu0 0.0
        %2463 = vmatpush1.msra.mxu0 0.0
        %2464 = vmatprep.subr.mxu0 0.0
        %2465 = vmatpush1.msra.mxu0 0.0
        %2466 = vmatprep.mubr.f32.mxu0 0.0
        %v2467 = vand.u32 %v1518, 4294901760
        %v2468 = vsub.f32 %v1518, %v2467
        %v2469 = vand.u32 %v2468, 4294901760
        %2470 = vmatmul.mubr.f32.gmra.mrb[0].mxu0 %v2469
        %v2471 = vpop.f32.mrb[0].mxu0
        %v2472 = vadd.f32 %v2390, %v2471
        %v2473 = vpop.f32.mrb[0].mxu0
        %v2474 = vadd.f32 %v2392, %v2473
        %2475 = vmatprep.mubr.f32.mxu0 0.0
        %v2476 = vand.u32 %v1521, 4294901760
        %v2477 = vsub.f32 %v1521, %v2476
        %v2478 = vand.u32 %v2477, 4294901760
        %2479 = vmatmul.mubr.f32.gmra.mrb[0].mxu0 %v2478
        %v2480 = vpop.f32.mrb[0].mxu0
        %v2481 = vadd.f32 %v2398, %v2480
        %v2482 = vpop.f32.mrb[0].mxu0
        %v2483 = vadd.f32 %v2400, %v2482
        %2484 = vdwg.mxu0
        %v2485 = vsub.f32 %v396, %v396
        %v2486 = vand.u32 %v2485, 4294901760
        %2487 = vmatprep.subr.mxu0 %v2486
        %v2488 = vsub.f32 %v395, %v395
        %v2489 = vand.u32 %v2488, 4294901760
        %2490 = vmatpush1.msra.mxu0 %v2489
        %v2491 = vsub.f32 %v400, %v400
        %v2492 = vand.u32 %v2491, 4294901760
        %2493 = vmatprep.subr.mxu0 %v2492
        %v2494 = vsub.f32 %v399, %v399
        %v2495 = vand.u32 %v2494, 4294901760
        %2496 = vmatpush1.msra.mxu0 %v2495
        %v2497 = vsub.f32 %v404, %v404
        %v2498 = vand.u32 %v2497, 4294901760
        %2499 = vmatprep.subr.mxu0 %v2498
        %v2500 = vsub.f32 %v403, %v403
        %v2501 = vand.u32 %v2500, 4294901760
        %2502 = vmatpush1.msra.mxu0 %v2501
        %v2503 = vsub.f32 %v408, %v408
        %v2504 = vand.u32 %v2503, 4294901760
        %2505 = vmatprep.subr.mxu0 %v2504
        %v2506 = vsub.f32 %v407, %v407
        %v2507 = vand.u32 %v2506, 4294901760
        %2508 = vmatpush1.msra.mxu0 %v2507
        %v2509 = vsub.f32 %v412, %v412
        %v2510 = vand.u32 %v2509, 4294901760
        %2511 = vmatprep.subr.mxu0 %v2510
        %v2512 = vsub.f32 %v411, %v411
        %v2513 = vand.u32 %v2512, 4294901760
        %2514 = vmatpush1.msra.mxu0 %v2513
        %v2515 = vsub.f32 %v416, %v416
        %v2516 = vand.u32 %v2515, 4294901760
        %2517 = vmatprep.subr.mxu0 %v2516
        %v2518 = vsub.f32 %v415, %v415
        %v2519 = vand.u32 %v2518, 4294901760
        %2520 = vmatpush1.msra.mxu0 %v2519
        %2521 = vmatprep.subr.mxu0 0.0
        %2522 = vmatpush1.msra.mxu0 0.0
        %2523 = vmatprep.subr.mxu0 0.0
        %2524 = vmatpush1.msra.mxu0 0.0
        %2525 = vmatprep.subr.mxu0 0.0
        %2526 = vmatpush1.msra.mxu0 0.0
        %2527 = vmatprep.subr.mxu0 0.0
        %2528 = vmatpush1.msra.mxu0 0.0
        %2529 = vmatprep.subr.mxu0 0.0
        %2530 = vmatpush1.msra.mxu0 0.0
        %2531 = vmatprep.subr.mxu0 0.0
        %2532 = vmatpush1.msra.mxu0 0.0
        %2533 = vmatprep.subr.mxu0 0.0
        %2534 = vmatpush1.msra.mxu0 0.0
        %2535 = vmatprep.subr.mxu0 0.0
        %2536 = vmatpush1.msra.mxu0 0.0
        %2537 = vmatprep.subr.mxu0 0.0
        %2538 = vmatpush1.msra.mxu0 0.0
        %2539 = vmatprep.subr.mxu0 0.0
        %2540 = vmatpush1.msra.mxu0 0.0
        %2541 = vmatprep.subr.mxu0 0.0
        %2542 = vmatpush1.msra.mxu0 0.0
        %2543 = vmatprep.subr.mxu0 0.0
        %2544 = vmatpush1.msra.mxu0 0.0
        %2545 = vmatprep.subr.mxu0 0.0
        %2546 = vmatpush1.msra.mxu0 0.0
        %2547 = vmatprep.subr.mxu0 0.0
        %2548 = vmatpush1.msra.mxu0 0.0
        %2549 = vmatprep.subr.mxu0 0.0
        %2550 = vmatpush1.msra.mxu0 0.0
        %2551 = vmatprep.subr.mxu0 0.0
        %2552 = vmatpush1.msra.mxu0 0.0
        %2553 = vmatprep.subr.mxu0 0.0
        %2554 = vmatpush1.msra.mxu0 0.0
        %2555 = vmatprep.subr.mxu0 0.0
        %2556 = vmatpush1.msra.mxu0 0.0
        %2557 = vmatprep.subr.mxu0 0.0
        %2558 = vmatpush1.msra.mxu0 0.0
        %2559 = vmatprep.subr.mxu0 0.0
        %2560 = vmatpush1.msra.mxu0 0.0
        %2561 = vmatprep.subr.mxu0 0.0
        %2562 = vmatpush1.msra.mxu0 0.0
        %2563 = vmatprep.subr.mxu0 0.0
        %2564 = vmatpush1.msra.mxu0 0.0
        %2565 = vmatprep.subr.mxu0 0.0
        %2566 = vmatpush1.msra.mxu0 0.0
        %2567 = vmatprep.subr.mxu0 0.0
        %2568 = vmatpush1.msra.mxu0 0.0
        %2569 = vmatprep.subr.mxu0 0.0
        %2570 = vmatpush1.msra.mxu0 0.0
        %2571 = vmatprep.subr.mxu0 0.0
        %2572 = vmatpush1.msra.mxu0 0.0
        %2573 = vmatprep.mubr.f32.mxu0 0.0
        %v2574 = vand.u32 %v1518, 4294901760
        %2575 = vmatmul.mubr.f32.gmra.mrb[0].mxu0 %v2574
        %v2576 = vpop.f32.mrb[0].mxu0
        %v2577 = vadd.f32 %v2472, %v2576
        %v2578 = vpop.f32.mrb[0].mxu0
        %v2579 = vadd.f32 %v2474, %v2578
        %2580 = vmatprep.mubr.f32.mxu0 0.0
        %v2581 = vand.u32 %v1521, 4294901760
        %2582 = vmatmul.mubr.f32.gmra.mrb[0].mxu0 %v2581
        %v2583 = vpop.f32.mrb[0].mxu0
        %v2584 = vadd.f32 %v2481, %v2583
        %v2585 = vpop.f32.mrb[0].mxu0
        %v2586 = vadd.f32 %v2483, %v2585
        %2587 = vdwg.mxu0
        %2588 = vmatprep.subr.mxu0 %v396
        %2589 = vmatpush1.msra.mxu0 %v395
        %2590 = vmatprep.subr.mxu0 %v400
        %2591 = vmatpush1.msra.mxu0 %v399
        %2592 = vmatprep.subr.mxu0 %v404
        %2593 = vmatpush1.msra.mxu0 %v403
        %2594 = vmatprep.subr.mxu0 %v408
        %2595 = vmatpush1.msra.mxu0 %v407
        %2596 = vmatprep.subr.mxu0 %v412
        %2597 = vmatpush1.msra.mxu0 %v411
        %2598 = vmatprep.subr.mxu0 %v416
        %2599 = vmatpush1.msra.mxu0 %v415
        %2600 = vmatprep.subr.mxu0 0.0
        %2601 = vmatpush1.msra.mxu0 0.0
        %2602 = vmatprep.subr.mxu0 0.0
        %2603 = vmatpush1.msra.mxu0 0.0
        %2604 = vmatprep.subr.mxu0 0.0
        %2605 = vmatpush1.msra.mxu0 0.0
        %2606 = vmatprep.subr.mxu0 0.0
        %2607 = vmatpush1.msra.mxu0 0.0
        %2608 = vmatprep.subr.mxu0 0.0
        %2609 = vmatpush1.msra.mxu0 0.0
        %2610 = vmatprep.subr.mxu0 0.0
        %2611 = vmatpush1.msra.mxu0 0.0
        %2612 = vmatprep.subr.mxu0 0.0
        %2613 = vmatpush1.msra.mxu0 0.0
        %2614 = vmatprep.subr.mxu0 0.0
        %2615 = vmatpush1.msra.mxu0 0.0
        %2616 = vmatprep.subr.mxu0 0.0
        %2617 = vmatpush1.msra.mxu0 0.0
        %2618 = vmatprep.subr.mxu0 0.0
        %2619 = vmatpush1.msra.mxu0 0.0
        %2620 = vmatprep.subr.mxu0 0.0
        %2621 = vmatpush1.msra.mxu0 0.0
        %2622 = vmatprep.subr.mxu0 0.0
        %2623 = vmatpush1.msra.mxu0 0.0
        %2624 = vmatprep.subr.mxu0 0.0
        %2625 = vmatpush1.msra.mxu0 0.0
        %2626 = vmatprep.subr.mxu0 0.0
        %2627 = vmatpush1.msra.mxu0 0.0
        %2628 = vmatprep.subr.mxu0 0.0
        %2629 = vmatpush1.msra.mxu0 0.0
        %2630 = vmatprep.subr.mxu0 0.0
        %2631 = vmatpush1.msra.mxu0 0.0
        %2632 = vmatprep.subr.mxu0 0.0
        %2633 = vmatpush1.msra.mxu0 0.0
        %2634 = vmatprep.subr.mxu0 0.0
        %2635 = vmatpush1.msra.mxu0 0.0
        %2636 = vmatprep.subr.mxu0 0.0
        %2637 = vmatpush1.msra.mxu0 0.0
        %2638 = vmatprep.subr.mxu0 0.0
        %2639 = vmatpush1.msra.mxu0 0.0
        %2640 = vmatprep.subr.mxu0 0.0
        %2641 = vmatpush1.msra.mxu0 0.0
        %2642 = vmatprep.subr.mxu0 0.0
        %2643 = vmatpush1.msra.mxu0 0.0
        %2644 = vmatprep.subr.mxu0 0.0
        %2645 = vmatpush1.msra.mxu0 0.0
        %2646 = vmatprep.subr.mxu0 0.0
        %2647 = vmatpush1.msra.mxu0 0.0
        %2648 = vmatprep.subr.mxu0 0.0
        %2649 = vmatpush1.msra.mxu0 0.0
        %2650 = vmatprep.subr.mxu0 0.0
        %2651 = vmatpush1.msra.mxu0 0.0
        %2652 = vmatprep.mubr.f32.mxu0 0.0
        %v2653 = vand.u32 %v1518, 4294901760
        %2654 = vmatmul.mubr.f32.gmra.mrb[0].mxu0 %v2653
        %v2655 = vpop.f32.mrb[0].mxu0
        %v2656 = vadd.f32 %v2577, %v2655
        %v2657 = vpop.f32.mrb[0].mxu0
        %v2658 = vadd.f32 %v2579, %v2657
        %2659 = vmatprep.mubr.f32.mxu0 0.0
        %v2660 = vand.u32 %v1521, 4294901760
        %2661 = vmatmul.mubr.f32.gmra.mrb[0].mxu0 %v2660
        %v2662 = vpop.f32.mrb[0].mxu0
        %v2663 = vadd.f32 %v2584, %v2662
        %v2664 = vpop.f32.mrb[0].mxu0
        %v2665 = vadd.f32 %v2586, %v2664
        %2666 = vdwg.mxu0
        %v2667 = vmul.f32 %v959, %v2084
        %v2668 = vmul.f32 %v961, %v2086
        %v2669 = vmul.f32 %v1503, %v2656
        %v2670 = vmul.f32 %v1505, %v2658
        %v2671 = vld [vmem:[%s6] sm:$0xff]
        %v2672 = vld [vmem:[%s6 + $0x8] sm:$0xff]
        %v2673 = vld [vmem:[%s6 + $0x10] sm:$0xff]
        %v2674 = vld [vmem:[%s6 + $0x18] sm:$0xff]
        %v2675 = vld [vmem:[%s6 + $0x20] sm:$0xff]
        %v2676 = vld [vmem:[%s6 + $0x28] sm:$0xff]
        %v2677 = vld [vmem:[%s6 + $0x30] sm:$0xff]
        %v2678 = vld [vmem:[%s6 + $0x38] sm:$0xff]
        %v2679 = vld [vmem:[%s6 + $0x40] sm:$0xff]
        %v2680 = vld [vmem:[%s6 + $0x48] sm:$0x1]
        %v2681 = vld [vmem:[%s4] sm:$0xff]
        %v2682 = vld [vmem:[%s4 + $0x8] sm:$0xff]
        %v2683 = vld [vmem:[%s4 + $0x10] sm:$0xff]
        %v2684 = vld [vmem:[%s4 + $0x18] sm:$0xff]
        %2686 = vset.pattern.permute.xlu0 0
        %2687 = vperm.xlu0 %2686, %v2671
        %v2688 = vpop.permute.xlu0 %2687
        %2691 = vset.pattern.permute.xlu0 0
        %2692 = vperm.xlu0 %2691, %v2672
        %v2693 = vpop.permute.xlu0 %2692
        %2696 = vset.pattern.permute.xlu0 0
        %2697 = vperm.xlu0 %2696, %v2673
        %v2698 = vpop.permute.xlu0 %2697
        %2701 = vset.pattern.permute.xlu0 0
        %2702 = vperm.xlu0 %2701, %v2674
        %v2703 = vpop.permute.xlu0 %2702
        %vm2705 = vcmask 130048
        %v2707 = vsel %vm2705, %v2681, 0
        %v2710 = vsel %vm2705, %v2682, 0
        %v2713 = vsel %vm2705, %v2683, 0
        %v2716 = vsel %vm2705, %v2684, 0
        %v2718 = vand.u32 %v968, 4294901760
        %2719 = vmatprep.subr.mxu0 %v2718
        %v2720 = vand.u32 %v966, 4294901760
        %2721 = vmatpush1.msra.mxu0 %v2720
        %v2722 = vand.u32 %v2093, 4294901760
        %2723 = vmatprep.subr.mxu0 %v2722
        %v2724 = vand.u32 %v2091, 4294901760
        %2725 = vmatpush1.msra.mxu0 %v2724
        %2726 = vmatprep.subr.mxu0 0.0
        %2727 = vmatpush1.msra.mxu0 0.0
        %2728 = vmatprep.subr.mxu0 0.0
        %2729 = vmatpush1.msra.mxu0 0.0
        %2730 = vmatprep.subr.mxu0 0.0
        %2731 = vmatpush1.msra.mxu0 0.0
        %2732 = vmatprep.subr.mxu0 0.0
        %2733 = vmatpush1.msra.mxu0 0.0
        %2734 = vmatprep.subr.mxu0 0.0
        %2735 = vmatpush1.msra.mxu0 0.0
        %2736 = vmatprep.subr.mxu0 0.0
        %2737 = vmatpush1.msra.mxu0 0.0
        %2738 = vmatprep.subr.mxu0 0.0
        %2739 = vmatpush1.msra.mxu0 0.0
        %2740 = vmatprep.subr.mxu0 0.0
        %2741 = vmatpush1.msra.mxu0 0.0
        %2742 = vmatprep.subr.mxu0 0.0
        %2743 = vmatpush1.msra.mxu0 0.0
        %2744 = vmatprep.subr.mxu0 0.0
        %2745 = vmatpush1.msra.mxu0 0.0
        %2746 = vmatprep.subr.mxu0 0.0
        %2747 = vmatpush1.msra.mxu0 0.0
        %2748 = vmatprep.subr.mxu0 0.0
        %2749 = vmatpush1.msra.mxu0 0.0
        %2750 = vmatprep.subr.mxu0 0.0
        %2751 = vmatpush1.msra.mxu0 0.0
        %2752 = vmatprep.subr.mxu0 0.0
        %2753 = vmatpush1.msra.mxu0 0.0
        %2754 = vmatprep.subr.mxu0 0.0
        %2755 = vmatpush1.msra.mxu0 0.0
        %2756 = vmatprep.subr.mxu0 0.0
        %2757 = vmatpush1.msra.mxu0 0.0
        %2758 = vmatprep.subr.mxu0 0.0
        %2759 = vmatpush1.msra.mxu0 0.0
        %2760 = vmatprep.subr.mxu0 0.0
        %2761 = vmatpush1.msra.mxu0 0.0
        %2762 = vmatprep.subr.mxu0 0.0
        %2763 = vmatpush1.msra.mxu0 0.0
        %2764 = vmatprep.subr.mxu0 0.0
        %2765 = vmatpush1.msra.mxu0 0.0
        %2766 = vmatprep.subr.mxu0 0.0
        %2767 = vmatpush1.msra.mxu0 0.0
        %2768 = vmatprep.subr.mxu0 0.0
        %2769 = vmatpush1.msra.mxu0 0.0
        %2770 = vmatprep.subr.mxu0 0.0
        %2771 = vmatpush1.msra.mxu0 0.0
        %2772 = vmatprep.subr.mxu0 0.0
        %2773 = vmatpush1.msra.mxu0 0.0
        %2774 = vmatprep.subr.mxu0 0.0
        %2775 = vmatpush1.msra.mxu0 0.0
        %2776 = vmatprep.subr.mxu0 0.0
        %2777 = vmatpush1.msra.mxu0 0.0
        %2778 = vmatprep.subr.mxu0 0.0
        %2779 = vmatpush1.msra.mxu0 0.0
        %2780 = vmatprep.subr.mxu0 0.0
        %2781 = vmatpush1.msra.mxu0 0.0
        %2782 = vmatprep.subr.mxu0 0.0
        %2783 = vmatpush1.msra.mxu0 0.0
        %2784 = vmatprep.subr.mxu0 0.0
        %2785 = vmatpush1.msra.mxu0 0.0
        %2786 = vmatprep.mubr.f32.mxu0 0.0
        %v2787 = vand.u32 %v2707, 4294901760
        %v2788 = vsub.f32 %v2707, %v2787
        %v2789 = vand.u32 %v2788, 4294901760
        %v2790 = vsub.f32 %v2788, %v2789
        %v2791 = vand.u32 %v2790, 4294901760
        %2792 = vmatmul.mubr.f32.gmra.mrb[0].mxu0 %v2791
        %v2793 = vpop.f32.mrb[0].mxu0
        %v2794 = vadd.f32 %v2688, %v2793
        %v2795 = vpop.f32.mrb[0].mxu0
        %v2796 = vadd.f32 %v2688, %v2795
        %2797 = vmatprep.mubr.f32.mxu0 0.0
        %v2798 = vand.u32 %v2710, 4294901760
        %v2799 = vsub.f32 %v2710, %v2798
        %v2800 = vand.u32 %v2799, 4294901760
        %v2801 = vsub.f32 %v2799, %v2800
        %v2802 = vand.u32 %v2801, 4294901760
        %2803 = vmatmul.mubr.f32.gmra.mrb[0].mxu0 %v2802
        %v2804 = vpop.f32.mrb[0].mxu0
        %v2805 = vadd.f32 %v2693, %v2804
        %v2806 = vpop.f32.mrb[0].mxu0
        %v2807 = vadd.f32 %v2693, %v2806
        %2808 = vmatprep.mubr.f32.mxu0 0.0
        %v2809 = vand.u32 %v2713, 4294901760
        %v2810 = vsub.f32 %v2713, %v2809
        %v2811 = vand.u32 %v2810, 4294901760
        %v2812 = vsub.f32 %v2810, %v2811
        %v2813 = vand.u32 %v2812, 4294901760
        %2814 = vmatmul.mubr.f32.gmra.mrb[0].mxu0 %v2813
        %v2815 = vpop.f32.mrb[0].mxu0
        %v2816 = vadd.f32 %v2698, %v2815
        %v2817 = vpop.f32.mrb[0].mxu0
        %v2818 = vadd.f32 %v2698, %v2817
        %2819 = vmatprep.mubr.f32.mxu0 0.0
        %v2820 = vand.u32 %v2716, 4294901760
        %v2821 = vsub.f32 %v2716, %v2820
        %v2822 = vand.u32 %v2821, 4294901760
        %v2823 = vsub.f32 %v2821, %v2822
        %v2824 = vand.u32 %v2823, 4294901760
        %2825 = vmatmul.mubr.f32.gmra.mrb[0].mxu0 %v2824
        %v2826 = vpop.f32.mrb[0].mxu0
        %v2827 = vadd.f32 %v2703, %v2826
        %v2828 = vpop.f32.mrb[0].mxu0
        %v2829 = vadd.f32 %v2703, %v2828
        %2830 = vdwg.mxu0
        %v2831 = vand.u32 %v968, 4294901760
        %v2832 = vsub.f32 %v968, %v2831
        %v2833 = vand.u32 %v2832, 4294901760
        %v2834 = vsub.f32 %v2832, %v2833
        %v2835 = vand.u32 %v2834, 4294901760
        %2836 = vmatprep.subr.mxu0 %v2835
        %v2837 = vand.u32 %v966, 4294901760
        %v2838 = vsub.f32 %v966, %v2837
        %v2839 = vand.u32 %v2838, 4294901760
        %v2840 = vsub.f32 %v2838, %v2839
        %v2841 = vand.u32 %v2840, 4294901760
        %2842 = vmatpush1.msra.mxu0 %v2841
        %v2843 = vand.u32 %v2093, 4294901760
        %v2844 = vsub.f32 %v2093, %v2843
        %v2845 = vand.u32 %v2844, 4294901760
        %v2846 = vsub.f32 %v2844, %v2845
        %v2847 = vand.u32 %v2846, 4294901760
        %2848 = vmatprep.subr.mxu0 %v2847
        %v2849 = vand.u32 %v2091, 4294901760
        %v2850 = vsub.f32 %v2091, %v2849
        %v2851 = vand.u32 %v2850, 4294901760
        %v2852 = vsub.f32 %v2850, %v2851
        %v2853 = vand.u32 %v2852, 4294901760
        %2854 = vmatpush1.msra.mxu0 %v2853
        %2855 = vmatprep.subr.mxu0 0.0
        %2856 = vmatpush1.msra.mxu0 0.0
        %2857 = vmatprep.subr.mxu0 0.0
        %2858 = vmatpush1.msra.mxu0 0.0
        %2859 = vmatprep.subr.mxu0 0.0
        %2860 = vmatpush1.msra.mxu0 0.0
        %2861 = vmatprep.subr.mxu0 0.0
        %2862 = vmatpush1.msra.mxu0 0.0
        %2863 = vmatprep.subr.mxu0 0.0
        %2864 = vmatpush1.msra.mxu0 0.0
        %2865 = vmatprep.subr.mxu0 0.0
        %2866 = vmatpush1.msra.mxu0 0.0
        %2867 = vmatprep.subr.mxu0 0.0
        %2868 = vmatpush1.msra.mxu0 0.0
        %2869 = vmatprep.subr.mxu0 0.0
        %2870 = vmatpush1.msra.mxu0 0.0
        %2871 = vmatprep.subr.mxu0 0.0
        %2872 = vmatpush1.msra.mxu0 0.0
        %2873 = vmatprep.subr.mxu0 0.0
        %2874 = vmatpush1.msra.mxu0 0.0
        %2875 = vmatprep.subr.mxu0 0.0
        %2876 = vmatpush1.msra.mxu0 0.0
        %2877 = vmatprep.subr.mxu0 0.0
        %2878 = vmatpush1.msra.mxu0 0.0
        %2879 = vmatprep.subr.mxu0 0.0
        %2880 = vmatpush1.msra.mxu0 0.0
        %2881 = vmatprep.subr.mxu0 0.0
        %2882 = vmatpush1.msra.mxu0 0.0
        %2883 = vmatprep.subr.mxu0 0.0
        %2884 = vmatpush1.msra.mxu0 0.0
        %2885 = vmatprep.subr.mxu0 0.0
        %2886 = vmatpush1.msra.mxu0 0.0
        %2887 = vmatprep.subr.mxu0 0.0
        %2888 = vmatpush1.msra.mxu0 0.0
        %2889 = vmatprep.subr.mxu0 0.0
        %2890 = vmatpush1.msra.mxu0 0.0
        %2891 = vmatprep.subr.mxu0 0.0
        %2892 = vmatpush1.msra.mxu0 0.0
        %2893 = vmatprep.subr.mxu0 0.0
        %2894 = vmatpush1.msra.mxu0 0.0
        %2895 = vmatprep.subr.mxu0 0.0
        %2896 = vmatpush1.msra.mxu0 0.0
        %2897 = vmatprep.subr.mxu0 0.0
        %2898 = vmatpush1.msra.mxu0 0.0
        %2899 = vmatprep.subr.mxu0 0.0
        %2900 = vmatpush1.msra.mxu0 0.0
        %2901 = vmatprep.subr.mxu0 0.0
        %2902 = vmatpush1.msra.mxu0 0.0
        %2903 = vmatprep.subr.mxu0 0.0
        %2904 = vmatpush1.msra.mxu0 0.0
        %2905 = vmatprep.subr.mxu0 0.0
        %2906 = vmatpush1.msra.mxu0 0.0
        %2907 = vmatprep.subr.mxu0 0.0
        %2908 = vmatpush1.msra.mxu0 0.0
        %2909 = vmatprep.subr.mxu0 0.0
        %2910 = vmatpush1.msra.mxu0 0.0
        %2911 = vmatprep.subr.mxu0 0.0
        %2912 = vmatpush1.msra.mxu0 0.0
        %2913 = vmatprep.subr.mxu0 0.0
        %2914 = vmatpush1.msra.mxu0 0.0
        %2915 = vmatprep.mubr.f32.mxu0 0.0
        %v2916 = vand.u32 %v2707, 4294901760
        %2917 = vmatmul.mubr.f32.gmra.mrb[0].mxu0 %v2916
        %v2918 = vpop.f32.mrb[0].mxu0
        %v2919 = vadd.f32 %v2794, %v2918
        %v2920 = vpop.f32.mrb[0].mxu0
        %v2921 = vadd.f32 %v2796, %v2920
        %2922 = vmatprep.mubr.f32.mxu0 0.0
        %v2923 = vand.u32 %v2710, 4294901760
        %2924 = vmatmul.mubr.f32.gmra.mrb[0].mxu0 %v2923
        %v2925 = vpop.f32.mrb[0].mxu0
        %v2926 = vadd.f32 %v2805, %v2925
        %v2927 = vpop.f32.mrb[0].mxu0
        %v2928 = vadd.f32 %v2807, %v2927
        %2929 = vmatprep.mubr.f32.mxu0 0.0
        %v2930 = vand.u32 %v2713, 4294901760
        %2931 = vmatmul.mubr.f32.gmra.mrb[0].mxu0 %v2930
        %v2932 = vpop.f32.mrb[0].mxu0
        %v2933 = vadd.f32 %v2816, %v2932
        %v2934 = vpop.f32.mrb[0].mxu0
        %v2935 = vadd.f32 %v2818, %v2934
        %2936 = vmatprep.mubr.f32.mxu0 0.0
        %v2937 = vand.u32 %v2716, 4294901760
        %2938 = vmatmul.mubr.f32.gmra.mrb[0].mxu0 %v2937
        %v2939 = vpop.f32.mrb[0].mxu0
        %v2940 = vadd.f32 %v2827, %v2939
        %v2941 = vpop.f32.mrb[0].mxu0
        %v2942 = vadd.f32 %v2829, %v2941
        %2943 = vdwg.mxu0
        %v2944 = vand.u32 %v968, 4294901760
        %v2945 = vsub.f32 %v968, %v2944
        %2946 = vmatprep.subr.mxu0 %v2945
        %v2947 = vand.u32 %v966, 4294901760
        %v2948 = vsub.f32 %v966, %v2947
        %2949 = vmatpush1.msra.mxu0 %v2948
        %v2950 = vand.u32 %v2093, 4294901760
        %v2951 = vsub.f32 %v2093, %v2950
        %2952 = vmatprep.subr.mxu0 %v2951
        %v2953 = vand.u32 %v2091, 4294901760
        %v2954 = vsub.f32 %v2091, %v2953
        %2955 = vmatpush1.msra.mxu0 %v2954
        %2956 = vmatprep.subr.mxu0 0.0
        %2957 = vmatpush1.msra.mxu0 0.0
        %2958 = vmatprep.subr.mxu0 0.0
        %2959 = vmatpush1.msra.mxu0 0.0
        %2960 = vmatprep.subr.mxu0 0.0
        %2961 = vmatpush1.msra.mxu0 0.0
        %2962 = vmatprep.subr.mxu0 0.0
        %2963 = vmatpush1.msra.mxu0 0.0
        %2964 = vmatprep.subr.mxu0 0.0
        %2965 = vmatpush1.msra.mxu0 0.0
        %2966 = vmatprep.subr.mxu0 0.0
        %2967 = vmatpush1.msra.mxu0 0.0
        %2968 = vmatprep.subr.mxu0 0.0
        %2969 = vmatpush1.msra.mxu0 0.0
        %2970 = vmatprep.subr.mxu0 0.0
        %2971 = vmatpush1.msra.mxu0 0.0
        %2972 = vmatprep.subr.mxu0 0.0
        %2973 = vmatpush1.msra.mxu0 0.0
        %2974 = vmatprep.subr.mxu0 0.0
        %2975 = vmatpush1.msra.mxu0 0.0
        %2976 = vmatprep.subr.mxu0 0.0
        %2977 = vmatpush1.msra.mxu0 0.0
        %2978 = vmatprep.subr.mxu0 0.0
        %2979 = vmatpush1.msra.mxu0 0.0
        %2980 = vmatprep.subr.mxu0 0.0
        %2981 = vmatpush1.msra.mxu0 0.0
        %2982 = vmatprep.subr.mxu0 0.0
        %2983 = vmatpush1.msra.mxu0 0.0
        %2984 = vmatprep.subr.mxu0 0.0
        %2985 = vmatpush1.msra.mxu0 0.0
        %2986 = vmatprep.subr.mxu0 0.0
        %2987 = vmatpush1.msra.mxu0 0.0
        %2988 = vmatprep.subr.mxu0 0.0
        %2989 = vmatpush1.msra.mxu0 0.0
        %2990 = vmatprep.subr.mxu0 0.0
        %2991 = vmatpush1.msra.mxu0 0.0
        %2992 = vmatprep.subr.mxu0 0.0
        %2993 = vmatpush1.msra.mxu0 0.0
        %2994 = vmatprep.subr.mxu0 0.0
        %2995 = vmatpush1.msra.mxu0 0.0
        %2996 = vmatprep.subr.mxu0 0.0
        %2997 = vmatpush1.msra.mxu0 0.0
        %2998 = vmatprep.subr.mxu0 0.0
        %2999 = vmatpush1.msra.mxu0 0.0
        %3000 = vmatprep.subr.mxu0 0.0
        %3001 = vmatpush1.msra.mxu0 0.0
        %3002 = vmatprep.subr.mxu0 0.0
        %3003 = vmatpush1.msra.mxu0 0.0
        %3004 = vmatprep.subr.mxu0 0.0
        %3005 = vmatpush1.msra.mxu0 0.0
        %3006 = vmatprep.subr.mxu0 0.0
        %3007 = vmatpush1.msra.mxu0 0.0
        %3008 = vmatprep.subr.mxu0 0.0
        %3009 = vmatpush1.msra.mxu0 0.0
        %3010 = vmatprep.subr.mxu0 0.0
        %3011 = vmatpush1.msra.mxu0 0.0
        %3012 = vmatprep.subr.mxu0 0.0
        %3013 = vmatpush1.msra.mxu0 0.0
        %3014 = vmatprep.subr.mxu0 0.0
        %3015 = vmatpush1.msra.mxu0 0.0
        %3016 = vmatprep.mubr.f32.mxu0 0.0
        %v3017 = vand.u32 %v2707, 4294901760
        %v3018 = vsub.f32 %v2707, %v3017
        %3019 = vmatmul.mubr.f32.gmra.mrb[0].mxu0 %v3018
        %v3020 = vpop.f32.mrb[0].mxu0
        %v3021 = vadd.f32 %v2919, %v3020
        %v3022 = vpop.f32.mrb[0].mxu0
        %v3023 = vadd.f32 %v2921, %v3022
        %3024 = vmatprep.mubr.f32.mxu0 0.0
        %v3025 = vand.u32 %v2710, 4294901760
        %v3026 = vsub.f32 %v2710, %v3025
        %3027 = vmatmul.mubr.f32.gmra.mrb[0].mxu0 %v3026
        %v3028 = vpop.f32.mrb[0].mxu0
        %v3029 = vadd.f32 %v2926, %v3028
        %v3030 = vpop.f32.mrb[0].mxu0
        %v3031 = vadd.f32 %v2928, %v3030
        %3032 = vmatprep.mubr.f32.mxu0 0.0
        %v3033 = vand.u32 %v2713, 4294901760
        %v3034 = vsub.f32 %v2713, %v3033
        %3035 = vmatmul.mubr.f32.gmra.mrb[0].mxu0 %v3034
        %v3036 = vpop.f32.mrb[0].mxu0
        %v3037 = vadd.f32 %v2933, %v3036
        %v3038 = vpop.f32.mrb[0].mxu0
        %v3039 = vadd.f32 %v2935, %v3038
        %3040 = vmatprep.mubr.f32.mxu0 0.0
        %v3041 = vand.u32 %v2716, 4294901760
        %v3042 = vsub.f32 %v2716, %v3041
        %3043 = vmatmul.mubr.f32.gmra.mrb[0].mxu0 %v3042
        %v3044 = vpop.f32.mrb[0].mxu0
        %v3045 = vadd.f32 %v2940, %v3044
        %v3046 = vpop.f32.mrb[0].mxu0
        %v3047 = vadd.f32 %v2942, %v3046
        %3048 = vdwg.mxu0
        %v3049 = vand.u32 %v968, 4294901760
        %3050 = vmatprep.subr.mxu0 %v3049
        %v3051 = vand.u32 %v966, 4294901760
        %3052 = vmatpush1.msra.mxu0 %v3051
        %v3053 = vand.u32 %v2093, 4294901760
        %3054 = vmatprep.subr.mxu0 %v3053
        %v3055 = vand.u32 %v2091, 4294901760
        %3056 = vmatpush1.msra.mxu0 %v3055
        %3057 = vmatprep.subr.mxu0 0.0
        %3058 = vmatpush1.msra.mxu0 0.0
        %3059 = vmatprep.subr.mxu0 0.0
        %3060 = vmatpush1.msra.mxu0 0.0
        %3061 = vmatprep.subr.mxu0 0.0
        %3062 = vmatpush1.msra.mxu0 0.0
        %3063 = vmatprep.subr.mxu0 0.0
        %3064 = vmatpush1.msra.mxu0 0.0
        %3065 = vmatprep.subr.mxu0 0.0
        %3066 = vmatpush1.msra.mxu0 0.0
        %3067 = vmatprep.subr.mxu0 0.0
        %3068 = vmatpush1.msra.mxu0 0.0
        %3069 = vmatprep.subr.mxu0 0.0
        %3070 = vmatpush1.msra.mxu0 0.0
        %3071 = vmatprep.subr.mxu0 0.0
        %3072 = vmatpush1.msra.mxu0 0.0
        %3073 = vmatprep.subr.mxu0 0.0
        %3074 = vmatpush1.msra.mxu0 0.0
        %3075 = vmatprep.subr.mxu0 0.0
        %3076 = vmatpush1.msra.mxu0 0.0
        %3077 = vmatprep.subr.mxu0 0.0
        %3078 = vmatpush1.msra.mxu0 0.0
        %3079 = vmatprep.subr.mxu0 0.0
        %3080 = vmatpush1.msra.mxu0 0.0
        %3081 = vmatprep.subr.mxu0 0.0
        %3082 = vmatpush1.msra.mxu0 0.0
        %3083 = vmatprep.subr.mxu0 0.0
        %3084 = vmatpush1.msra.mxu0 0.0
        %3085 = vmatprep.subr.mxu0 0.0
        %3086 = vmatpush1.msra.mxu0 0.0
        %3087 = vmatprep.subr.mxu0 0.0
        %3088 = vmatpush1.msra.mxu0 0.0
        %3089 = vmatprep.subr.mxu0 0.0
        %3090 = vmatpush1.msra.mxu0 0.0
        %3091 = vmatprep.subr.mxu0 0.0
        %3092 = vmatpush1.msra.mxu0 0.0
        %3093 = vmatprep.subr.mxu0 0.0
        %3094 = vmatpush1.msra.mxu0 0.0
        %3095 = vmatprep.subr.mxu0 0.0
        %3096 = vmatpush1.msra.mxu0 0.0
        %3097 = vmatprep.subr.mxu0 0.0
        %3098 = vmatpush1.msra.mxu0 0.0
        %3099 = vmatprep.subr.mxu0 0.0
        %3100 = vmatpush1.msra.mxu0 0.0
        %3101 = vmatprep.subr.mxu0 0.0
        %3102 = vmatpush1.msra.mxu0 0.0
        %3103 = vmatprep.subr.mxu0 0.0
        %3104 = vmatpush1.msra.mxu0 0.0
        %3105 = vmatprep.subr.mxu0 0.0
        %3106 = vmatpush1.msra.mxu0 0.0
        %3107 = vmatprep.subr.mxu0 0.0
        %3108 = vmatpush1.msra.mxu0 0.0
        %3109 = vmatprep.subr.mxu0 0.0
        %3110 = vmatpush1.msra.mxu0 0.0
        %3111 = vmatprep.subr.mxu0 0.0
        %3112 = vmatpush1.msra.mxu0 0.0
        %3113 = vmatprep.subr.mxu0 0.0
        %3114 = vmatpush1.msra.mxu0 0.0
        %3115 = vmatprep.subr.mxu0 0.0
        %3116 = vmatpush1.msra.mxu0 0.0
        %3117 = vmatprep.mubr.f32.mxu0 0.0
        %v3118 = vand.u32 %v2707, 4294901760
        %v3119 = vsub.f32 %v2707, %v3118
        %v3120 = vand.u32 %v3119, 4294901760
        %3121 = vmatmul.mubr.f32.gmra.mrb[0].mxu0 %v3120
        %v3122 = vpop.f32.mrb[0].mxu0
        %v3123 = vadd.f32 %v3021, %v3122
        %v3124 = vpop.f32.mrb[0].mxu0
        %v3125 = vadd.f32 %v3023, %v3124
        %3126 = vmatprep.mubr.f32.mxu0 0.0
        %v3127 = vand.u32 %v2710, 4294901760
        %v3128 = vsub.f32 %v2710, %v3127
        %v3129 = vand.u32 %v3128, 4294901760
        %3130 = vmatmul.mubr.f32.gmra.mrb[0].mxu0 %v3129
        %v3131 = vpop.f32.mrb[0].mxu0
        %v3132 = vadd.f32 %v3029, %v3131
        %v3133 = vpop.f32.mrb[0].mxu0
        %v3134 = vadd.f32 %v3031, %v3133
        %3135 = vmatprep.mubr.f32.mxu0 0.0
        %v3136 = vand.u32 %v2713, 4294901760
        %v3137 = vsub.f32 %v2713, %v3136
        %v3138 = vand.u32 %v3137, 4294901760
        %3139 = vmatmul.mubr.f32.gmra.mrb[0].mxu0 %v3138
        %v3140 = vpop.f32.mrb[0].mxu0
        %v3141 = vadd.f32 %v3037, %v3140
        %v3142 = vpop.f32.mrb[0].mxu0
        %v3143 = vadd.f32 %v3039, %v3142
        %3144 = vmatprep.mubr.f32.mxu0 0.0
        %v3145 = vand.u32 %v2716, 4294901760
        %v3146 = vsub.f32 %v2716, %v3145
        %v3147 = vand.u32 %v3146, 4294901760
        %3148 = vmatmul.mubr.f32.gmra.mrb[0].mxu0 %v3147
        %v3149 = vpop.f32.mrb[0].mxu0
        %v3150 = vadd.f32 %v3045, %v3149
        %v3151 = vpop.f32.mrb[0].mxu0
        %v3152 = vadd.f32 %v3047, %v3151
        %3153 = vdwg.mxu0
        %v3154 = vand.u32 %v968, 4294901760
        %v3155 = vsub.f32 %v968, %v3154
        %v3156 = vand.u32 %v3155, 4294901760
        %3157 = vmatprep.subr.mxu0 %v3156
        %v3158 = vand.u32 %v966, 4294901760
        %v3159 = vsub.f32 %v966, %v3158
        %v3160 = vand.u32 %v3159, 4294901760
        %3161 = vmatpush1.msra.mxu0 %v3160
        %v3162 = vand.u32 %v2093, 4294901760
        %v3163 = vsub.f32 %v2093, %v3162
        %v3164 = vand.u32 %v3163, 4294901760
        %3165 = vmatprep.subr.mxu0 %v3164
        %v3166 = vand.u32 %v2091, 4294901760
        %v3167 = vsub.f32 %v2091, %v3166
        %v3168 = vand.u32 %v3167, 4294901760
        %3169 = vmatpush1.msra.mxu0 %v3168
        %3170 = vmatprep.subr.mxu0 0.0
        %3171 = vmatpush1.msra.mxu0 0.0
        %3172 = vmatprep.subr.mxu0 0.0
        %3173 = vmatpush1.msra.mxu0 0.0
        %3174 = vmatprep.subr.mxu0 0.0
        %3175 = vmatpush1.msra.mxu0 0.0
        %3176 = vmatprep.subr.mxu0 0.0
        %3177 = vmatpush1.msra.mxu0 0.0
        %3178 = vmatprep.subr.mxu0 0.0
        %3179 = vmatpush1.msra.mxu0 0.0
        %3180 = vmatprep.subr.mxu0 0.0
        %3181 = vmatpush1.msra.mxu0 0.0
        %3182 = vmatprep.subr.mxu0 0.0
        %3183 = vmatpush1.msra.mxu0 0.0
        %3184 = vmatprep.subr.mxu0 0.0
        %3185 = vmatpush1.msra.mxu0 0.0
        %3186 = vmatprep.subr.mxu0 0.0
        %3187 = vmatpush1.msra.mxu0 0.0
        %3188 = vmatprep.subr.mxu0 0.0
        %3189 = vmatpush1.msra.mxu0 0.0
        %3190 = vmatprep.subr.mxu0 0.0
        %3191 = vmatpush1.msra.mxu0 0.0
        %3192 = vmatprep.subr.mxu0 0.0
        %3193 = vmatpush1.msra.mxu0 0.0
        %3194 = vmatprep.subr.mxu0 0.0
        %3195 = vmatpush1.msra.mxu0 0.0
        %3196 = vmatprep.subr.mxu0 0.0
        %3197 = vmatpush1.msra.mxu0 0.0
        %3198 = vmatprep.subr.mxu0 0.0
        %3199 = vmatpush1.msra.mxu0 0.0
        %3200 = vmatprep.subr.mxu0 0.0
        %3201 = vmatpush1.msra.mxu0 0.0
        %3202 = vmatprep.subr.mxu0 0.0
        %3203 = vmatpush1.msra.mxu0 0.0
        %3204 = vmatprep.subr.mxu0 0.0
        %3205 = vmatpush1.msra.mxu0 0.0
        %3206 = vmatprep.subr.mxu0 0.0
        %3207 = vmatpush1.msra.mxu0 0.0
        %3208 = vmatprep.subr.mxu0 0.0
        %3209 = vmatpush1.msra.mxu0 0.0
        %3210 = vmatprep.subr.mxu0 0.0
        %3211 = vmatpush1.msra.mxu0 0.0
        %3212 = vmatprep.subr.mxu0 0.0
        %3213 = vmatpush1.msra.mxu0 0.0
        %3214 = vmatprep.subr.mxu0 0.0
        %3215 = vmatpush1.msra.mxu0 0.0
        %3216 = vmatprep.subr.mxu0 0.0
        %3217 = vmatpush1.msra.mxu0 0.0
        %3218 = vmatprep.subr.mxu0 0.0
        %3219 = vmatpush1.msra.mxu0 0.0
        %3220 = vmatprep.subr.mxu0 0.0
        %3221 = vmatpush1.msra.mxu0 0.0
        %3222 = vmatprep.subr.mxu0 0.0
        %3223 = vmatpush1.msra.mxu0 0.0
        %3224 = vmatprep.subr.mxu0 0.0
        %3225 = vmatpush1.msra.mxu0 0.0
        %3226 = vmatprep.subr.mxu0 0.0
        %3227 = vmatpush1.msra.mxu0 0.0
        %3228 = vmatprep.subr.mxu0 0.0
        %3229 = vmatpush1.msra.mxu0 0.0
        %3230 = vmatprep.mubr.f32.mxu0 0.0
        %v3231 = vand.u32 %v2707, 4294901760
        %3232 = vmatmul.mubr.f32.gmra.mrb[0].mxu0 %v3231
        %v3233 = vpop.f32.mrb[0].mxu0
        %v3234 = vadd.f32 %v3123, %v3233
        %v3235 = vpop.f32.mrb[0].mxu0
        %v3236 = vadd.f32 %v3125, %v3235
        %3237 = vmatprep.mubr.f32.mxu0 0.0
        %v3238 = vand.u32 %v2710, 4294901760
        %3239 = vmatmul.mubr.f32.gmra.mrb[0].mxu0 %v3238
        %v3240 = vpop.f32.mrb[0].mxu0
        %v3241 = vadd.f32 %v3132, %v3240
        %v3242 = vpop.f32.mrb[0].mxu0
        %v3243 = vadd.f32 %v3134, %v3242
        %3244 = vmatprep.mubr.f32.mxu0 0.0
        %v3245 = vand.u32 %v2713, 4294901760
        %3246 = vmatmul.mubr.f32.gmra.mrb[0].mxu0 %v3245
        %v3247 = vpop.f32.mrb[0].mxu0
        %v3248 = vadd.f32 %v3141, %v3247
        %v3249 = vpop.f32.mrb[0].mxu0
        %v3250 = vadd.f32 %v3143, %v3249
        %3251 = vmatprep.mubr.f32.mxu0 0.0
        %v3252 = vand.u32 %v2716, 4294901760
        %3253 = vmatmul.mubr.f32.gmra.mrb[0].mxu0 %v3252
        %v3254 = vpop.f32.mrb[0].mxu0
        %v3255 = vadd.f32 %v3150, %v3254
        %v3256 = vpop.f32.mrb[0].mxu0
        %v3257 = vadd.f32 %v3152, %v3256
        %3258 = vdwg.mxu0
        %v3259 = vand.u32 %v968, 4294901760
        %3260 = vmatprep.subr.mxu0 %v3259
        %v3261 = vand.u32 %v966, 4294901760
        %3262 = vmatpush1.msra.mxu0 %v3261
        %v3263 = vand.u32 %v2093, 4294901760
        %3264 = vmatprep.subr.mxu0 %v3263
        %v3265 = vand.u32 %v2091, 4294901760
        %3266 = vmatpush1.msra.mxu0 %v3265
        %3267 = vmatprep.subr.mxu0 0.0
        %3268 = vmatpush1.msra.mxu0 0.0
        %3269 = vmatprep.subr.mxu0 0.0
        %3270 = vmatpush1.msra.mxu0 0.0
        %3271 = vmatprep.subr.mxu0 0.0
        %3272 = vmatpush1.msra.mxu0 0.0
        %3273 = vmatprep.subr.mxu0 0.0
        %3274 = vmatpush1.msra.mxu0 0.0
        %3275 = vmatprep.subr.mxu0 0.0
        %3276 = vmatpush1.msra.mxu0 0.0
        %3277 = vmatprep.subr.mxu0 0.0
        %3278 = vmatpush1.msra.mxu0 0.0
        %3279 = vmatprep.subr.mxu0 0.0
        %3280 = vmatpush1.msra.mxu0 0.0
        %3281 = vmatprep.subr.mxu0 0.0
        %3282 = vmatpush1.msra.mxu0 0.0
        %3283 = vmatprep.subr.mxu0 0.0
        %3284 = vmatpush1.msra.mxu0 0.0
        %3285 = vmatprep.subr.mxu0 0.0
        %3286 = vmatpush1.msra.mxu0 0.0
        %3287 = vmatprep.subr.mxu0 0.0
        %3288 = vmatpush1.msra.mxu0 0.0
        %3289 = vmatprep.subr.mxu0 0.0
        %3290 = vmatpush1.msra.mxu0 0.0
        %3291 = vmatprep.subr.mxu0 0.0
        %3292 = vmatpush1.msra.mxu0 0.0
        %3293 = vmatprep.subr.mxu0 0.0
        %3294 = vmatpush1.msra.mxu0 0.0
        %3295 = vmatprep.subr.mxu0 0.0
        %3296 = vmatpush1.msra.mxu0 0.0
        %3297 = vmatprep.subr.mxu0 0.0
        %3298 = vmatpush1.msra.mxu0 0.0
        %3299 = vmatprep.subr.mxu0 0.0
        %3300 = vmatpush1.msra.mxu0 0.0
        %3301 = vmatprep.subr.mxu0 0.0
        %3302 = vmatpush1.msra.mxu0 0.0
        %3303 = vmatprep.subr.mxu0 0.0
        %3304 = vmatpush1.msra.mxu0 0.0
        %3305 = vmatprep.subr.mxu0 0.0
        %3306 = vmatpush1.msra.mxu0 0.0
        %3307 = vmatprep.subr.mxu0 0.0
        %3308 = vmatpush1.msra.mxu0 0.0
        %3309 = vmatprep.subr.mxu0 0.0
        %3310 = vmatpush1.msra.mxu0 0.0
        %3311 = vmatprep.subr.mxu0 0.0
        %3312 = vmatpush1.msra.mxu0 0.0
        %3313 = vmatprep.subr.mxu0 0.0
        %3314 = vmatpush1.msra.mxu0 0.0
        %3315 = vmatprep.subr.mxu0 0.0
        %3316 = vmatpush1.msra.mxu0 0.0
        %3317 = vmatprep.subr.mxu0 0.0
        %3318 = vmatpush1.msra.mxu0 0.0
        %3319 = vmatprep.subr.mxu0 0.0
        %3320 = vmatpush1.msra.mxu0 0.0
        %3321 = vmatprep.subr.mxu0 0.0
        %3322 = vmatpush1.msra.mxu0 0.0
        %3323 = vmatprep.subr.mxu0 0.0
        %3324 = vmatpush1.msra.mxu0 0.0
        %3325 = vmatprep.subr.mxu0 0.0
        %3326 = vmatpush1.msra.mxu0 0.0
        %3327 = vmatprep.mubr.f32.mxu0 0.0
        %v3328 = vand.u32 %v2707, 4294901760
        %3329 = vmatmul.mubr.f32.gmra.mrb[0].mxu0 %v3328
        %v3330 = vpop.f32.mrb[0].mxu0
        %v3331 = vadd.f32 %v3234, %v3330
        %v3332 = vpop.f32.mrb[0].mxu0
        %v3333 = vadd.f32 %v3236, %v3332
        %3334 = vmatprep.mubr.f32.mxu0 0.0
        %v3335 = vand.u32 %v2710, 4294901760
        %3336 = vmatmul.mubr.f32.gmra.mrb[0].mxu0 %v3335
        %v3337 = vpop.f32.mrb[0].mxu0
        %v3338 = vadd.f32 %v3241, %v3337
        %v3339 = vpop.f32.mrb[0].mxu0
        %v3340 = vadd.f32 %v3243, %v3339
        %3341 = vmatprep.mubr.f32.mxu0 0.0
        %v3342 = vand.u32 %v2713, 4294901760
        %3343 = vmatmul.mubr.f32.gmra.mrb[0].mxu0 %v3342
        %v3344 = vpop.f32.mrb[0].mxu0
        %v3345 = vadd.f32 %v3248, %v3344
        %v3346 = vpop.f32.mrb[0].mxu0
        %v3347 = vadd.f32 %v3250, %v3346
        %3348 = vmatprep.mubr.f32.mxu0 0.0
        %v3349 = vand.u32 %v2716, 4294901760
        %3350 = vmatmul.mubr.f32.gmra.mrb[0].mxu0 %v3349
        %v3351 = vpop.f32.mrb[0].mxu0
        %v3352 = vadd.f32 %v3255, %v3351
        %v3353 = vpop.f32.mrb[0].mxu0
        %v3354 = vadd.f32 %v3257, %v3353
        %3355 = vdwg.mxu0
        %v3356 = vand.u32 %v1512, 4294901760
        %3357 = vmatprep.subr.mxu0 %v3356
        %v3358 = vand.u32 %v1510, 4294901760
        %3359 = vmatpush1.msra.mxu0 %v3358
        %v3360 = vand.u32 %v2665, 4294901760
        %3361 = vmatprep.subr.mxu0 %v3360
        %v3362 = vand.u32 %v2663, 4294901760
        %3363 = vmatpush1.msra.mxu0 %v3362
        %3364 = vmatprep.subr.mxu0 0.0
        %3365 = vmatpush1.msra.mxu0 0.0
        %3366 = vmatprep.subr.mxu0 0.0
        %3367 = vmatpush1.msra.mxu0 0.0
        %3368 = vmatprep.subr.mxu0 0.0
        %3369 = vmatpush1.msra.mxu0 0.0
        %3370 = vmatprep.subr.mxu0 0.0
        %3371 = vmatpush1.msra.mxu0 0.0
        %3372 = vmatprep.subr.mxu0 0.0
        %3373 = vmatpush1.msra.mxu0 0.0
        %3374 = vmatprep.subr.mxu0 0.0
        %3375 = vmatpush1.msra.mxu0 0.0
        %3376 = vmatprep.subr.mxu0 0.0
        %3377 = vmatpush1.msra.mxu0 0.0
        %3378 = vmatprep.subr.mxu0 0.0
        %3379 = vmatpush1.msra.mxu0 0.0
        %3380 = vmatprep.subr.mxu0 0.0
        %3381 = vmatpush1.msra.mxu0 0.0
        %3382 = vmatprep.subr.mxu0 0.0
        %3383 = vmatpush1.msra.mxu0 0.0
        %3384 = vmatprep.subr.mxu0 0.0
        %3385 = vmatpush1.msra.mxu0 0.0
        %3386 = vmatprep.subr.mxu0 0.0
        %3387 = vmatpush1.msra.mxu0 0.0
        %3388 = vmatprep.subr.mxu0 0.0
        %3389 = vmatpush1.msra.mxu0 0.0
        %3390 = vmatprep.subr.mxu0 0.0
        %3391 = vmatpush1.msra.mxu0 0.0
        %3392 = vmatprep.subr.mxu0 0.0
        %3393 = vmatpush1.msra.mxu0 0.0
        %3394 = vmatprep.subr.mxu0 0.0
        %3395 = vmatpush1.msra.mxu0 0.0
        %3396 = vmatprep.subr.mxu0 0.0
        %3397 = vmatpush1.msra.mxu0 0.0
        %3398 = vmatprep.subr.mxu0 0.0
        %3399 = vmatpush1.msra.mxu0 0.0
        %3400 = vmatprep.subr.mxu0 0.0
        %3401 = vmatpush1.msra.mxu0 0.0
        %3402 = vmatprep.subr.mxu0 0.0
        %3403 = vmatpush1.msra.mxu0 0.0
        %3404 = vmatprep.subr.mxu0 0.0
        %3405 = vmatpush1.msra.mxu0 0.0
        %3406 = vmatprep.subr.mxu0 0.0
        %3407 = vmatpush1.msra.mxu0 0.0
        %3408 = vmatprep.subr.mxu0 0.0
        %3409 = vmatpush1.msra.mxu0 0.0
        %3410 = vmatprep.subr.mxu0 0.0
        %3411 = vmatpush1.msra.mxu0 0.0
        %3412 = vmatprep.subr.mxu0 0.0
        %3413 = vmatpush1.msra.mxu0 0.0
        %3414 = vmatprep.subr.mxu0 0.0
        %3415 = vmatpush1.msra.mxu0 0.0
        %3416 = vmatprep.subr.mxu0 0.0
        %3417 = vmatpush1.msra.mxu0 0.0
        %3418 = vmatprep.subr.mxu0 0.0
        %3419 = vmatpush1.msra.mxu0 0.0
        %3420 = vmatprep.subr.mxu0 0.0
        %3421 = vmatpush1.msra.mxu0 0.0
        %3422 = vmatprep.subr.mxu0 0.0
        %3423 = vmatpush1.msra.mxu0 0.0
        %3424 = vmatprep.mubr.f32.mxu0 0.0
        %v3425 = vand.u32 %v2707, 4294901760
        %v3426 = vsub.f32 %v2707, %v3425
        %v3427 = vand.u32 %v3426, 4294901760
        %v3428 = vsub.f32 %v3426, %v3427
        %v3429 = vand.u32 %v3428, 4294901760
        %3430 = vmatmul.mubr.f32.gmra.mrb[0].mxu0 %v3429
        %v3431 = vpop.f32.mrb[0].mxu0
        %v3432 = vadd.f32 %v2688, %v3431
        %v3433 = vpop.f32.mrb[0].mxu0
        %v3434 = vadd.f32 %v2688, %v3433
        %3435 = vmatprep.mubr.f32.mxu0 0.0
        %v3436 = vand.u32 %v2710, 4294901760
        %v3437 = vsub.f32 %v2710, %v3436
        %v3438 = vand.u32 %v3437, 4294901760
        %v3439 = vsub.f32 %v3437, %v3438
        %v3440 = vand.u32 %v3439, 4294901760
        %3441 = vmatmul.mubr.f32.gmra.mrb[0].mxu0 %v3440
        %v3442 = vpop.f32.mrb[0].mxu0
        %v3443 = vadd.f32 %v2693, %v3442
        %v3444 = vpop.f32.mrb[0].mxu0
        %v3445 = vadd.f32 %v2693, %v3444
        %3446 = vmatprep.mubr.f32.mxu0 0.0
        %v3447 = vand.u32 %v2713, 4294901760
        %v3448 = vsub.f32 %v2713, %v3447
        %v3449 = vand.u32 %v3448, 4294901760
        %v3450 = vsub.f32 %v3448, %v3449
        %v3451 = vand.u32 %v3450, 4294901760
        %3452 = vmatmul.mubr.f32.gmra.mrb[0].mxu0 %v3451
        %v3453 = vpop.f32.mrb[0].mxu0
        %v3454 = vadd.f32 %v2698, %v3453
        %v3455 = vpop.f32.mrb[0].mxu0
        %v3456 = vadd.f32 %v2698, %v3455
        %3457 = vmatprep.mubr.f32.mxu0 0.0
        %v3458 = vand.u32 %v2716, 4294901760
        %v3459 = vsub.f32 %v2716, %v3458
        %v3460 = vand.u32 %v3459, 4294901760
        %v3461 = vsub.f32 %v3459, %v3460
        %v3462 = vand.u32 %v3461, 4294901760
        %3463 = vmatmul.mubr.f32.gmra.mrb[0].mxu0 %v3462
        %v3464 = vpop.f32.mrb[0].mxu0
        %v3465 = vadd.f32 %v2703, %v3464
        %v3466 = vpop.f32.mrb[0].mxu0
        %v3467 = vadd.f32 %v2703, %v3466
        %3468 = vdwg.mxu0
        %v3469 = vand.u32 %v1512, 4294901760
        %v3470 = vsub.f32 %v1512, %v3469
        %v3471 = vand.u32 %v3470, 4294901760
        %v3472 = vsub.f32 %v3470, %v3471
        %v3473 = vand.u32 %v3472, 4294901760
        %3474 = vmatprep.subr.mxu0 %v3473
        %v3475 = vand.u32 %v1510, 4294901760
        %v3476 = vsub.f32 %v1510, %v3475
        %v3477 = vand.u32 %v3476, 4294901760
        %v3478 = vsub.f32 %v3476, %v3477
        %v3479 = vand.u32 %v3478, 4294901760
        %3480 = vmatpush1.msra.mxu0 %v3479
        %v3481 = vand.u32 %v2665, 4294901760
        %v3482 = vsub.f32 %v2665, %v3481
        %v3483 = vand.u32 %v3482, 4294901760
        %v3484 = vsub.f32 %v3482, %v3483
        %v3485 = vand.u32 %v3484, 4294901760
        %3486 = vmatprep.subr.mxu0 %v3485
        %v3487 = vand.u32 %v2663, 4294901760
        %v3488 = vsub.f32 %v2663, %v3487
        %v3489 = vand.u32 %v3488, 4294901760
        %v3490 = vsub.f32 %v3488, %v3489
        %v3491 = vand.u32 %v3490, 4294901760
        %3492 = vmatpush1.msra.mxu0 %v3491
        %3493 = vmatprep.subr.mxu0 0.0
        %3494 = vmatpush1.msra.mxu0 0.0
        %3495 = vmatprep.subr.mxu0 0.0
        %3496 = vmatpush1.msra.mxu0 0.0
        %3497 = vmatprep.subr.mxu0 0.0
        %3498 = vmatpush1.msra.mxu0 0.0
        %3499 = vmatprep.subr.mxu0 0.0
        %3500 = vmatpush1.msra.mxu0 0.0
        %3501 = vmatprep.subr.mxu0 0.0
        %3502 = vmatpush1.msra.mxu0 0.0
        %3503 = vmatprep.subr.mxu0 0.0
        %3504 = vmatpush1.msra.mxu0 0.0
        %3505 = vmatprep.subr.mxu0 0.0
        %3506 = vmatpush1.msra.mxu0 0.0
        %3507 = vmatprep.subr.mxu0 0.0
        %3508 = vmatpush1.msra.mxu0 0.0
        %3509 = vmatprep.subr.mxu0 0.0
        %3510 = vmatpush1.msra.mxu0 0.0
        %3511 = vmatprep.subr.mxu0 0.0
        %3512 = vmatpush1.msra.mxu0 0.0
        %3513 = vmatprep.subr.mxu0 0.0
        %3514 = vmatpush1.msra.mxu0 0.0
        %3515 = vmatprep.subr.mxu0 0.0
        %3516 = vmatpush1.msra.mxu0 0.0
        %3517 = vmatprep.subr.mxu0 0.0
        %3518 = vmatpush1.msra.mxu0 0.0
        %3519 = vmatprep.subr.mxu0 0.0
        %3520 = vmatpush1.msra.mxu0 0.0
        %3521 = vmatprep.subr.mxu0 0.0
        %3522 = vmatpush1.msra.mxu0 0.0
        %3523 = vmatprep.subr.mxu0 0.0
        %3524 = vmatpush1.msra.mxu0 0.0
        %3525 = vmatprep.subr.mxu0 0.0
        %3526 = vmatpush1.msra.mxu0 0.0
        %3527 = vmatprep.subr.mxu0 0.0
        %3528 = vmatpush1.msra.mxu0 0.0
        %3529 = vmatprep.subr.mxu0 0.0
        %3530 = vmatpush1.msra.mxu0 0.0
        %3531 = vmatprep.subr.mxu0 0.0
        %3532 = vmatpush1.msra.mxu0 0.0
        %3533 = vmatprep.subr.mxu0 0.0
        %3534 = vmatpush1.msra.mxu0 0.0
        %3535 = vmatprep.subr.mxu0 0.0
        %3536 = vmatpush1.msra.mxu0 0.0
        %3537 = vmatprep.subr.mxu0 0.0
        %3538 = vmatpush1.msra.mxu0 0.0
        %3539 = vmatprep.subr.mxu0 0.0
        %3540 = vmatpush1.msra.mxu0 0.0
        %3541 = vmatprep.subr.mxu0 0.0
        %3542 = vmatpush1.msra.mxu0 0.0
        %3543 = vmatprep.subr.mxu0 0.0
        %3544 = vmatpush1.msra.mxu0 0.0
        %3545 = vmatprep.subr.mxu0 0.0
        %3546 = vmatpush1.msra.mxu0 0.0
        %3547 = vmatprep.subr.mxu0 0.0
        %3548 = vmatpush1.msra.mxu0 0.0
        %3549 = vmatprep.subr.mxu0 0.0
        %3550 = vmatpush1.msra.mxu0 0.0
        %3551 = vmatprep.subr.mxu0 0.0
        %3552 = vmatpush1.msra.mxu0 0.0
        %3553 = vmatprep.mubr.f32.mxu0 0.0
        %v3554 = vand.u32 %v2707, 4294901760
        %3555 = vmatmul.mubr.f32.gmra.mrb[0].mxu0 %v3554
        %v3556 = vpop.f32.mrb[0].mxu0
        %v3557 = vadd.f32 %v3432, %v3556
        %v3558 = vpop.f32.mrb[0].mxu0
        %v3559 = vadd.f32 %v3434, %v3558
        %3560 = vmatprep.mubr.f32.mxu0 0.0
        %v3561 = vand.u32 %v2710, 4294901760
        %3562 = vmatmul.mubr.f32.gmra.mrb[0].mxu0 %v3561
        %v3563 = vpop.f32.mrb[0].mxu0
        %v3564 = vadd.f32 %v3443, %v3563
        %v3565 = vpop.f32.mrb[0].mxu0
        %v3566 = vadd.f32 %v3445, %v3565
        %3567 = vmatprep.mubr.f32.mxu0 0.0
        %v3568 = vand.u32 %v2713, 4294901760
        %3569 = vmatmul.mubr.f32.gmra.mrb[0].mxu0 %v3568
        %v3570 = vpop.f32.mrb[0].mxu0
        %v3571 = vadd.f32 %v3454, %v3570
        %v3572 = vpop.f32.mrb[0].mxu0
        %v3573 = vadd.f32 %v3456, %v3572
        %3574 = vmatprep.mubr.f32.mxu0 0.0
        %v3575 = vand.u32 %v2716, 4294901760
        %3576 = vmatmul.mubr.f32.gmra.mrb[0].mxu0 %v3575
        %v3577 = vpop.f32.mrb[0].mxu0
        %v3578 = vadd.f32 %v3465, %v3577
        %v3579 = vpop.f32.mrb[0].mxu0
        %v3580 = vadd.f32 %v3467, %v3579
        %3581 = vdwg.mxu0
        %v3582 = vand.u32 %v1512, 4294901760
        %v3583 = vsub.f32 %v1512, %v3582
        %3584 = vmatprep.subr.mxu0 %v3583
        %v3585 = vand.u32 %v1510, 4294901760
        %v3586 = vsub.f32 %v1510, %v3585
        %3587 = vmatpush1.msra.mxu0 %v3586
        %v3588 = vand.u32 %v2665, 4294901760
        %v3589 = vsub.f32 %v2665, %v3588
        %3590 = vmatprep.subr.mxu0 %v3589
        %v3591 = vand.u32 %v2663, 4294901760
        %v3592 = vsub.f32 %v2663, %v3591
        %3593 = vmatpush1.msra.mxu0 %v3592
        %3594 = vmatprep.subr.mxu0 0.0
        %3595 = vmatpush1.msra.mxu0 0.0
        %3596 = vmatprep.subr.mxu0 0.0
        %3597 = vmatpush1.msra.mxu0 0.0
        %3598 = vmatprep.subr.mxu0 0.0
        %3599 = vmatpush1.msra.mxu0 0.0
        %3600 = vmatprep.subr.mxu0 0.0
        %3601 = vmatpush1.msra.mxu0 0.0
        %3602 = vmatprep.subr.mxu0 0.0
        %3603 = vmatpush1.msra.mxu0 0.0
        %3604 = vmatprep.subr.mxu0 0.0
        %3605 = vmatpush1.msra.mxu0 0.0
        %3606 = vmatprep.subr.mxu0 0.0
        %3607 = vmatpush1.msra.mxu0 0.0
        %3608 = vmatprep.subr.mxu0 0.0
        %3609 = vmatpush1.msra.mxu0 0.0
        %3610 = vmatprep.subr.mxu0 0.0
        %3611 = vmatpush1.msra.mxu0 0.0
        %3612 = vmatprep.subr.mxu0 0.0
        %3613 = vmatpush1.msra.mxu0 0.0
        %3614 = vmatprep.subr.mxu0 0.0
        %3615 = vmatpush1.msra.mxu0 0.0
        %3616 = vmatprep.subr.mxu0 0.0
        %3617 = vmatpush1.msra.mxu0 0.0
        %3618 = vmatprep.subr.mxu0 0.0
        %3619 = vmatpush1.msra.mxu0 0.0
        %3620 = vmatprep.subr.mxu0 0.0
        %3621 = vmatpush1.msra.mxu0 0.0
        %3622 = vmatprep.subr.mxu0 0.0
        %3623 = vmatpush1.msra.mxu0 0.0
        %3624 = vmatprep.subr.mxu0 0.0
        %3625 = vmatpush1.msra.mxu0 0.0
        %3626 = vmatprep.subr.mxu0 0.0
        %3627 = vmatpush1.msra.mxu0 0.0
        %3628 = vmatprep.subr.mxu0 0.0
        %3629 = vmatpush1.msra.mxu0 0.0
        %3630 = vmatprep.subr.mxu0 0.0
        %3631 = vmatpush1.msra.mxu0 0.0
        %3632 = vmatprep.subr.mxu0 0.0
        %3633 = vmatpush1.msra.mxu0 0.0
        %3634 = vmatprep.subr.mxu0 0.0
        %3635 = vmatpush1.msra.mxu0 0.0
        %3636 = vmatprep.subr.mxu0 0.0
        %3637 = vmatpush1.msra.mxu0 0.0
        %3638 = vmatprep.subr.mxu0 0.0
        %3639 = vmatpush1.msra.mxu0 0.0
        %3640 = vmatprep.subr.mxu0 0.0
        %3641 = vmatpush1.msra.mxu0 0.0
        %3642 = vmatprep.subr.mxu0 0.0
        %3643 = vmatpush1.msra.mxu0 0.0
        %3644 = vmatprep.subr.mxu0 0.0
        %3645 = vmatpush1.msra.mxu0 0.0
        %3646 = vmatprep.subr.mxu0 0.0
        %3647 = vmatpush1.msra.mxu0 0.0
        %3648 = vmatprep.subr.mxu0 0.0
        %3649 = vmatpush1.msra.mxu0 0.0
        %3650 = vmatprep.subr.mxu0 0.0
        %3651 = vmatpush1.msra.mxu0 0.0
        %3652 = vmatprep.subr.mxu0 0.0
        %3653 = vmatpush1.msra.mxu0 0.0
        %3654 = vmatprep.mubr.f32.mxu0 0.0
        %v3655 = vand.u32 %v2707, 4294901760
        %v3656 = vsub.f32 %v2707, %v3655
        %3657 = vmatmul.mubr.f32.gmra.mrb[0].mxu0 %v3656
        %v3658 = vpop.f32.mrb[0].mxu0
        %v3659 = vadd.f32 %v3557, %v3658
        %v3660 = vpop.f32.mrb[0].mxu0
        %v3661 = vadd.f32 %v3559, %v3660
        %3662 = vmatprep.mubr.f32.mxu0 0.0
        %v3663 = vand.u32 %v2710, 4294901760
        %v3664 = vsub.f32 %v2710, %v3663
        %3665 = vmatmul.mubr.f32.gmra.mrb[0].mxu0 %v3664
        %v3666 = vpop.f32.mrb[0].mxu0
        %v3667 = vadd.f32 %v3564, %v3666
        %v3668 = vpop.f32.mrb[0].mxu0
        %v3669 = vadd.f32 %v3566, %v3668
        %3670 = vmatprep.mubr.f32.mxu0 0.0
        %v3671 = vand.u32 %v2713, 4294901760
        %v3672 = vsub.f32 %v2713, %v3671
        %3673 = vmatmul.mubr.f32.gmra.mrb[0].mxu0 %v3672
        %v3674 = vpop.f32.mrb[0].mxu0
        %v3675 = vadd.f32 %v3571, %v3674
        %v3676 = vpop.f32.mrb[0].mxu0
        %v3677 = vadd.f32 %v3573, %v3676
        %3678 = vmatprep.mubr.f32.mxu0 0.0
        %v3679 = vand.u32 %v2716, 4294901760
        %v3680 = vsub.f32 %v2716, %v3679
        %3681 = vmatmul.mubr.f32.gmra.mrb[0].mxu0 %v3680
        %v3682 = vpop.f32.mrb[0].mxu0
        %v3683 = vadd.f32 %v3578, %v3682
        %v3684 = vpop.f32.mrb[0].mxu0
        %v3685 = vadd.f32 %v3580, %v3684
        %3686 = vdwg.mxu0
        %v3687 = vand.u32 %v1512, 4294901760
        %3688 = vmatprep.subr.mxu0 %v3687
        %v3689 = vand.u32 %v1510, 4294901760
        %3690 = vmatpush1.msra.mxu0 %v3689
        %v3691 = vand.u32 %v2665, 4294901760
        %3692 = vmatprep.subr.mxu0 %v3691
        %v3693 = vand.u32 %v2663, 4294901760
        %3694 = vmatpush1.msra.mxu0 %v3693
        %3695 = vmatprep.subr.mxu0 0.0
        %3696 = vmatpush1.msra.mxu0 0.0
        %3697 = vmatprep.subr.mxu0 0.0
        %3698 = vmatpush1.msra.mxu0 0.0
        %3699 = vmatprep.subr.mxu0 0.0
        %3700 = vmatpush1.msra.mxu0 0.0
        %3701 = vmatprep.subr.mxu0 0.0
        %3702 = vmatpush1.msra.mxu0 0.0
        %3703 = vmatprep.subr.mxu0 0.0
        %3704 = vmatpush1.msra.mxu0 0.0
        %3705 = vmatprep.subr.mxu0 0.0
        %3706 = vmatpush1.msra.mxu0 0.0
        %3707 = vmatprep.subr.mxu0 0.0
        %3708 = vmatpush1.msra.mxu0 0.0
        %3709 = vmatprep.subr.mxu0 0.0
        %3710 = vmatpush1.msra.mxu0 0.0
        %3711 = vmatprep.subr.mxu0 0.0
        %3712 = vmatpush1.msra.mxu0 0.0
        %3713 = vmatprep.subr.mxu0 0.0
        %3714 = vmatpush1.msra.mxu0 0.0
        %3715 = vmatprep.subr.mxu0 0.0
        %3716 = vmatpush1.msra.mxu0 0.0
        %3717 = vmatprep.subr.mxu0 0.0
        %3718 = vmatpush1.msra.mxu0 0.0
        %3719 = vmatprep.subr.mxu0 0.0
        %3720 = vmatpush1.msra.mxu0 0.0
        %3721 = vmatprep.subr.mxu0 0.0
        %3722 = vmatpush1.msra.mxu0 0.0
        %3723 = vmatprep.subr.mxu0 0.0
        %3724 = vmatpush1.msra.mxu0 0.0
        %3725 = vmatprep.subr.mxu0 0.0
        %3726 = vmatpush1.msra.mxu0 0.0
        %3727 = vmatprep.subr.mxu0 0.0
        %3728 = vmatpush1.msra.mxu0 0.0
        %3729 = vmatprep.subr.mxu0 0.0
        %3730 = vmatpush1.msra.mxu0 0.0
        %3731 = vmatprep.subr.mxu0 0.0
        %3732 = vmatpush1.msra.mxu0 0.0
        %3733 = vmatprep.subr.mxu0 0.0
        %3734 = vmatpush1.msra.mxu0 0.0
        %3735 = vmatprep.subr.mxu0 0.0
        %3736 = vmatpush1.msra.mxu0 0.0
        %3737 = vmatprep.subr.mxu0 0.0
        %3738 = vmatpush1.msra.mxu0 0.0
        %3739 = vmatprep.subr.mxu0 0.0
        %3740 = vmatpush1.msra.mxu0 0.0
        %3741 = vmatprep.subr.mxu0 0.0
        %3742 = vmatpush1.msra.mxu0 0.0
        %3743 = vmatprep.subr.mxu0 0.0
        %3744 = vmatpush1.msra.mxu0 0.0
        %3745 = vmatprep.subr.mxu0 0.0
        %3746 = vmatpush1.msra.mxu0 0.0
        %3747 = vmatprep.subr.mxu0 0.0
        %3748 = vmatpush1.msra.mxu0 0.0
        %3749 = vmatprep.subr.mxu0 0.0
        %3750 = vmatpush1.msra.mxu0 0.0
        %3751 = vmatprep.subr.mxu0 0.0
        %3752 = vmatpush1.msra.mxu0 0.0
        %3753 = vmatprep.subr.mxu0 0.0
        %3754 = vmatpush1.msra.mxu0 0.0
        %3755 = vmatprep.mubr.f32.mxu0 0.0
        %v3756 = vand.u32 %v2707, 4294901760
        %v3757 = vsub.f32 %v2707, %v3756
        %v3758 = vand.u32 %v3757, 4294901760
        %3759 = vmatmul.mubr.f32.gmra.mrb[0].mxu0 %v3758
        %v3760 = vpop.f32.mrb[0].mxu0
        %v3761 = vadd.f32 %v3659, %v3760
        %v3762 = vpop.f32.mrb[0].mxu0
        %v3763 = vadd.f32 %v3661, %v3762
        %3764 = vmatprep.mubr.f32.mxu0 0.0
        %v3765 = vand.u32 %v2710, 4294901760
        %v3766 = vsub.f32 %v2710, %v3765
        %v3767 = vand.u32 %v3766, 4294901760
        %3768 = vmatmul.mubr.f32.gmra.mrb[0].mxu0 %v3767
        %v3769 = vpop.f32.mrb[0].mxu0
        %v3770 = vadd.f32 %v3667, %v3769
        %v3771 = vpop.f32.mrb[0].mxu0
        %v3772 = vadd.f32 %v3669, %v3771
        %3773 = vmatprep.mubr.f32.mxu0 0.0
        %v3774 = vand.u32 %v2713, 4294901760
        %v3775 = vsub.f32 %v2713, %v3774
        %v3776 = vand.u32 %v3775, 4294901760
        %3777 = vmatmul.mubr.f32.gmra.mrb[0].mxu0 %v3776
        %v3778 = vpop.f32.mrb[0].mxu0
        %v3779 = vadd.f32 %v3675, %v3778
        %v3780 = vpop.f32.mrb[0].mxu0
        %v3781 = vadd.f32 %v3677, %v3780
        %3782 = vmatprep.mubr.f32.mxu0 0.0
        %v3783 = vand.u32 %v2716, 4294901760
        %v3784 = vsub.f32 %v2716, %v3783
        %v3785 = vand.u32 %v3784, 4294901760
        %3786 = vmatmul.mubr.f32.gmra.mrb[0].mxu0 %v3785
        %v3787 = vpop.f32.mrb[0].mxu0
        %v3788 = vadd.f32 %v3683, %v3787
        %v3789 = vpop.f32.mrb[0].mxu0
        %v3790 = vadd.f32 %v3685, %v3789
        %3791 = vdwg.mxu0
        %v3792 = vand.u32 %v1512, 4294901760
        %v3793 = vsub.f32 %v1512, %v3792
        %v3794 = vand.u32 %v3793, 4294901760
        %3795 = vmatprep.subr.mxu0 %v3794
        %v3796 = vand.u32 %v1510, 4294901760
        %v3797 = vsub.f32 %v1510, %v3796
        %v3798 = vand.u32 %v3797, 4294901760
        %3799 = vmatpush1.msra.mxu0 %v3798
        %v3800 = vand.u32 %v2665, 4294901760
        %v3801 = vsub.f32 %v2665, %v3800
        %v3802 = vand.u32 %v3801, 4294901760
        %3803 = vmatprep.subr.mxu0 %v3802
        %v3804 = vand.u32 %v2663, 4294901760
        %v3805 = vsub.f32 %v2663, %v3804
        %v3806 = vand.u32 %v3805, 4294901760
        %3807 = vmatpush1.msra.mxu0 %v3806
        %3808 = vmatprep.subr.mxu0 0.0
        %3809 = vmatpush1.msra.mxu0 0.0
        %3810 = vmatprep.subr.mxu0 0.0
        %3811 = vmatpush1.msra.mxu0 0.0
        %3812 = vmatprep.subr.mxu0 0.0
        %3813 = vmatpush1.msra.mxu0 0.0
        %3814 = vmatprep.subr.mxu0 0.0
        %3815 = vmatpush1.msra.mxu0 0.0
        %3816 = vmatprep.subr.mxu0 0.0
        %3817 = vmatpush1.msra.mxu0 0.0
        %3818 = vmatprep.subr.mxu0 0.0
        %3819 = vmatpush1.msra.mxu0 0.0
        %3820 = vmatprep.subr.mxu0 0.0
        %3821 = vmatpush1.msra.mxu0 0.0
        %3822 = vmatprep.subr.mxu0 0.0
        %3823 = vmatpush1.msra.mxu0 0.0
        %3824 = vmatprep.subr.mxu0 0.0
        %3825 = vmatpush1.msra.mxu0 0.0
        %3826 = vmatprep.subr.mxu0 0.0
        %3827 = vmatpush1.msra.mxu0 0.0
        %3828 = vmatprep.subr.mxu0 0.0
        %3829 = vmatpush1.msra.mxu0 0.0
        %3830 = vmatprep.subr.mxu0 0.0
        %3831 = vmatpush1.msra.mxu0 0.0
        %3832 = vmatprep.subr.mxu0 0.0
        %3833 = vmatpush1.msra.mxu0 0.0
        %3834 = vmatprep.subr.mxu0 0.0
        %3835 = vmatpush1.msra.mxu0 0.0
        %3836 = vmatprep.subr.mxu0 0.0
        %3837 = vmatpush1.msra.mxu0 0.0
        %3838 = vmatprep.subr.mxu0 0.0
        %3839 = vmatpush1.msra.mxu0 0.0
        %3840 = vmatprep.subr.mxu0 0.0
        %3841 = vmatpush1.msra.mxu0 0.0
        %3842 = vmatprep.subr.mxu0 0.0
        %3843 = vmatpush1.msra.mxu0 0.0
        %3844 = vmatprep.subr.mxu0 0.0
        %3845 = vmatpush1.msra.mxu0 0.0
        %3846 = vmatprep.subr.mxu0 0.0
        %3847 = vmatpush1.msra.mxu0 0.0
        %3848 = vmatprep.subr.mxu0 0.0
        %3849 = vmatpush1.msra.mxu0 0.0
        %3850 = vmatprep.subr.mxu0 0.0
        %3851 = vmatpush1.msra.mxu0 0.0
        %3852 = vmatprep.subr.mxu0 0.0
        %3853 = vmatpush1.msra.mxu0 0.0
        %3854 = vmatprep.subr.mxu0 0.0
        %3855 = vmatpush1.msra.mxu0 0.0
        %3856 = vmatprep.subr.mxu0 0.0
        %3857 = vmatpush1.msra.mxu0 0.0
        %3858 = vmatprep.subr.mxu0 0.0
        %3859 = vmatpush1.msra.mxu0 0.0
        %3860 = vmatprep.subr.mxu0 0.0
        %3861 = vmatpush1.msra.mxu0 0.0
        %3862 = vmatprep.subr.mxu0 0.0
        %3863 = vmatpush1.msra.mxu0 0.0
        %3864 = vmatprep.subr.mxu0 0.0
        %3865 = vmatpush1.msra.mxu0 0.0
        %3866 = vmatprep.subr.mxu0 0.0
        %3867 = vmatpush1.msra.mxu0 0.0
        %3868 = vmatprep.mubr.f32.mxu0 0.0
        %v3869 = vand.u32 %v2707, 4294901760
        %3870 = vmatmul.mubr.f32.gmra.mrb[0].mxu0 %v3869
        %v3871 = vpop.f32.mrb[0].mxu0
        %v3872 = vadd.f32 %v3761, %v3871
        %v3873 = vpop.f32.mrb[0].mxu0
        %v3874 = vadd.f32 %v3763, %v3873
        %3875 = vmatprep.mubr.f32.mxu0 0.0
        %v3876 = vand.u32 %v2710, 4294901760
        %3877 = vmatmul.mubr.f32.gmra.mrb[0].mxu0 %v3876
        %v3878 = vpop.f32.mrb[0].mxu0
        %v3879 = vadd.f32 %v3770, %v3878
        %v3880 = vpop.f32.mrb[0].mxu0
        %v3881 = vadd.f32 %v3772, %v3880
        %3882 = vmatprep.mubr.f32.mxu0 0.0
        %v3883 = vand.u32 %v2713, 4294901760
        %3884 = vmatmul.mubr.f32.gmra.mrb[0].mxu0 %v3883
        %v3885 = vpop.f32.mrb[0].mxu0
        %v3886 = vadd.f32 %v3779, %v3885
        %v3887 = vpop.f32.mrb[0].mxu0
        %v3888 = vadd.f32 %v3781, %v3887
        %3889 = vmatprep.mubr.f32.mxu0 0.0
        %v3890 = vand.u32 %v2716, 4294901760
        %3891 = vmatmul.mubr.f32.gmra.mrb[0].mxu0 %v3890
        %v3892 = vpop.f32.mrb[0].mxu0
        %v3893 = vadd.f32 %v3788, %v3892
        %v3894 = vpop.f32.mrb[0].mxu0
        %v3895 = vadd.f32 %v3790, %v3894
        %3896 = vdwg.mxu0
        %v3897 = vand.u32 %v1512, 4294901760
        %3898 = vmatprep.subr.mxu0 %v3897
        %v3899 = vand.u32 %v1510, 4294901760
        %3900 = vmatpush1.msra.mxu0 %v3899
        %v3901 = vand.u32 %v2665, 4294901760
        %3902 = vmatprep.subr.mxu0 %v3901
        %v3903 = vand.u32 %v2663, 4294901760
        %3904 = vmatpush1.msra.mxu0 %v3903
        %3905 = vmatprep.subr.mxu0 0.0
        %3906 = vmatpush1.msra.mxu0 0.0
        %3907 = vmatprep.subr.mxu0 0.0
        %3908 = vmatpush1.msra.mxu0 0.0
        %3909 = vmatprep.subr.mxu0 0.0
        %3910 = vmatpush1.msra.mxu0 0.0
        %3911 = vmatprep.subr.mxu0 0.0
        %3912 = vmatpush1.msra.mxu0 0.0
        %3913 = vmatprep.subr.mxu0 0.0
        %3914 = vmatpush1.msra.mxu0 0.0
        %3915 = vmatprep.subr.mxu0 0.0
        %3916 = vmatpush1.msra.mxu0 0.0
        %3917 = vmatprep.subr.mxu0 0.0
        %3918 = vmatpush1.msra.mxu0 0.0
        %3919 = vmatprep.subr.mxu0 0.0
        %3920 = vmatpush1.msra.mxu0 0.0
        %3921 = vmatprep.subr.mxu0 0.0
        %3922 = vmatpush1.msra.mxu0 0.0
        %3923 = vmatprep.subr.mxu0 0.0
        %3924 = vmatpush1.msra.mxu0 0.0
        %3925 = vmatprep.subr.mxu0 0.0
        %3926 = vmatpush1.msra.mxu0 0.0
        %3927 = vmatprep.subr.mxu0 0.0
        %3928 = vmatpush1.msra.mxu0 0.0
        %3929 = vmatprep.subr.mxu0 0.0
        %3930 = vmatpush1.msra.mxu0 0.0
        %3931 = vmatprep.subr.mxu0 0.0
        %3932 = vmatpush1.msra.mxu0 0.0
        %3933 = vmatprep.subr.mxu0 0.0
        %3934 = vmatpush1.msra.mxu0 0.0
        %3935 = vmatprep.subr.mxu0 0.0
        %3936 = vmatpush1.msra.mxu0 0.0
        %3937 = vmatprep.subr.mxu0 0.0
        %3938 = vmatpush1.msra.mxu0 0.0
        %3939 = vmatprep.subr.mxu0 0.0
        %3940 = vmatpush1.msra.mxu0 0.0
        %3941 = vmatprep.subr.mxu0 0.0
        %3942 = vmatpush1.msra.mxu0 0.0
        %3943 = vmatprep.subr.mxu0 0.0
        %3944 = vmatpush1.msra.mxu0 0.0
        %3945 = vmatprep.subr.mxu0 0.0
        %3946 = vmatpush1.msra.mxu0 0.0
        %3947 = vmatprep.subr.mxu0 0.0
        %3948 = vmatpush1.msra.mxu0 0.0
        %3949 = vmatprep.subr.mxu0 0.0
        %3950 = vmatpush1.msra.mxu0 0.0
        %3951 = vmatprep.subr.mxu0 0.0
        %3952 = vmatpush1.msra.mxu0 0.0
        %3953 = vmatprep.subr.mxu0 0.0
        %3954 = vmatpush1.msra.mxu0 0.0
        %3955 = vmatprep.subr.mxu0 0.0
        %3956 = vmatpush1.msra.mxu0 0.0
        %3957 = vmatprep.subr.mxu0 0.0
        %3958 = vmatpush1.msra.mxu0 0.0
        %3959 = vmatprep.subr.mxu0 0.0
        %3960 = vmatpush1.msra.mxu0 0.0
        %3961 = vmatprep.subr.mxu0 0.0
        %3962 = vmatpush1.msra.mxu0 0.0
        %3963 = vmatprep.subr.mxu0 0.0
        %3964 = vmatpush1.msra.mxu0 0.0
        %3965 = vmatprep.mubr.f32.mxu0 0.0
        %v3966 = vand.u32 %v2707, 4294901760
        %3967 = vmatmul.mubr.f32.gmra.mrb[0].mxu0 %v3966
        %v3968 = vpop.f32.mrb[0].mxu0
        %v3969 = vadd.f32 %v3872, %v3968
        %v3970 = vpop.f32.mrb[0].mxu0
        %v3971 = vadd.f32 %v3874, %v3970
        %3972 = vmatprep.mubr.f32.mxu0 0.0
        %v3973 = vand.u32 %v2710, 4294901760
        %3974 = vmatmul.mubr.f32.gmra.mrb[0].mxu0 %v3973
        %v3975 = vpop.f32.mrb[0].mxu0
        %v3976 = vadd.f32 %v3879, %v3975
        %v3977 = vpop.f32.mrb[0].mxu0
        %v3978 = vadd.f32 %v3881, %v3977
        %3979 = vmatprep.mubr.f32.mxu0 0.0
        %v3980 = vand.u32 %v2713, 4294901760
        %3981 = vmatmul.mubr.f32.gmra.mrb[0].mxu0 %v3980
        %v3982 = vpop.f32.mrb[0].mxu0
        %v3983 = vadd.f32 %v3886, %v3982
        %v3984 = vpop.f32.mrb[0].mxu0
        %v3985 = vadd.f32 %v3888, %v3984
        %3986 = vmatprep.mubr.f32.mxu0 0.0
        %v3987 = vand.u32 %v2716, 4294901760
        %3988 = vmatmul.mubr.f32.gmra.mrb[0].mxu0 %v3987
        %v3989 = vpop.f32.mrb[0].mxu0
        %v3990 = vadd.f32 %v3893, %v3989
        %v3991 = vpop.f32.mrb[0].mxu0
        %v3992 = vadd.f32 %v3895, %v3991
        %3993 = vdwg.mxu0
        %v3994 = vmax.f32 %v3331, 0.0
        %v3995 = vmax.f32 %v3333, 0.0
        %v3996 = vmax.f32 %v3969, 0.0
        %v3997 = vmax.f32 %v3971, 0.0
        %v3998 = vmax.f32 %v3338, 0.0
        %v3999 = vmax.f32 %v3340, 0.0
        %v4000 = vmax.f32 %v3976, 0.0
        %v4001 = vmax.f32 %v3978, 0.0
        %v4002 = vmax.f32 %v3345, 0.0
        %v4003 = vmax.f32 %v3347, 0.0
        %v4004 = vmax.f32 %v3983, 0.0
        %v4005 = vmax.f32 %v3985, 0.0
        %v4006 = vmax.f32 %v3352, 0.0
        %v4007 = vmax.f32 %v3354, 0.0
        %v4008 = vmax.f32 %v3990, 0.0
        %v4009 = vmax.f32 %v3992, 0.0
        %v4010 = vld [vmem:[%s5] sm:$0xff]
        %v4011 = vld [vmem:[%s5 + $0x8] sm:$0xff]
        %4013 = vset.pattern.permute.xlu0 0
        %4014 = vperm.xlu0 %4013, %v2675
        %v4015 = vpop.permute.xlu0 %4014
        %4018 = vset.pattern.permute.xlu0 0
        %4019 = vperm.xlu0 %4018, %v2676
        %v4020 = vpop.permute.xlu0 %4019
        %v4023 = vsel %vm419, %v4010, 0
        %v4026 = vsel %vm419, %v4011, 0
        %v4028 = vand.u32 %v3995, 4294901760
        %4029 = vmatprep.subr.mxu0 %v4028
        %v4030 = vand.u32 %v3994, 4294901760
        %4031 = vmatpush1.msra.mxu0 %v4030
        %v4032 = vand.u32 %v3999, 4294901760
        %4033 = vmatprep.subr.mxu0 %v4032
        %v4034 = vand.u32 %v3998, 4294901760
        %4035 = vmatpush1.msra.mxu0 %v4034
        %v4036 = vand.u32 %v4003, 4294901760
        %4037 = vmatprep.subr.mxu0 %v4036
        %v4038 = vand.u32 %v4002, 4294901760
        %4039 = vmatpush1.msra.mxu0 %v4038
        %v4040 = vand.u32 %v4007, 4294901760
        %4041 = vmatprep.subr.mxu0 %v4040
        %v4042 = vand.u32 %v4006, 4294901760
        %4043 = vmatpush1.msra.mxu0 %v4042
        %4044 = vmatprep.subr.mxu0 0.0
        %4045 = vmatpush1.msra.mxu0 0.0
        %4046 = vmatprep.subr.mxu0 0.0
        %4047 = vmatpush1.msra.mxu0 0.0
        %4048 = vmatprep.subr.mxu0 0.0
        %4049 = vmatpush1.msra.mxu0 0.0
        %4050 = vmatprep.subr.mxu0 0.0
        %4051 = vmatpush1.msra.mxu0 0.0
        %4052 = vmatprep.subr.mxu0 0.0
        %4053 = vmatpush1.msra.mxu0 0.0
        %4054 = vmatprep.subr.mxu0 0.0
        %4055 = vmatpush1.msra.mxu0 0.0
        %4056 = vmatprep.subr.mxu0 0.0
        %4057 = vmatpush1.msra.mxu0 0.0
        %4058 = vmatprep.subr.mxu0 0.0
        %4059 = vmatpush1.msra.mxu0 0.0
        %4060 = vmatprep.subr.mxu0 0.0
        %4061 = vmatpush1.msra.mxu0 0.0
        %4062 = vmatprep.subr.mxu0 0.0
        %4063 = vmatpush1.msra.mxu0 0.0
        %4064 = vmatprep.subr.mxu0 0.0
        %4065 = vmatpush1.msra.mxu0 0.0
        %4066 = vmatprep.subr.mxu0 0.0
        %4067 = vmatpush1.msra.mxu0 0.0
        %4068 = vmatprep.subr.mxu0 0.0
        %4069 = vmatpush1.msra.mxu0 0.0
        %4070 = vmatprep.subr.mxu0 0.0
        %4071 = vmatpush1.msra.mxu0 0.0
        %4072 = vmatprep.subr.mxu0 0.0
        %4073 = vmatpush1.msra.mxu0 0.0
        %4074 = vmatprep.subr.mxu0 0.0
        %4075 = vmatpush1.msra.mxu0 0.0
        %4076 = vmatprep.subr.mxu0 0.0
        %4077 = vmatpush1.msra.mxu0 0.0
        %4078 = vmatprep.subr.mxu0 0.0
        %4079 = vmatpush1.msra.mxu0 0.0
        %4080 = vmatprep.subr.mxu0 0.0
        %4081 = vmatpush1.msra.mxu0 0.0
        %4082 = vmatprep.subr.mxu0 0.0
        %4083 = vmatpush1.msra.mxu0 0.0
        %4084 = vmatprep.subr.mxu0 0.0
        %4085 = vmatpush1.msra.mxu0 0.0
        %4086 = vmatprep.subr.mxu0 0.0
        %4087 = vmatpush1.msra.mxu0 0.0
        %4088 = vmatprep.subr.mxu0 0.0
        %4089 = vmatpush1.msra.mxu0 0.0
        %4090 = vmatprep.subr.mxu0 0.0
        %4091 = vmatpush1.msra.mxu0 0.0
        %4092 = vmatprep.subr.mxu0 0.0
        %4093 = vmatpush1.msra.mxu0 0.0
        %4094 = vmatprep.subr.mxu0 0.0
        %4095 = vmatpush1.msra.mxu0 0.0
        %4096 = vmatprep.subr.mxu0 0.0
        %4097 = vmatpush1.msra.mxu0 0.0
        %4098 = vmatprep.subr.mxu0 0.0
        %4099 = vmatpush1.msra.mxu0 0.0
        %4100 = vmatprep.mubr.f32.mxu0 0.0
        %v4101 = vand.u32 %v4023, 4294901760
        %v4102 = vsub.f32 %v4023, %v4101
        %v4103 = vand.u32 %v4102, 4294901760
        %v4104 = vsub.f32 %v4102, %v4103
        %v4105 = vand.u32 %v4104, 4294901760
        %4106 = vmatmul.mubr.f32.gmra.mrb[0].mxu0 %v4105
        %v4107 = vpop.f32.mrb[0].mxu0
        %v4108 = vadd.f32 %v4015, %v4107
        %v4109 = vpop.f32.mrb[0].mxu0
        %v4110 = vadd.f32 %v4015, %v4109
        %4111 = vmatprep.mubr.f32.mxu0 0.0
        %v4112 = vand.u32 %v4026, 4294901760
        %v4113 = vsub.f32 %v4026, %v4112
        %v4114 = vand.u32 %v4113, 4294901760
        %v4115 = vsub.f32 %v4113, %v4114
        %v4116 = vand.u32 %v4115, 4294901760
        %4117 = vmatmul.mubr.f32.gmra.mrb[0].mxu0 %v4116
        %v4118 = vpop.f32.mrb[0].mxu0
        %v4119 = vadd.f32 %v4020, %v4118
        %v4120 = vpop.f32.mrb[0].mxu0
        %v4121 = vadd.f32 %v4020, %v4120
        %4122 = vdwg.mxu0
        %v4123 = vand.u32 %v3995, 4294901760
        %v4124 = vsub.f32 %v3995, %v4123
        %v4125 = vand.u32 %v4124, 4294901760
        %v4126 = vsub.f32 %v4124, %v4125
        %v4127 = vand.u32 %v4126, 4294901760
        %4128 = vmatprep.subr.mxu0 %v4127
        %v4129 = vand.u32 %v3994, 4294901760
        %v4130 = vsub.f32 %v3994, %v4129
        %v4131 = vand.u32 %v4130, 4294901760
        %v4132 = vsub.f32 %v4130, %v4131
        %v4133 = vand.u32 %v4132, 4294901760
        %4134 = vmatpush1.msra.mxu0 %v4133
        %v4135 = vand.u32 %v3999, 4294901760
        %v4136 = vsub.f32 %v3999, %v4135
        %v4137 = vand.u32 %v4136, 4294901760
        %v4138 = vsub.f32 %v4136, %v4137
        %v4139 = vand.u32 %v4138, 4294901760
        %4140 = vmatprep.subr.mxu0 %v4139
        %v4141 = vand.u32 %v3998, 4294901760
        %v4142 = vsub.f32 %v3998, %v4141
        %v4143 = vand.u32 %v4142, 4294901760
        %v4144 = vsub.f32 %v4142, %v4143
        %v4145 = vand.u32 %v4144, 4294901760
        %4146 = vmatpush1.msra.mxu0 %v4145
        %v4147 = vand.u32 %v4003, 4294901760
        %v4148 = vsub.f32 %v4003, %v4147
        %v4149 = vand.u32 %v4148, 4294901760
        %v4150 = vsub.f32 %v4148, %v4149
        %v4151 = vand.u32 %v4150, 4294901760
        %4152 = vmatprep.subr.mxu0 %v4151
        %v4153 = vand.u32 %v4002, 4294901760
        %v4154 = vsub.f32 %v4002, %v4153
        %v4155 = vand.u32 %v4154, 4294901760
        %v4156 = vsub.f32 %v4154, %v4155
        %v4157 = vand.u32 %v4156, 4294901760
        %4158 = vmatpush1.msra.mxu0 %v4157
        %v4159 = vand.u32 %v4007, 4294901760
        %v4160 = vsub.f32 %v4007, %v4159
        %v4161 = vand.u32 %v4160, 4294901760
        %v4162 = vsub.f32 %v4160, %v4161
        %v4163 = vand.u32 %v4162, 4294901760
        %4164 = vmatprep.subr.mxu0 %v4163
        %v4165 = vand.u32 %v4006, 4294901760
        %v4166 = vsub.f32 %v4006, %v4165
        %v4167 = vand.u32 %v4166, 4294901760
        %v4168 = vsub.f32 %v4166, %v4167
        %v4169 = vand.u32 %v4168, 4294901760
        %4170 = vmatpush1.msra.mxu0 %v4169
        %4171 = vmatprep.subr.mxu0 0.0
        %4172 = vmatpush1.msra.mxu0 0.0
        %4173 = vmatprep.subr.mxu0 0.0
        %4174 = vmatpush1.msra.mxu0 0.0
        %4175 = vmatprep.subr.mxu0 0.0
        %4176 = vmatpush1.msra.mxu0 0.0
        %4177 = vmatprep.subr.mxu0 0.0
        %4178 = vmatpush1.msra.mxu0 0.0
        %4179 = vmatprep.subr.mxu0 0.0
        %4180 = vmatpush1.msra.mxu0 0.0
        %4181 = vmatprep.subr.mxu0 0.0
        %4182 = vmatpush1.msra.mxu0 0.0
        %4183 = vmatprep.subr.mxu0 0.0
        %4184 = vmatpush1.msra.mxu0 0.0
        %4185 = vmatprep.subr.mxu0 0.0
        %4186 = vmatpush1.msra.mxu0 0.0
        %4187 = vmatprep.subr.mxu0 0.0
        %4188 = vmatpush1.msra.mxu0 0.0
        %4189 = vmatprep.subr.mxu0 0.0
        %4190 = vmatpush1.msra.mxu0 0.0
        %4191 = vmatprep.subr.mxu0 0.0
        %4192 = vmatpush1.msra.mxu0 0.0
        %4193 = vmatprep.subr.mxu0 0.0
        %4194 = vmatpush1.msra.mxu0 0.0
        %4195 = vmatprep.subr.mxu0 0.0
        %4196 = vmatpush1.msra.mxu0 0.0
        %4197 = vmatprep.subr.mxu0 0.0
        %4198 = vmatpush1.msra.mxu0 0.0
        %4199 = vmatprep.subr.mxu0 0.0
        %4200 = vmatpush1.msra.mxu0 0.0
        %4201 = vmatprep.subr.mxu0 0.0
        %4202 = vmatpush1.msra.mxu0 0.0
        %4203 = vmatprep.subr.mxu0 0.0
        %4204 = vmatpush1.msra.mxu0 0.0
        %4205 = vmatprep.subr.mxu0 0.0
        %4206 = vmatpush1.msra.mxu0 0.0
        %4207 = vmatprep.subr.mxu0 0.0
        %4208 = vmatpush1.msra.mxu0 0.0
        %4209 = vmatprep.subr.mxu0 0.0
        %4210 = vmatpush1.msra.mxu0 0.0
        %4211 = vmatprep.subr.mxu0 0.0
        %4212 = vmatpush1.msra.mxu0 0.0
        %4213 = vmatprep.subr.mxu0 0.0
        %4214 = vmatpush1.msra.mxu0 0.0
        %4215 = vmatprep.subr.mxu0 0.0
        %4216 = vmatpush1.msra.mxu0 0.0
        %4217 = vmatprep.subr.mxu0 0.0
        %4218 = vmatpush1.msra.mxu0 0.0
        %4219 = vmatprep.subr.mxu0 0.0
        %4220 = vmatpush1.msra.mxu0 0.0
        %4221 = vmatprep.subr.mxu0 0.0
        %4222 = vmatpush1.msra.mxu0 0.0
        %4223 = vmatprep.subr.mxu0 0.0
        %4224 = vmatpush1.msra.mxu0 0.0
        %4225 = vmatprep.subr.mxu0 0.0
        %4226 = vmatpush1.msra.mxu0 0.0
        %4227 = vmatprep.mubr.f32.mxu0 0.0
        %v4228 = vand.u32 %v4023, 4294901760
        %4229 = vmatmul.mubr.f32.gmra.mrb[0].mxu0 %v4228
        %v4230 = vpop.f32.mrb[0].mxu0
        %v4231 = vadd.f32 %v4108, %v4230
        %v4232 = vpop.f32.mrb[0].mxu0
        %v4233 = vadd.f32 %v4110, %v4232
        %4234 = vmatprep.mubr.f32.mxu0 0.0
        %v4235 = vand.u32 %v4026, 4294901760
        %4236 = vmatmul.mubr.f32.gmra.mrb[0].mxu0 %v4235
        %v4237 = vpop.f32.mrb[0].mxu0
        %v4238 = vadd.f32 %v4119, %v4237
        %v4239 = vpop.f32.mrb[0].mxu0
        %v4240 = vadd.f32 %v4121, %v4239
        %4241 = vdwg.mxu0
        %v4242 = vand.u32 %v3995, 4294901760
        %v4243 = vsub.f32 %v3995, %v4242
        %4244 = vmatprep.subr.mxu0 %v4243
        %v4245 = vand.u32 %v3994, 4294901760
        %v4246 = vsub.f32 %v3994, %v4245
        %4247 = vmatpush1.msra.mxu0 %v4246
        %v4248 = vand.u32 %v3999, 4294901760
        %v4249 = vsub.f32 %v3999, %v4248
        %4250 = vmatprep.subr.mxu0 %v4249
        %v4251 = vand.u32 %v3998, 4294901760
        %v4252 = vsub.f32 %v3998, %v4251
        %4253 = vmatpush1.msra.mxu0 %v4252
        %v4254 = vand.u32 %v4003, 4294901760
        %v4255 = vsub.f32 %v4003, %v4254
        %4256 = vmatprep.subr.mxu0 %v4255
        %v4257 = vand.u32 %v4002, 4294901760
        %v4258 = vsub.f32 %v4002, %v4257
        %4259 = vmatpush1.msra.mxu0 %v4258
        %v4260 = vand.u32 %v4007, 4294901760
        %v4261 = vsub.f32 %v4007, %v4260
        %4262 = vmatprep.subr.mxu0 %v4261
        %v4263 = vand.u32 %v4006, 4294901760
        %v4264 = vsub.f32 %v4006, %v4263
        %4265 = vmatpush1.msra.mxu0 %v4264
        %4266 = vmatprep.subr.mxu0 0.0
        %4267 = vmatpush1.msra.mxu0 0.0
        %4268 = vmatprep.subr.mxu0 0.0
        %4269 = vmatpush1.msra.mxu0 0.0
        %4270 = vmatprep.subr.mxu0 0.0
        %4271 = vmatpush1.msra.mxu0 0.0
        %4272 = vmatprep.subr.mxu0 0.0
        %4273 = vmatpush1.msra.mxu0 0.0
        %4274 = vmatprep.subr.mxu0 0.0
        %4275 = vmatpush1.msra.mxu0 0.0
        %4276 = vmatprep.subr.mxu0 0.0
        %4277 = vmatpush1.msra.mxu0 0.0
        %4278 = vmatprep.subr.mxu0 0.0
        %4279 = vmatpush1.msra.mxu0 0.0
        %4280 = vmatprep.subr.mxu0 0.0
        %4281 = vmatpush1.msra.mxu0 0.0
        %4282 = vmatprep.subr.mxu0 0.0
        %4283 = vmatpush1.msra.mxu0 0.0
        %4284 = vmatprep.subr.mxu0 0.0
        %4285 = vmatpush1.msra.mxu0 0.0
        %4286 = vmatprep.subr.mxu0 0.0
        %4287 = vmatpush1.msra.mxu0 0.0
        %4288 = vmatprep.subr.mxu0 0.0
        %4289 = vmatpush1.msra.mxu0 0.0
        %4290 = vmatprep.subr.mxu0 0.0
        %4291 = vmatpush1.msra.mxu0 0.0
        %4292 = vmatprep.subr.mxu0 0.0
        %4293 = vmatpush1.msra.mxu0 0.0
        %4294 = vmatprep.subr.mxu0 0.0
        %4295 = vmatpush1.msra.mxu0 0.0
        %4296 = vmatprep.subr.mxu0 0.0
        %4297 = vmatpush1.msra.mxu0 0.0
        %4298 = vmatprep.subr.mxu0 0.0
        %4299 = vmatpush1.msra.mxu0 0.0
        %4300 = vmatprep.subr.mxu0 0.0
        %4301 = vmatpush1.msra.mxu0 0.0
        %4302 = vmatprep.subr.mxu0 0.0
        %4303 = vmatpush1.msra.mxu0 0.0
        %4304 = vmatprep.subr.mxu0 0.0
        %4305 = vmatpush1.msra.mxu0 0.0
        %4306 = vmatprep.subr.mxu0 0.0
        %4307 = vmatpush1.msra.mxu0 0.0
        %4308 = vmatprep.subr.mxu0 0.0
        %4309 = vmatpush1.msra.mxu0 0.0
        %4310 = vmatprep.subr.mxu0 0.0
        %4311 = vmatpush1.msra.mxu0 0.0
        %4312 = vmatprep.subr.mxu0 0.0
        %4313 = vmatpush1.msra.mxu0 0.0
        %4314 = vmatprep.subr.mxu0 0.0
        %4315 = vmatpush1.msra.mxu0 0.0
        %4316 = vmatprep.subr.mxu0 0.0
        %4317 = vmatpush1.msra.mxu0 0.0
        %4318 = vmatprep.subr.mxu0 0.0
        %4319 = vmatpush1.msra.mxu0 0.0
        %4320 = vmatprep.subr.mxu0 0.0
        %4321 = vmatpush1.msra.mxu0 0.0
        %4322 = vmatprep.mubr.f32.mxu0 0.0
        %v4323 = vand.u32 %v4023, 4294901760
        %v4324 = vsub.f32 %v4023, %v4323
        %4325 = vmatmul.mubr.f32.gmra.mrb[0].mxu0 %v4324
        %v4326 = vpop.f32.mrb[0].mxu0
        %v4327 = vadd.f32 %v4231, %v4326
        %v4328 = vpop.f32.mrb[0].mxu0
        %v4329 = vadd.f32 %v4233, %v4328
        %4330 = vmatprep.mubr.f32.mxu0 0.0
        %v4331 = vand.u32 %v4026, 4294901760
        %v4332 = vsub.f32 %v4026, %v4331
        %4333 = vmatmul.mubr.f32.gmra.mrb[0].mxu0 %v4332
        %v4334 = vpop.f32.mrb[0].mxu0
        %v4335 = vadd.f32 %v4238, %v4334
        %v4336 = vpop.f32.mrb[0].mxu0
        %v4337 = vadd.f32 %v4240, %v4336
        %4338 = vdwg.mxu0
        %v4339 = vand.u32 %v3995, 4294901760
        %4340 = vmatprep.subr.mxu0 %v4339
        %v4341 = vand.u32 %v3994, 4294901760
        %4342 = vmatpush1.msra.mxu0 %v4341
        %v4343 = vand.u32 %v3999, 4294901760
        %4344 = vmatprep.subr.mxu0 %v4343
        %v4345 = vand.u32 %v3998, 4294901760
        %4346 = vmatpush1.msra.mxu0 %v4345
        %v4347 = vand.u32 %v4003, 4294901760
        %4348 = vmatprep.subr.mxu0 %v4347
        %v4349 = vand.u32 %v4002, 4294901760
        %4350 = vmatpush1.msra.mxu0 %v4349
        %v4351 = vand.u32 %v4007, 4294901760
        %4352 = vmatprep.subr.mxu0 %v4351
        %v4353 = vand.u32 %v4006, 4294901760
        %4354 = vmatpush1.msra.mxu0 %v4353
        %4355 = vmatprep.subr.mxu0 0.0
        %4356 = vmatpush1.msra.mxu0 0.0
        %4357 = vmatprep.subr.mxu0 0.0
        %4358 = vmatpush1.msra.mxu0 0.0
        %4359 = vmatprep.subr.mxu0 0.0
        %4360 = vmatpush1.msra.mxu0 0.0
        %4361 = vmatprep.subr.mxu0 0.0
        %4362 = vmatpush1.msra.mxu0 0.0
        %4363 = vmatprep.subr.mxu0 0.0
        %4364 = vmatpush1.msra.mxu0 0.0
        %4365 = vmatprep.subr.mxu0 0.0
        %4366 = vmatpush1.msra.mxu0 0.0
        %4367 = vmatprep.subr.mxu0 0.0
        %4368 = vmatpush1.msra.mxu0 0.0
        %4369 = vmatprep.subr.mxu0 0.0
        %4370 = vmatpush1.msra.mxu0 0.0
        %4371 = vmatprep.subr.mxu0 0.0
        %4372 = vmatpush1.msra.mxu0 0.0
        %4373 = vmatprep.subr.mxu0 0.0
        %4374 = vmatpush1.msra.mxu0 0.0
        %4375 = vmatprep.subr.mxu0 0.0
        %4376 = vmatpush1.msra.mxu0 0.0
        %4377 = vmatprep.subr.mxu0 0.0
        %4378 = vmatpush1.msra.mxu0 0.0
        %4379 = vmatprep.subr.mxu0 0.0
        %4380 = vmatpush1.msra.mxu0 0.0
        %4381 = vmatprep.subr.mxu0 0.0
        %4382 = vmatpush1.msra.mxu0 0.0
        %4383 = vmatprep.subr.mxu0 0.0
        %4384 = vmatpush1.msra.mxu0 0.0
        %4385 = vmatprep.subr.mxu0 0.0
        %4386 = vmatpush1.msra.mxu0 0.0
        %4387 = vmatprep.subr.mxu0 0.0
        %4388 = vmatpush1.msra.mxu0 0.0
        %4389 = vmatprep.subr.mxu0 0.0
        %4390 = vmatpush1.msra.mxu0 0.0
        %4391 = vmatprep.subr.mxu0 0.0
        %4392 = vmatpush1.msra.mxu0 0.0
        %4393 = vmatprep.subr.mxu0 0.0
        %4394 = vmatpush1.msra.mxu0 0.0
        %4395 = vmatprep.subr.mxu0 0.0
        %4396 = vmatpush1.msra.mxu0 0.0
        %4397 = vmatprep.subr.mxu0 0.0
        %4398 = vmatpush1.msra.mxu0 0.0
        %4399 = vmatprep.subr.mxu0 0.0
        %4400 = vmatpush1.msra.mxu0 0.0
        %4401 = vmatprep.subr.mxu0 0.0
        %4402 = vmatpush1.msra.mxu0 0.0
        %4403 = vmatprep.subr.mxu0 0.0
        %4404 = vmatpush1.msra.mxu0 0.0
        %4405 = vmatprep.subr.mxu0 0.0
        %4406 = vmatpush1.msra.mxu0 0.0
        %4407 = vmatprep.subr.mxu0 0.0
        %4408 = vmatpush1.msra.mxu0 0.0
        %4409 = vmatprep.subr.mxu0 0.0
        %4410 = vmatpush1.msra.mxu0 0.0
        %4411 = vmatprep.mubr.f32.mxu0 0.0
        %v4412 = vand.u32 %v4023, 4294901760
        %v4413 = vsub.f32 %v4023, %v4412
        %v4414 = vand.u32 %v4413, 4294901760
        %4415 = vmatmul.mubr.f32.gmra.mrb[0].mxu0 %v4414
        %v4416 = vpop.f32.mrb[0].mxu0
        %v4417 = vadd.f32 %v4327, %v4416
        %v4418 = vpop.f32.mrb[0].mxu0
        %v4419 = vadd.f32 %v4329, %v4418
        %4420 = vmatprep.mubr.f32.mxu0 0.0
        %v4421 = vand.u32 %v4026, 4294901760
        %v4422 = vsub.f32 %v4026, %v4421
        %v4423 = vand.u32 %v4422, 4294901760
        %4424 = vmatmul.mubr.f32.gmra.mrb[0].mxu0 %v4423
        %v4425 = vpop.f32.mrb[0].mxu0
        %v4426 = vadd.f32 %v4335, %v4425
        %v4427 = vpop.f32.mrb[0].mxu0
        %v4428 = vadd.f32 %v4337, %v4427
        %4429 = vdwg.mxu0
        %v4430 = vand.u32 %v3995, 4294901760
        %v4431 = vsub.f32 %v3995, %v4430
        %v4432 = vand.u32 %v4431, 4294901760
        %4433 = vmatprep.subr.mxu0 %v4432
        %v4434 = vand.u32 %v3994, 4294901760
        %v4435 = vsub.f32 %v3994, %v4434
        %v4436 = vand.u32 %v4435, 4294901760
        %4437 = vmatpush1.msra.mxu0 %v4436
        %v4438 = vand.u32 %v3999, 4294901760
        %v4439 = vsub.f32 %v3999, %v4438
        %v4440 = vand.u32 %v4439, 4294901760
        %4441 = vmatprep.subr.mxu0 %v4440
        %v4442 = vand.u32 %v3998, 4294901760
        %v4443 = vsub.f32 %v3998, %v4442
        %v4444 = vand.u32 %v4443, 4294901760
        %4445 = vmatpush1.msra.mxu0 %v4444
        %v4446 = vand.u32 %v4003, 4294901760
        %v4447 = vsub.f32 %v4003, %v4446
        %v4448 = vand.u32 %v4447, 4294901760
        %4449 = vmatprep.subr.mxu0 %v4448
        %v4450 = vand.u32 %v4002, 4294901760
        %v4451 = vsub.f32 %v4002, %v4450
        %v4452 = vand.u32 %v4451, 4294901760
        %4453 = vmatpush1.msra.mxu0 %v4452
        %v4454 = vand.u32 %v4007, 4294901760
        %v4455 = vsub.f32 %v4007, %v4454
        %v4456 = vand.u32 %v4455, 4294901760
        %4457 = vmatprep.subr.mxu0 %v4456
        %v4458 = vand.u32 %v4006, 4294901760
        %v4459 = vsub.f32 %v4006, %v4458
        %v4460 = vand.u32 %v4459, 4294901760
        %4461 = vmatpush1.msra.mxu0 %v4460
        %4462 = vmatprep.subr.mxu0 0.0
        %4463 = vmatpush1.msra.mxu0 0.0
        %4464 = vmatprep.subr.mxu0 0.0
        %4465 = vmatpush1.msra.mxu0 0.0
        %4466 = vmatprep.subr.mxu0 0.0
        %4467 = vmatpush1.msra.mxu0 0.0
        %4468 = vmatprep.subr.mxu0 0.0
        %4469 = vmatpush1.msra.mxu0 0.0
        %4470 = vmatprep.subr.mxu0 0.0
        %4471 = vmatpush1.msra.mxu0 0.0
        %4472 = vmatprep.subr.mxu0 0.0
        %4473 = vmatpush1.msra.mxu0 0.0
        %4474 = vmatprep.subr.mxu0 0.0
        %4475 = vmatpush1.msra.mxu0 0.0
        %4476 = vmatprep.subr.mxu0 0.0
        %4477 = vmatpush1.msra.mxu0 0.0
        %4478 = vmatprep.subr.mxu0 0.0
        %4479 = vmatpush1.msra.mxu0 0.0
        %4480 = vmatprep.subr.mxu0 0.0
        %4481 = vmatpush1.msra.mxu0 0.0
        %4482 = vmatprep.subr.mxu0 0.0
        %4483 = vmatpush1.msra.mxu0 0.0
        %4484 = vmatprep.subr.mxu0 0.0
        %4485 = vmatpush1.msra.mxu0 0.0
        %4486 = vmatprep.subr.mxu0 0.0
        %4487 = vmatpush1.msra.mxu0 0.0
        %4488 = vmatprep.subr.mxu0 0.0
        %4489 = vmatpush1.msra.mxu0 0.0
        %4490 = vmatprep.subr.mxu0 0.0
        %4491 = vmatpush1.msra.mxu0 0.0
        %4492 = vmatprep.subr.mxu0 0.0
        %4493 = vmatpush1.msra.mxu0 0.0
        %4494 = vmatprep.subr.mxu0 0.0
        %4495 = vmatpush1.msra.mxu0 0.0
        %4496 = vmatprep.subr.mxu0 0.0
        %4497 = vmatpush1.msra.mxu0 0.0
        %4498 = vmatprep.subr.mxu0 0.0
        %4499 = vmatpush1.msra.mxu0 0.0
        %4500 = vmatprep.subr.mxu0 0.0
        %4501 = vmatpush1.msra.mxu0 0.0
        %4502 = vmatprep.subr.mxu0 0.0
        %4503 = vmatpush1.msra.mxu0 0.0
        %4504 = vmatprep.subr.mxu0 0.0
        %4505 = vmatpush1.msra.mxu0 0.0
        %4506 = vmatprep.subr.mxu0 0.0
        %4507 = vmatpush1.msra.mxu0 0.0
        %4508 = vmatprep.subr.mxu0 0.0
        %4509 = vmatpush1.msra.mxu0 0.0
        %4510 = vmatprep.subr.mxu0 0.0
        %4511 = vmatpush1.msra.mxu0 0.0
        %4512 = vmatprep.subr.mxu0 0.0
        %4513 = vmatpush1.msra.mxu0 0.0
        %4514 = vmatprep.subr.mxu0 0.0
        %4515 = vmatpush1.msra.mxu0 0.0
        %4516 = vmatprep.subr.mxu0 0.0
        %4517 = vmatpush1.msra.mxu0 0.0
        %4518 = vmatprep.mubr.f32.mxu0 0.0
        %v4519 = vand.u32 %v4023, 4294901760
        %4520 = vmatmul.mubr.f32.gmra.mrb[0].mxu0 %v4519
        %v4521 = vpop.f32.mrb[0].mxu0
        %v4522 = vadd.f32 %v4417, %v4521
        %v4523 = vpop.f32.mrb[0].mxu0
        %v4524 = vadd.f32 %v4419, %v4523
        %4525 = vmatprep.mubr.f32.mxu0 0.0
        %v4526 = vand.u32 %v4026, 4294901760
        %4527 = vmatmul.mubr.f32.gmra.mrb[0].mxu0 %v4526
        %v4528 = vpop.f32.mrb[0].mxu0
        %v4529 = vadd.f32 %v4426, %v4528
        %v4530 = vpop.f32.mrb[0].mxu0
        %v4531 = vadd.f32 %v4428, %v4530
        %4532 = vdwg.mxu0
        %v4533 = vand.u32 %v3995, 4294901760
        %4534 = vmatprep.subr.mxu0 %v4533
        %v4535 = vand.u32 %v3994, 4294901760
        %4536 = vmatpush1.msra.mxu0 %v4535
        %v4537 = vand.u32 %v3999, 4294901760
        %4538 = vmatprep.subr.mxu0 %v4537
        %v4539 = vand.u32 %v3998, 4294901760
        %4540 = vmatpush1.msra.mxu0 %v4539
        %v4541 = vand.u32 %v4003, 4294901760
        %4542 = vmatprep.subr.mxu0 %v4541
        %v4543 = vand.u32 %v4002, 4294901760
        %4544 = vmatpush1.msra.mxu0 %v4543
        %v4545 = vand.u32 %v4007, 4294901760
        %4546 = vmatprep.subr.mxu0 %v4545
        %v4547 = vand.u32 %v4006, 4294901760
        %4548 = vmatpush1.msra.mxu0 %v4547
        %4549 = vmatprep.subr.mxu0 0.0
        %4550 = vmatpush1.msra.mxu0 0.0
        %4551 = vmatprep.subr.mxu0 0.0
        %4552 = vmatpush1.msra.mxu0 0.0
        %4553 = vmatprep.subr.mxu0 0.0
        %4554 = vmatpush1.msra.mxu0 0.0
        %4555 = vmatprep.subr.mxu0 0.0
        %4556 = vmatpush1.msra.mxu0 0.0
        %4557 = vmatprep.subr.mxu0 0.0
        %4558 = vmatpush1.msra.mxu0 0.0
        %4559 = vmatprep.subr.mxu0 0.0
        %4560 = vmatpush1.msra.mxu0 0.0
        %4561 = vmatprep.subr.mxu0 0.0
        %4562 = vmatpush1.msra.mxu0 0.0
        %4563 = vmatprep.subr.mxu0 0.0
        %4564 = vmatpush1.msra.mxu0 0.0
        %4565 = vmatprep.subr.mxu0 0.0
        %4566 = vmatpush1.msra.mxu0 0.0
        %4567 = vmatprep.subr.mxu0 0.0
        %4568 = vmatpush1.msra.mxu0 0.0
        %4569 = vmatprep.subr.mxu0 0.0
        %4570 = vmatpush1.msra.mxu0 0.0
        %4571 = vmatprep.subr.mxu0 0.0
        %4572 = vmatpush1.msra.mxu0 0.0
        %4573 = vmatprep.subr.mxu0 0.0
        %4574 = vmatpush1.msra.mxu0 0.0
        %4575 = vmatprep.subr.mxu0 0.0
        %4576 = vmatpush1.msra.mxu0 0.0
        %4577 = vmatprep.subr.mxu0 0.0
        %4578 = vmatpush1.msra.mxu0 0.0
        %4579 = vmatprep.subr.mxu0 0.0
        %4580 = vmatpush1.msra.mxu0 0.0
        %4581 = vmatprep.subr.mxu0 0.0
        %4582 = vmatpush1.msra.mxu0 0.0
        %4583 = vmatprep.subr.mxu0 0.0
        %4584 = vmatpush1.msra.mxu0 0.0
        %4585 = vmatprep.subr.mxu0 0.0
        %4586 = vmatpush1.msra.mxu0 0.0
        %4587 = vmatprep.subr.mxu0 0.0
        %4588 = vmatpush1.msra.mxu0 0.0
        %4589 = vmatprep.subr.mxu0 0.0
        %4590 = vmatpush1.msra.mxu0 0.0
        %4591 = vmatprep.subr.mxu0 0.0
        %4592 = vmatpush1.msra.mxu0 0.0
        %4593 = vmatprep.subr.mxu0 0.0
        %4594 = vmatpush1.msra.mxu0 0.0
        %4595 = vmatprep.subr.mxu0 0.0
        %4596 = vmatpush1.msra.mxu0 0.0
        %4597 = vmatprep.subr.mxu0 0.0
        %4598 = vmatpush1.msra.mxu0 0.0
        %4599 = vmatprep.subr.mxu0 0.0
        %4600 = vmatpush1.msra.mxu0 0.0
        %4601 = vmatprep.subr.mxu0 0.0
        %4602 = vmatpush1.msra.mxu0 0.0
        %4603 = vmatprep.subr.mxu0 0.0
        %4604 = vmatpush1.msra.mxu0 0.0
        %4605 = vmatprep.mubr.f32.mxu0 0.0
        %v4606 = vand.u32 %v4023, 4294901760
        %4607 = vmatmul.mubr.f32.gmra.mrb[0].mxu0 %v4606
        %v4608 = vpop.f32.mrb[0].mxu0
        %v4609 = vadd.f32 %v4522, %v4608
        %v4610 = vpop.f32.mrb[0].mxu0
        %v4611 = vadd.f32 %v4524, %v4610
        %4612 = vmatprep.mubr.f32.mxu0 0.0
        %v4613 = vand.u32 %v4026, 4294901760
        %4614 = vmatmul.mubr.f32.gmra.mrb[0].mxu0 %v4613
        %v4615 = vpop.f32.mrb[0].mxu0
        %v4616 = vadd.f32 %v4529, %v4615
        %v4617 = vpop.f32.mrb[0].mxu0
        %v4618 = vadd.f32 %v4531, %v4617
        %4619 = vdwg.mxu0
        %v4620 = vand.u32 %v3997, 4294901760
        %4621 = vmatprep.subr.mxu0 %v4620
        %v4622 = vand.u32 %v3996, 4294901760
        %4623 = vmatpush1.msra.mxu0 %v4622
        %v4624 = vand.u32 %v4001, 4294901760
        %4625 = vmatprep.subr.mxu0 %v4624
        %v4626 = vand.u32 %v4000, 4294901760
        %4627 = vmatpush1.msra.mxu0 %v4626
        %v4628 = vand.u32 %v4005, 4294901760
        %4629 = vmatprep.subr.mxu0 %v4628
        %v4630 = vand.u32 %v4004, 4294901760
        %4631 = vmatpush1.msra.mxu0 %v4630
        %v4632 = vand.u32 %v4009, 4294901760
        %4633 = vmatprep.subr.mxu0 %v4632
        %v4634 = vand.u32 %v4008, 4294901760
        %4635 = vmatpush1.msra.mxu0 %v4634
        %4636 = vmatprep.subr.mxu0 0.0
        %4637 = vmatpush1.msra.mxu0 0.0
        %4638 = vmatprep.subr.mxu0 0.0
        %4639 = vmatpush1.msra.mxu0 0.0
        %4640 = vmatprep.subr.mxu0 0.0
        %4641 = vmatpush1.msra.mxu0 0.0
        %4642 = vmatprep.subr.mxu0 0.0
        %4643 = vmatpush1.msra.mxu0 0.0
        %4644 = vmatprep.subr.mxu0 0.0
        %4645 = vmatpush1.msra.mxu0 0.0
        %4646 = vmatprep.subr.mxu0 0.0
        %4647 = vmatpush1.msra.mxu0 0.0
        %4648 = vmatprep.subr.mxu0 0.0
        %4649 = vmatpush1.msra.mxu0 0.0
        %4650 = vmatprep.subr.mxu0 0.0
        %4651 = vmatpush1.msra.mxu0 0.0
        %4652 = vmatprep.subr.mxu0 0.0
        %4653 = vmatpush1.msra.mxu0 0.0
        %4654 = vmatprep.subr.mxu0 0.0
        %4655 = vmatpush1.msra.mxu0 0.0
        %4656 = vmatprep.subr.mxu0 0.0
        %4657 = vmatpush1.msra.mxu0 0.0
        %4658 = vmatprep.subr.mxu0 0.0
        %4659 = vmatpush1.msra.mxu0 0.0
        %4660 = vmatprep.subr.mxu0 0.0
        %4661 = vmatpush1.msra.mxu0 0.0
        %4662 = vmatprep.subr.mxu0 0.0
        %4663 = vmatpush1.msra.mxu0 0.0
        %4664 = vmatprep.subr.mxu0 0.0
        %4665 = vmatpush1.msra.mxu0 0.0
        %4666 = vmatprep.subr.mxu0 0.0
        %4667 = vmatpush1.msra.mxu0 0.0
        %4668 = vmatprep.subr.mxu0 0.0
        %4669 = vmatpush1.msra.mxu0 0.0
        %4670 = vmatprep.subr.mxu0 0.0
        %4671 = vmatpush1.msra.mxu0 0.0
        %4672 = vmatprep.subr.mxu0 0.0
        %4673 = vmatpush1.msra.mxu0 0.0
        %4674 = vmatprep.subr.mxu0 0.0
        %4675 = vmatpush1.msra.mxu0 0.0
        %4676 = vmatprep.subr.mxu0 0.0
        %4677 = vmatpush1.msra.mxu0 0.0
        %4678 = vmatprep.subr.mxu0 0.0
        %4679 = vmatpush1.msra.mxu0 0.0
        %4680 = vmatprep.subr.mxu0 0.0
        %4681 = vmatpush1.msra.mxu0 0.0
        %4682 = vmatprep.subr.mxu0 0.0
        %4683 = vmatpush1.msra.mxu0 0.0
        %4684 = vmatprep.subr.mxu0 0.0
        %4685 = vmatpush1.msra.mxu0 0.0
        %4686 = vmatprep.subr.mxu0 0.0
        %4687 = vmatpush1.msra.mxu0 0.0
        %4688 = vmatprep.subr.mxu0 0.0
        %4689 = vmatpush1.msra.mxu0 0.0
        %4690 = vmatprep.subr.mxu0 0.0
        %4691 = vmatpush1.msra.mxu0 0.0
        %4692 = vmatprep.mubr.f32.mxu0 0.0
        %v4693 = vand.u32 %v4023, 4294901760
        %v4694 = vsub.f32 %v4023, %v4693
        %v4695 = vand.u32 %v4694, 4294901760
        %v4696 = vsub.f32 %v4694, %v4695
        %v4697 = vand.u32 %v4696, 4294901760
        %4698 = vmatmul.mubr.f32.gmra.mrb[0].mxu0 %v4697
        %v4699 = vpop.f32.mrb[0].mxu0
        %v4700 = vadd.f32 %v4015, %v4699
        %v4701 = vpop.f32.mrb[0].mxu0
        %v4702 = vadd.f32 %v4015, %v4701
        %4703 = vmatprep.mubr.f32.mxu0 0.0
        %v4704 = vand.u32 %v4026, 4294901760
        %v4705 = vsub.f32 %v4026, %v4704
        %v4706 = vand.u32 %v4705, 4294901760
        %v4707 = vsub.f32 %v4705, %v4706
        %v4708 = vand.u32 %v4707, 4294901760
        %4709 = vmatmul.mubr.f32.gmra.mrb[0].mxu0 %v4708
        %v4710 = vpop.f32.mrb[0].mxu0
        %v4711 = vadd.f32 %v4020, %v4710
        %v4712 = vpop.f32.mrb[0].mxu0
        %v4713 = vadd.f32 %v4020, %v4712
        %4714 = vdwg.mxu0
        %v4715 = vand.u32 %v3997, 4294901760
        %v4716 = vsub.f32 %v3997, %v4715
        %v4717 = vand.u32 %v4716, 4294901760
        %v4718 = vsub.f32 %v4716, %v4717
        %v4719 = vand.u32 %v4718, 4294901760
        %4720 = vmatprep.subr.mxu0 %v4719
        %v4721 = vand.u32 %v3996, 4294901760
        %v4722 = vsub.f32 %v3996, %v4721
        %v4723 = vand.u32 %v4722, 4294901760
        %v4724 = vsub.f32 %v4722, %v4723
        %v4725 = vand.u32 %v4724, 4294901760
        %4726 = vmatpush1.msra.mxu0 %v4725
        %v4727 = vand.u32 %v4001, 4294901760
        %v4728 = vsub.f32 %v4001, %v4727
        %v4729 = vand.u32 %v4728, 4294901760
        %v4730 = vsub.f32 %v4728, %v4729
        %v4731 = vand.u32 %v4730, 4294901760
        %4732 = vmatprep.subr.mxu0 %v4731
        %v4733 = vand.u32 %v4000, 4294901760
        %v4734 = vsub.f32 %v4000, %v4733
        %v4735 = vand.u32 %v4734, 4294901760
        %v4736 = vsub.f32 %v4734, %v4735
        %v4737 = vand.u32 %v4736, 4294901760
        %4738 = vmatpush1.msra.mxu0 %v4737
        %v4739 = vand.u32 %v4005, 4294901760
        %v4740 = vsub.f32 %v4005, %v4739
        %v4741 = vand.u32 %v4740, 4294901760
        %v4742 = vsub.f32 %v4740, %v4741
        %v4743 = vand.u32 %v4742, 4294901760
        %4744 = vmatprep.subr.mxu0 %v4743
        %v4745 = vand.u32 %v4004, 4294901760
        %v4746 = vsub.f32 %v4004, %v4745
        %v4747 = vand.u32 %v4746, 4294901760
        %v4748 = vsub.f32 %v4746, %v4747
        %v4749 = vand.u32 %v4748, 4294901760
        %4750 = vmatpush1.msra.mxu0 %v4749
        %v4751 = vand.u32 %v4009, 4294901760
        %v4752 = vsub.f32 %v4009, %v4751
        %v4753 = vand.u32 %v4752, 4294901760
        %v4754 = vsub.f32 %v4752, %v4753
        %v4755 = vand.u32 %v4754, 4294901760
        %4756 = vmatprep.subr.mxu0 %v4755
        %v4757 = vand.u32 %v4008, 4294901760
        %v4758 = vsub.f32 %v4008, %v4757
        %v4759 = vand.u32 %v4758, 4294901760
        %v4760 = vsub.f32 %v4758, %v4759
        %v4761 = vand.u32 %v4760, 4294901760
        %4762 = vmatpush1.msra.mxu0 %v4761
        %4763 = vmatprep.subr.mxu0 0.0
        %4764 = vmatpush1.msra.mxu0 0.0
        %4765 = vmatprep.subr.mxu0 0.0
        %4766 = vmatpush1.msra.mxu0 0.0
        %4767 = vmatprep.subr.mxu0 0.0
        %4768 = vmatpush1.msra.mxu0 0.0
        %4769 = vmatprep.subr.mxu0 0.0
        %4770 = vmatpush1.msra.mxu0 0.0
        %4771 = vmatprep.subr.mxu0 0.0
        %4772 = vmatpush1.msra.mxu0 0.0
        %4773 = vmatprep.subr.mxu0 0.0
        %4774 = vmatpush1.msra.mxu0 0.0
        %4775 = vmatprep.subr.mxu0 0.0
        %4776 = vmatpush1.msra.mxu0 0.0
        %4777 = vmatprep.subr.mxu0 0.0
        %4778 = vmatpush1.msra.mxu0 0.0
        %4779 = vmatprep.subr.mxu0 0.0
        %4780 = vmatpush1.msra.mxu0 0.0
        %4781 = vmatprep.subr.mxu0 0.0
        %4782 = vmatpush1.msra.mxu0 0.0
        %4783 = vmatprep.subr.mxu0 0.0
        %4784 = vmatpush1.msra.mxu0 0.0
        %4785 = vmatprep.subr.mxu0 0.0
        %4786 = vmatpush1.msra.mxu0 0.0
        %4787 = vmatprep.subr.mxu0 0.0
        %4788 = vmatpush1.msra.mxu0 0.0
        %4789 = vmatprep.subr.mxu0 0.0
        %4790 = vmatpush1.msra.mxu0 0.0
        %4791 = vmatprep.subr.mxu0 0.0
        %4792 = vmatpush1.msra.mxu0 0.0
        %4793 = vmatprep.subr.mxu0 0.0
        %4794 = vmatpush1.msra.mxu0 0.0
        %4795 = vmatprep.subr.mxu0 0.0
        %4796 = vmatpush1.msra.mxu0 0.0
        %4797 = vmatprep.subr.mxu0 0.0
        %4798 = vmatpush1.msra.mxu0 0.0
        %4799 = vmatprep.subr.mxu0 0.0
        %4800 = vmatpush1.msra.mxu0 0.0
        %4801 = vmatprep.subr.mxu0 0.0
        %4802 = vmatpush1.msra.mxu0 0.0
        %4803 = vmatprep.subr.mxu0 0.0
        %4804 = vmatpush1.msra.mxu0 0.0
        %4805 = vmatprep.subr.mxu0 0.0
        %4806 = vmatpush1.msra.mxu0 0.0
        %4807 = vmatprep.subr.mxu0 0.0
        %4808 = vmatpush1.msra.mxu0 0.0
        %4809 = vmatprep.subr.mxu0 0.0
        %4810 = vmatpush1.msra.mxu0 0.0
        %4811 = vmatprep.subr.mxu0 0.0
        %4812 = vmatpush1.msra.mxu0 0.0
        %4813 = vmatprep.subr.mxu0 0.0
        %4814 = vmatpush1.msra.mxu0 0.0
        %4815 = vmatprep.subr.mxu0 0.0
        %4816 = vmatpush1.msra.mxu0 0.0
        %4817 = vmatprep.subr.mxu0 0.0
        %4818 = vmatpush1.msra.mxu0 0.0
        %4819 = vmatprep.mubr.f32.mxu0 0.0
        %v4820 = vand.u32 %v4023, 4294901760
        %4821 = vmatmul.mubr.f32.gmra.mrb[0].mxu0 %v4820
        %v4822 = vpop.f32.mrb[0].mxu0
        %v4823 = vadd.f32 %v4700, %v4822
        %v4824 = vpop.f32.mrb[0].mxu0
        %v4825 = vadd.f32 %v4702, %v4824
        %4826 = vmatprep.mubr.f32.mxu0 0.0
        %v4827 = vand.u32 %v4026, 4294901760
        %4828 = vmatmul.mubr.f32.gmra.mrb[0].mxu0 %v4827
        %v4829 = vpop.f32.mrb[0].mxu0
        %v4830 = vadd.f32 %v4711, %v4829
        %v4831 = vpop.f32.mrb[0].mxu0
        %v4832 = vadd.f32 %v4713, %v4831
        %4833 = vdwg.mxu0
        %v4834 = vand.u32 %v3997, 4294901760
        %v4835 = vsub.f32 %v3997, %v4834
        %4836 = vmatprep.subr.mxu0 %v4835
        %v4837 = vand.u32 %v3996, 4294901760
        %v4838 = vsub.f32 %v3996, %v4837
        %4839 = vmatpush1.msra.mxu0 %v4838
        %v4840 = vand.u32 %v4001, 4294901760
        %v4841 = vsub.f32 %v4001, %v4840
        %4842 = vmatprep.subr.mxu0 %v4841
        %v4843 = vand.u32 %v4000, 4294901760
        %v4844 = vsub.f32 %v4000, %v4843
        %4845 = vmatpush1.msra.mxu0 %v4844
        %v4846 = vand.u32 %v4005, 4294901760
        %v4847 = vsub.f32 %v4005, %v4846
        %4848 = vmatprep.subr.mxu0 %v4847
        %v4849 = vand.u32 %v4004, 4294901760
        %v4850 = vsub.f32 %v4004, %v4849
        %4851 = vmatpush1.msra.mxu0 %v4850
        %v4852 = vand.u32 %v4009, 4294901760
        %v4853 = vsub.f32 %v4009, %v4852
        %4854 = vmatprep.subr.mxu0 %v4853
        %v4855 = vand.u32 %v4008, 4294901760
        %v4856 = vsub.f32 %v4008, %v4855
        %4857 = vmatpush1.msra.mxu0 %v4856
        %4858 = vmatprep.subr.mxu0 0.0
        %4859 = vmatpush1.msra.mxu0 0.0
        %4860 = vmatprep.subr.mxu0 0.0
        %4861 = vmatpush1.msra.mxu0 0.0
        %4862 = vmatprep.subr.mxu0 0.0
        %4863 = vmatpush1.msra.mxu0 0.0
        %4864 = vmatprep.subr.mxu0 0.0
        %4865 = vmatpush1.msra.mxu0 0.0
        %4866 = vmatprep.subr.mxu0 0.0
        %4867 = vmatpush1.msra.mxu0 0.0
        %4868 = vmatprep.subr.mxu0 0.0
        %4869 = vmatpush1.msra.mxu0 0.0
        %4870 = vmatprep.subr.mxu0 0.0
        %4871 = vmatpush1.msra.mxu0 0.0
        %4872 = vmatprep.subr.mxu0 0.0
        %4873 = vmatpush1.msra.mxu0 0.0
        %4874 = vmatprep.subr.mxu0 0.0
        %4875 = vmatpush1.msra.mxu0 0.0
        %4876 = vmatprep.subr.mxu0 0.0
        %4877 = vmatpush1.msra.mxu0 0.0
        %4878 = vmatprep.subr.mxu0 0.0
        %4879 = vmatpush1.msra.mxu0 0.0
        %4880 = vmatprep.subr.mxu0 0.0
        %4881 = vmatpush1.msra.mxu0 0.0
        %4882 = vmatprep.subr.mxu0 0.0
        %4883 = vmatpush1.msra.mxu0 0.0
        %4884 = vmatprep.subr.mxu0 0.0
        %4885 = vmatpush1.msra.mxu0 0.0
        %4886 = vmatprep.subr.mxu0 0.0
        %4887 = vmatpush1.msra.mxu0 0.0
        %4888 = vmatprep.subr.mxu0 0.0
        %4889 = vmatpush1.msra.mxu0 0.0
        %4890 = vmatprep.subr.mxu0 0.0
        %4891 = vmatpush1.msra.mxu0 0.0
        %4892 = vmatprep.subr.mxu0 0.0
        %4893 = vmatpush1.msra.mxu0 0.0
        %4894 = vmatprep.subr.mxu0 0.0
        %4895 = vmatpush1.msra.mxu0 0.0
        %4896 = vmatprep.subr.mxu0 0.0
        %4897 = vmatpush1.msra.mxu0 0.0
        %4898 = vmatprep.subr.mxu0 0.0
        %4899 = vmatpush1.msra.mxu0 0.0
        %4900 = vmatprep.subr.mxu0 0.0
        %4901 = vmatpush1.msra.mxu0 0.0
        %4902 = vmatprep.subr.mxu0 0.0
        %4903 = vmatpush1.msra.mxu0 0.0
        %4904 = vmatprep.subr.mxu0 0.0
        %4905 = vmatpush1.msra.mxu0 0.0
        %4906 = vmatprep.subr.mxu0 0.0
        %4907 = vmatpush1.msra.mxu0 0.0
        %4908 = vmatprep.subr.mxu0 0.0
        %4909 = vmatpush1.msra.mxu0 0.0
        %4910 = vmatprep.subr.mxu0 0.0
        %4911 = vmatpush1.msra.mxu0 0.0
        %4912 = vmatprep.subr.mxu0 0.0
        %4913 = vmatpush1.msra.mxu0 0.0
        %4914 = vmatprep.mubr.f32.mxu0 0.0
        %v4915 = vand.u32 %v4023, 4294901760
        %v4916 = vsub.f32 %v4023, %v4915
        %4917 = vmatmul.mubr.f32.gmra.mrb[0].mxu0 %v4916
        %v4918 = vpop.f32.mrb[0].mxu0
        %v4919 = vadd.f32 %v4823, %v4918
        %v4920 = vpop.f32.mrb[0].mxu0
        %v4921 = vadd.f32 %v4825, %v4920
        %4922 = vmatprep.mubr.f32.mxu0 0.0
        %v4923 = vand.u32 %v4026, 4294901760
        %v4924 = vsub.f32 %v4026, %v4923
        %4925 = vmatmul.mubr.f32.gmra.mrb[0].mxu0 %v4924
        %v4926 = vpop.f32.mrb[0].mxu0
        %v4927 = vadd.f32 %v4830, %v4926
        %v4928 = vpop.f32.mrb[0].mxu0
        %v4929 = vadd.f32 %v4832, %v4928
        %4930 = vdwg.mxu0
        %v4931 = vand.u32 %v3997, 4294901760
        %4932 = vmatprep.subr.mxu0 %v4931
        %v4933 = vand.u32 %v3996, 4294901760
        %4934 = vmatpush1.msra.mxu0 %v4933
        %v4935 = vand.u32 %v4001, 4294901760
        %4936 = vmatprep.subr.mxu0 %v4935
        %v4937 = vand.u32 %v4000, 4294901760
        %4938 = vmatpush1.msra.mxu0 %v4937
        %v4939 = vand.u32 %v4005, 4294901760
        %4940 = vmatprep.subr.mxu0 %v4939
        %v4941 = vand.u32 %v4004, 4294901760
        %4942 = vmatpush1.msra.mxu0 %v4941
        %v4943 = vand.u32 %v4009, 4294901760
        %4944 = vmatprep.subr.mxu0 %v4943
        %v4945 = vand.u32 %v4008, 4294901760
        %4946 = vmatpush1.msra.mxu0 %v4945
        %4947 = vmatprep.subr.mxu0 0.0
        %4948 = vmatpush1.msra.mxu0 0.0
        %4949 = vmatprep.subr.mxu0 0.0
        %4950 = vmatpush1.msra.mxu0 0.0
        %4951 = vmatprep.subr.mxu0 0.0
        %4952 = vmatpush1.msra.mxu0 0.0
        %4953 = vmatprep.subr.mxu0 0.0
        %4954 = vmatpush1.msra.mxu0 0.0
        %4955 = vmatprep.subr.mxu0 0.0
        %4956 = vmatpush1.msra.mxu0 0.0
        %4957 = vmatprep.subr.mxu0 0.0
        %4958 = vmatpush1.msra.mxu0 0.0
        %4959 = vmatprep.subr.mxu0 0.0
        %4960 = vmatpush1.msra.mxu0 0.0
        %4961 = vmatprep.subr.mxu0 0.0
        %4962 = vmatpush1.msra.mxu0 0.0
        %4963 = vmatprep.subr.mxu0 0.0
        %4964 = vmatpush1.msra.mxu0 0.0
        %4965 = vmatprep.subr.mxu0 0.0
        %4966 = vmatpush1.msra.mxu0 0.0
        %4967 = vmatprep.subr.mxu0 0.0
        %4968 = vmatpush1.msra.mxu0 0.0
        %4969 = vmatprep.subr.mxu0 0.0
        %4970 = vmatpush1.msra.mxu0 0.0
        %4971 = vmatprep.subr.mxu0 0.0
        %4972 = vmatpush1.msra.mxu0 0.0
        %4973 = vmatprep.subr.mxu0 0.0
        %4974 = vmatpush1.msra.mxu0 0.0
        %4975 = vmatprep.subr.mxu0 0.0
        %4976 = vmatpush1.msra.mxu0 0.0
        %4977 = vmatprep.subr.mxu0 0.0
        %4978 = vmatpush1.msra.mxu0 0.0
        %4979 = vmatprep.subr.mxu0 0.0
        %4980 = vmatpush1.msra.mxu0 0.0
        %4981 = vmatprep.subr.mxu0 0.0
        %4982 = vmatpush1.msra.mxu0 0.0
        %4983 = vmatprep.subr.mxu0 0.0
        %4984 = vmatpush1.msra.mxu0 0.0
        %4985 = vmatprep.subr.mxu0 0.0
        %4986 = vmatpush1.msra.mxu0 0.0
        %4987 = vmatprep.subr.mxu0 0.0
        %4988 = vmatpush1.msra.mxu0 0.0
        %4989 = vmatprep.subr.mxu0 0.0
        %4990 = vmatpush1.msra.mxu0 0.0
        %4991 = vmatprep.subr.mxu0 0.0
        %4992 = vmatpush1.msra.mxu0 0.0
        %4993 = vmatprep.subr.mxu0 0.0
        %4994 = vmatpush1.msra.mxu0 0.0
        %4995 = vmatprep.subr.mxu0 0.0
        %4996 = vmatpush1.msra.mxu0 0.0
        %4997 = vmatprep.subr.mxu0 0.0
        %4998 = vmatpush1.msra.mxu0 0.0
        %4999 = vmatprep.subr.mxu0 0.0
        %5000 = vmatpush1.msra.mxu0 0.0
        %5001 = vmatprep.subr.mxu0 0.0
        %5002 = vmatpush1.msra.mxu0 0.0
        %5003 = vmatprep.mubr.f32.mxu0 0.0
        %v5004 = vand.u32 %v4023, 4294901760
        %v5005 = vsub.f32 %v4023, %v5004
        %v5006 = vand.u32 %v5005, 4294901760
        %5007 = vmatmul.mubr.f32.gmra.mrb[0].mxu0 %v5006
        %v5008 = vpop.f32.mrb[0].mxu0
        %v5009 = vadd.f32 %v4919, %v5008
        %v5010 = vpop.f32.mrb[0].mxu0
        %v5011 = vadd.f32 %v4921, %v5010
        %5012 = vmatprep.mubr.f32.mxu0 0.0
        %v5013 = vand.u32 %v4026, 4294901760
        %v5014 = vsub.f32 %v4026, %v5013
        %v5015 = vand.u32 %v5014, 4294901760
        %5016 = vmatmul.mubr.f32.gmra.mrb[0].mxu0 %v5015
        %v5017 = vpop.f32.mrb[0].mxu0
        %v5018 = vadd.f32 %v4927, %v5017
        %v5019 = vpop.f32.mrb[0].mxu0
        %v5020 = vadd.f32 %v4929, %v5019
        %5021 = vdwg.mxu0
        %v5022 = vand.u32 %v3997, 4294901760
        %v5023 = vsub.f32 %v3997, %v5022
        %v5024 = vand.u32 %v5023, 4294901760
        %5025 = vmatprep.subr.mxu0 %v5024
        %v5026 = vand.u32 %v3996, 4294901760
        %v5027 = vsub.f32 %v3996, %v5026
        %v5028 = vand.u32 %v5027, 4294901760
        %5029 = vmatpush1.msra.mxu0 %v5028
        %v5030 = vand.u32 %v4001, 4294901760
        %v5031 = vsub.f32 %v4001, %v5030
        %v5032 = vand.u32 %v5031, 4294901760
        %5033 = vmatprep.subr.mxu0 %v5032
        %v5034 = vand.u32 %v4000, 4294901760
        %v5035 = vsub.f32 %v4000, %v5034
        %v5036 = vand.u32 %v5035, 4294901760
        %5037 = vmatpush1.msra.mxu0 %v5036
        %v5038 = vand.u32 %v4005, 4294901760
        %v5039 = vsub.f32 %v4005, %v5038
        %v5040 = vand.u32 %v5039, 4294901760
        %5041 = vmatprep.subr.mxu0 %v5040
        %v5042 = vand.u32 %v4004, 4294901760
        %v5043 = vsub.f32 %v4004, %v5042
        %v5044 = vand.u32 %v5043, 4294901760
        %5045 = vmatpush1.msra.mxu0 %v5044
        %v5046 = vand.u32 %v4009, 4294901760
        %v5047 = vsub.f32 %v4009, %v5046
        %v5048 = vand.u32 %v5047, 4294901760
        %5049 = vmatprep.subr.mxu0 %v5048
        %v5050 = vand.u32 %v4008, 4294901760
        %v5051 = vsub.f32 %v4008, %v5050
        %v5052 = vand.u32 %v5051, 4294901760
        %5053 = vmatpush1.msra.mxu0 %v5052
        %5054 = vmatprep.subr.mxu0 0.0
        %5055 = vmatpush1.msra.mxu0 0.0
        %5056 = vmatprep.subr.mxu0 0.0
        %5057 = vmatpush1.msra.mxu0 0.0
        %5058 = vmatprep.subr.mxu0 0.0
        %5059 = vmatpush1.msra.mxu0 0.0
        %5060 = vmatprep.subr.mxu0 0.0
        %5061 = vmatpush1.msra.mxu0 0.0
        %5062 = vmatprep.subr.mxu0 0.0
        %5063 = vmatpush1.msra.mxu0 0.0
        %5064 = vmatprep.subr.mxu0 0.0
        %5065 = vmatpush1.msra.mxu0 0.0
        %5066 = vmatprep.subr.mxu0 0.0
        %5067 = vmatpush1.msra.mxu0 0.0
        %5068 = vmatprep.subr.mxu0 0.0
        %5069 = vmatpush1.msra.mxu0 0.0
        %5070 = vmatprep.subr.mxu0 0.0
        %5071 = vmatpush1.msra.mxu0 0.0
        %5072 = vmatprep.subr.mxu0 0.0
        %5073 = vmatpush1.msra.mxu0 0.0
        %5074 = vmatprep.subr.mxu0 0.0
        %5075 = vmatpush1.msra.mxu0 0.0
        %5076 = vmatprep.subr.mxu0 0.0
        %5077 = vmatpush1.msra.mxu0 0.0
        %5078 = vmatprep.subr.mxu0 0.0
        %5079 = vmatpush1.msra.mxu0 0.0
        %5080 = vmatprep.subr.mxu0 0.0
        %5081 = vmatpush1.msra.mxu0 0.0
        %5082 = vmatprep.subr.mxu0 0.0
        %5083 = vmatpush1.msra.mxu0 0.0
        %5084 = vmatprep.subr.mxu0 0.0
        %5085 = vmatpush1.msra.mxu0 0.0
        %5086 = vmatprep.subr.mxu0 0.0
        %5087 = vmatpush1.msra.mxu0 0.0
        %5088 = vmatprep.subr.mxu0 0.0
        %5089 = vmatpush1.msra.mxu0 0.0
        %5090 = vmatprep.subr.mxu0 0.0
        %5091 = vmatpush1.msra.mxu0 0.0
        %5092 = vmatprep.subr.mxu0 0.0
        %5093 = vmatpush1.msra.mxu0 0.0
        %5094 = vmatprep.subr.mxu0 0.0
        %5095 = vmatpush1.msra.mxu0 0.0
        %5096 = vmatprep.subr.mxu0 0.0
        %5097 = vmatpush1.msra.mxu0 0.0
        %5098 = vmatprep.subr.mxu0 0.0
        %5099 = vmatpush1.msra.mxu0 0.0
        %5100 = vmatprep.subr.mxu0 0.0
        %5101 = vmatpush1.msra.mxu0 0.0
        %5102 = vmatprep.subr.mxu0 0.0
        %5103 = vmatpush1.msra.mxu0 0.0
        %5104 = vmatprep.subr.mxu0 0.0
        %5105 = vmatpush1.msra.mxu0 0.0
        %5106 = vmatprep.subr.mxu0 0.0
        %5107 = vmatpush1.msra.mxu0 0.0
        %5108 = vmatprep.subr.mxu0 0.0
        %5109 = vmatpush1.msra.mxu0 0.0
        %5110 = vmatprep.mubr.f32.mxu0 0.0
        %v5111 = vand.u32 %v4023, 4294901760
        %5112 = vmatmul.mubr.f32.gmra.mrb[0].mxu0 %v5111
        %v5113 = vpop.f32.mrb[0].mxu0
        %v5114 = vadd.f32 %v5009, %v5113
        %v5115 = vpop.f32.mrb[0].mxu0
        %v5116 = vadd.f32 %v5011, %v5115
        %5117 = vmatprep.mubr.f32.mxu0 0.0
        %v5118 = vand.u32 %v4026, 4294901760
        %5119 = vmatmul.mubr.f32.gmra.mrb[0].mxu0 %v5118
        %v5120 = vpop.f32.mrb[0].mxu0
        %v5121 = vadd.f32 %v5018, %v5120
        %v5122 = vpop.f32.mrb[0].mxu0
        %v5123 = vadd.f32 %v5020, %v5122
        %5124 = vdwg.mxu0
        %v5125 = vand.u32 %v3997, 4294901760
        %5126 = vmatprep.subr.mxu0 %v5125
        %v5127 = vand.u32 %v3996, 4294901760
        %5128 = vmatpush1.msra.mxu0 %v5127
        %v5129 = vand.u32 %v4001, 4294901760
        %5130 = vmatprep.subr.mxu0 %v5129
        %v5131 = vand.u32 %v4000, 4294901760
        %5132 = vmatpush1.msra.mxu0 %v5131
        %v5133 = vand.u32 %v4005, 4294901760
        %5134 = vmatprep.subr.mxu0 %v5133
        %v5135 = vand.u32 %v4004, 4294901760
        %5136 = vmatpush1.msra.mxu0 %v5135
        %v5137 = vand.u32 %v4009, 4294901760
        %5138 = vmatprep.subr.mxu0 %v5137
        %v5139 = vand.u32 %v4008, 4294901760
        %5140 = vmatpush1.msra.mxu0 %v5139
        %5141 = vmatprep.subr.mxu0 0.0
        %5142 = vmatpush1.msra.mxu0 0.0
        %5143 = vmatprep.subr.mxu0 0.0
        %5144 = vmatpush1.msra.mxu0 0.0
        %5145 = vmatprep.subr.mxu0 0.0
        %5146 = vmatpush1.msra.mxu0 0.0
        %5147 = vmatprep.subr.mxu0 0.0
        %5148 = vmatpush1.msra.mxu0 0.0
        %5149 = vmatprep.subr.mxu0 0.0
        %5150 = vmatpush1.msra.mxu0 0.0
        %5151 = vmatprep.subr.mxu0 0.0
        %5152 = vmatpush1.msra.mxu0 0.0
        %5153 = vmatprep.subr.mxu0 0.0
        %5154 = vmatpush1.msra.mxu0 0.0
        %5155 = vmatprep.subr.mxu0 0.0
        %5156 = vmatpush1.msra.mxu0 0.0
        %5157 = vmatprep.subr.mxu0 0.0
        %5158 = vmatpush1.msra.mxu0 0.0
        %5159 = vmatprep.subr.mxu0 0.0
        %5160 = vmatpush1.msra.mxu0 0.0
        %5161 = vmatprep.subr.mxu0 0.0
        %5162 = vmatpush1.msra.mxu0 0.0
        %5163 = vmatprep.subr.mxu0 0.0
        %5164 = vmatpush1.msra.mxu0 0.0
        %5165 = vmatprep.subr.mxu0 0.0
        %5166 = vmatpush1.msra.mxu0 0.0
        %5167 = vmatprep.subr.mxu0 0.0
        %5168 = vmatpush1.msra.mxu0 0.0
        %5169 = vmatprep.subr.mxu0 0.0
        %5170 = vmatpush1.msra.mxu0 0.0
        %5171 = vmatprep.subr.mxu0 0.0
        %5172 = vmatpush1.msra.mxu0 0.0
        %5173 = vmatprep.subr.mxu0 0.0
        %5174 = vmatpush1.msra.mxu0 0.0
        %5175 = vmatprep.subr.mxu0 0.0
        %5176 = vmatpush1.msra.mxu0 0.0
        %5177 = vmatprep.subr.mxu0 0.0
        %5178 = vmatpush1.msra.mxu0 0.0
        %5179 = vmatprep.subr.mxu0 0.0
        %5180 = vmatpush1.msra.mxu0 0.0
        %5181 = vmatprep.subr.mxu0 0.0
        %5182 = vmatpush1.msra.mxu0 0.0
        %5183 = vmatprep.subr.mxu0 0.0
        %5184 = vmatpush1.msra.mxu0 0.0
        %5185 = vmatprep.subr.mxu0 0.0
        %5186 = vmatpush1.msra.mxu0 0.0
        %5187 = vmatprep.subr.mxu0 0.0
        %5188 = vmatpush1.msra.mxu0 0.0
        %5189 = vmatprep.subr.mxu0 0.0
        %5190 = vmatpush1.msra.mxu0 0.0
        %5191 = vmatprep.subr.mxu0 0.0
        %5192 = vmatpush1.msra.mxu0 0.0
        %5193 = vmatprep.subr.mxu0 0.0
        %5194 = vmatpush1.msra.mxu0 0.0
        %5195 = vmatprep.subr.mxu0 0.0
        %5196 = vmatpush1.msra.mxu0 0.0
        %5197 = vmatprep.mubr.f32.mxu0 0.0
        %v5198 = vand.u32 %v4023, 4294901760
        %5199 = vmatmul.mubr.f32.gmra.mrb[0].mxu0 %v5198
        %v5200 = vpop.f32.mrb[0].mxu0
        %v5201 = vadd.f32 %v5114, %v5200
        %v5202 = vpop.f32.mrb[0].mxu0
        %v5203 = vadd.f32 %v5116, %v5202
        %5204 = vmatprep.mubr.f32.mxu0 0.0
        %v5205 = vand.u32 %v4026, 4294901760
        %5206 = vmatmul.mubr.f32.gmra.mrb[0].mxu0 %v5205
        %v5207 = vpop.f32.mrb[0].mxu0
        %v5208 = vadd.f32 %v5121, %v5207
        %v5209 = vpop.f32.mrb[0].mxu0
        %v5210 = vadd.f32 %v5123, %v5209
        %5211 = vdwg.mxu0
        %v5212 = vmax.f32 %v4609, 0.0
        %v5213 = vmax.f32 %v4611, 0.0
        %v5214 = vmax.f32 %v5201, 0.0
        %v5215 = vmax.f32 %v5203, 0.0
        %v5216 = vmax.f32 %v4616, 0.0
        %v5217 = vmax.f32 %v4618, 0.0
        %v5218 = vmax.f32 %v5208, 0.0
        %v5219 = vmax.f32 %v5210, 0.0
        %5221 = vset.pattern.permute.xlu0 0
        %5222 = vperm.xlu0 %5221, %v2677
        %v5223 = vpop.permute.xlu0 %5222
        %v5225 = vmul.f32 %v2667, %v5223
        %v5226 = vmul.f32 %v2668, %v5223
        %v5227 = vmul.f32 %v2669, %v5223
        %v5228 = vmul.f32 %v2670, %v5223
        %v5229 = vrot.slane %v5225, 4
        %v5230 = vadd.f32 %v5225, %v5229
        %v5231 = vrot.slane %v5230, 2
        %v5232 = vadd.f32 %v5230, %v5231
        %v5233 = vrot.slane %v5232, 1
        %v5234 = vadd.f32 %v5232, %v5233
        %v5235 = vrot.slane %v5226, 4
        %v5236 = vadd.f32 %v5226, %v5235
        %v5237 = vrot.slane %v5236, 2
        %v5238 = vadd.f32 %v5236, %v5237
        %v5239 = vrot.slane %v5238, 1
        %v5240 = vadd.f32 %v5238, %v5239
        %v5241 = vrot.slane %v5227, 4
        %v5242 = vadd.f32 %v5227, %v5241
        %v5243 = vrot.slane %v5242, 2
        %v5244 = vadd.f32 %v5242, %v5243
        %v5245 = vrot.slane %v5244, 1
        %v5246 = vadd.f32 %v5244, %v5245
        %v5247 = vrot.slane %v5228, 4
        %v5248 = vadd.f32 %v5228, %v5247
        %v5249 = vrot.slane %v5248, 2
        %v5250 = vadd.f32 %v5248, %v5249
        %v5251 = vrot.slane %v5250, 1
        %v5252 = vadd.f32 %v5250, %v5251
        %5254 = vset.pattern.permute.xlu0 0
        %5255 = vperm.xlu0 %5254, %v2678
        %v5256 = vpop.permute.xlu0 %5255
        %5259 = vset.pattern.permute.xlu0 0
        %5260 = vperm.xlu0 %5259, %v2679
        %v5261 = vpop.permute.xlu0 %5260
        %v5263 = vmul.f32 %v5212, %v5256
        %v5264 = vmul.f32 %v5213, %v5256
        %v5265 = vmul.f32 %v5214, %v5256
        %v5266 = vmul.f32 %v5215, %v5256
        %v5267 = vmul.f32 %v5216, %v5261
        %v5268 = vmul.f32 %v5217, %v5261
        %v5269 = vmul.f32 %v5218, %v5261
        %v5270 = vmul.f32 %v5219, %v5261
        %v5271 = vadd.f32 %v5263, %v5267
        %v5272 = vrot.slane %v5271, 4
        %v5273 = vadd.f32 %v5271, %v5272
        %v5274 = vrot.slane %v5273, 2
        %v5275 = vadd.f32 %v5273, %v5274
        %v5276 = vrot.slane %v5275, 1
        %v5277 = vadd.f32 %v5275, %v5276
        %v5278 = vadd.f32 %v5264, %v5268
        %v5279 = vrot.slane %v5278, 4
        %v5280 = vadd.f32 %v5278, %v5279
        %v5281 = vrot.slane %v5280, 2
        %v5282 = vadd.f32 %v5280, %v5281
        %v5283 = vrot.slane %v5282, 1
        %v5284 = vadd.f32 %v5282, %v5283
        %v5285 = vadd.f32 %v5265, %v5269
        %v5286 = vrot.slane %v5285, 4
        %v5287 = vadd.f32 %v5285, %v5286
        %v5288 = vrot.slane %v5287, 2
        %v5289 = vadd.f32 %v5287, %v5288
        %v5290 = vrot.slane %v5289, 1
        %v5291 = vadd.f32 %v5289, %v5290
        %v5292 = vadd.f32 %v5266, %v5270
        %v5293 = vrot.slane %v5292, 4
        %v5294 = vadd.f32 %v5292, %v5293
        %v5295 = vrot.slane %v5294, 2
        %v5296 = vadd.f32 %v5294, %v5295
        %v5297 = vrot.slane %v5296, 1
        %v5298 = vadd.f32 %v5296, %v5297
        %v5299 = vadd.f32 %v5234, %v5277
        %v5300 = vadd.f32 %v5240, %v5284
        %v5301 = vadd.f32 %v5246, %v5291
        %v5302 = vadd.f32 %v5252, %v5298
        %5304 = vset.pattern.permute.xlu0 0
        %5305 = vperm.xlu0 %5304, %v2680
        %v5306 = vpop.permute.xlu0 %5305
        %v5308 = vadd.f32 %v5299, %v5306
        %v5309 = vadd.f32 %v5300, %v5306
        %v5310 = vadd.f32 %v5301, %v5306
        %v5311 = vadd.f32 %v5302, %v5306
        %v5312 = vxor.u32 %v5308, 2147483648
        %v5313 = vxor.u32 %v5309, 2147483648
        %v5314 = vxor.u32 %v5310, 2147483648
        %v5315 = vxor.u32 %v5311, 2147483648
        %v5316 = vmul.f32 %v5312, 1.442695
        %v5317 = vpow.pop %v5316
        %v5318 = vmul.f32 %v5313, 1.442695
        %v5319 = vpow.pop %v5318
        %v5320 = vmul.f32 %v5314, 1.442695
        %v5321 = vpow.pop %v5320
        %v5322 = vmul.f32 %v5315, 1.442695
        %v5323 = vpow.pop %v5322
        %v5324 = vadd.f32 %v5317, 1.0
        %v5325 = vadd.f32 %v5319, 1.0
        %v5326 = vadd.f32 %v5321, 1.0
        %v5327 = vadd.f32 %v5323, 1.0
        %v5328 = vrcp.pop %v5324
        %v5329 = vmul.f32 1.0, %v5328
        %v5330 = vrcp.pop %v5325
        %v5331 = vmul.f32 1.0, %v5330
        %v5332 = vrcp.pop %v5326
        %v5333 = vmul.f32 1.0, %v5332
        %v5334 = vrcp.pop %v5327
        %v5335 = vmul.f32 1.0, %v5334
        %v5340 = vcombine.low %v5329, %v5331
        %v5341 = vcombine.low %v5333, %v5335
        %v5343 = vunpack.c.l.s4 1966171168
        %v5344 = vunpack.c.0.s8 %v5343
        %v5345 = vlaneseq
        %v5346 = vshrl.u32 %v5345, 7
        %v5347 = vsub.s32 %v5344, %v5346
        %v5348 = vrot.slane %v5340, %v5347
        %v5350 = vunpack.c.l.s4 1966171168
        %v5351 = vunpack.c.0.s8 %v5350
        %v5352 = vlaneseq
        %v5353 = vshrl.u32 %v5352, 7
        %v5354 = vsub.s32 %v5351, %v5353
        %v5355 = vrot.slane %v5341, %v5354
        %v5356 = vcombine.low %v5348, %v5355
        %v5358 = vunpack.c.l.s4 1966171168
        %v5359 = vunpack.c.0.s8 %v5358
        %v5360 = vlaneseq
        %v5361 = vshrl.u32 %v5360, 7
        %v5362 = vsub.s32 %v5359, %v5361
        %v5363 = vrot.slane %v5356, %v5362
        %v5365 = vlaneseq
        %vm5366 = vcmp.ge.s32.totalorder %v5365, 0
        %vm5367 = vcmp.lt.s32.totalorder %v5365, 512
        %vm5368 = vmand %vm5366, %vm5367
        %5369 = vst.msk [vmem:[%s284] sm:$0xf] %vm5368, %v5363
        %s5370 = sand.u32 %s186, 1
        %s5371 = scalar_lea.sflag [#allocation3], %s5370
        %s5372 = sand.u32 %s186, 1
        %s5373 = smul.addr %s5372, 4
        %s5374 = scalar_lea.vmem [#allocation2], %s5373
        // Predicated region
        $region49: #{nfc_forward.1} parent=47 // pred_check
          %p5375 = pneg %p196
        $region50: #{nfc_forward.1} parent=47 // pred_check_branch
          %5377 = sbr.rel (%p5375) target = $region52
        $region51: #{nfc_forward.1} parent=47 // pred_region
          %s5378 = smul.u32 4, %s21
          %s5380 = ssub.s32 64, 64
          %5381 = vsyncadd %s5371, %s5380
          %s5382 = smul.addr %s5378, 16
          %s5383 = scalar_lea.hbm %s7, %s5382
          %s5385 = sshll.u32 %s5374, 4
          %s5386 = int_to_ptr.vmem [resolvable:$true] %s5385
          %5388 = dma.vmem_to_hbm [thread:$0]  %s5386, 64, %s5383, %s5371
        $region52: #{nfc_forward.1} parent=47 // pred_fallthru
          _
      $region48: #{nfc_forward.1} parent=5 // pred_fallthru
        _
      %p5389 = scmp.le.s32.totalorder 2, %s16
      // Predicated region
      $region53: #{nfc_forward.1} parent=5 // pred_check
        %p5390 = pneg %p5389
      $region54: #{nfc_forward.1} parent=5 // pred_check_branch
        %5392 = sbr.rel (%p5390) target = $region56
      $region55: #{nfc_forward.1} parent=5 // pred_region
        %s5393 = ssub.s32 %s16, 2
        // Predicated region
        $region57: #{nfc_forward.1} parent=55 // pred_check
          %p5394 = pneg %p202
        $region58: #{nfc_forward.1} parent=55 // pred_check_branch
          %5396 = sbr.rel (%p5394) target = $region60
        $region59: #{nfc_forward.1} parent=55 // pred_region
          %s5397 = sand.u32 %s187, 1
          %s5398 = scalar_lea.sflag [#allocation3], %s5397
          %s5399 = sand.u32 %s187, 1
          %s5400 = smul.addr %s5399, 4
          %s5401 = scalar_lea.vmem [#allocation2], %s5400
          %5402 = dma.done %s5398, 64
        $region60: #{nfc_forward.1} parent=55 // pred_fallthru
          _
      $region56: #{nfc_forward.1} parent=5 // pred_fallthru
        _
    $region6: #{nfc_forward.1} parent=1 // loop_footer
      %s20 = sadd.s32 1, %s16
    $region7: #{nfc_forward.1} parent=1 // loop_footer_branch
      %15 = sbr.rel target = $region3
    $region8: #{nfc_forward.1} parent=1 // loop_exit
      _
    %5403 = vsyncpa [#allocation3], 1
    %s5404 = scalar_lea.sflag [#allocation3], 1
    %5405 = vsyncpa %s5404, 1

</llo_original>
